<compile_context>
chip_gen: v6e
topology: v6e:2x2x1
jax: 0.10.0
libtpu: 0.0.40
codegen_flags: <defaults>
</compile_context>

<pallas_src>
import functools

import jax
import jax.numpy as jnp
from jax.experimental import pallas as pl
from jax.experimental.pallas import tpu as pltpu

EMBED_DIM = 256
BACKBONE_FEATS = 1280      # efficientnet_b0 classifier[1].in_features
STEM_CH = 32               # efficientnet_b0 stem output channels
BN_EPS = 1e-5
NORM_EPS = 1e-12           # torch F.normalize default eps
LANE = 128
MAX_TILE_HW = 4096         # spatial lanes per grid step (multiple of 128)


def _round_up(x, m):
    return (x + m - 1) // m * m


# ----------------------------- Pallas kernels ------------------------------

def _stem_pool_kernel(p_ref, v_ref, wx_ref, wb_ref, shift_ref, out_ref,
                      acc_ref, *, hw_valid, hw_pad):
    """Fused (grayscale-conv ∘ stem 3x3/s2 conv ∘ BN) + SiLU + global average
    pool, accumulated across spatial tiles in a VMEM scratch.

    p_ref:     (1, 9, tile_hw)  bf16  lane-dense im2col planes of the gray image
    v_ref:     (9, tile_hw)     bf16  per-tap validity (1 inside image, 0 in pad)
    wx_ref:    (32, 9)          bf16  folded weight  (stem_w · gray_w · BN scale)
    wb_ref:    (32, 9)          bf16  folded per-tap bias weight (stem_w · gray_b · scale)
    shift_ref: (32, 1)          f32   BN shift
    out_ref:   (1, 32, 1)       f32   pooled stem features for this batch element
    acc_ref:   (32, 1)          f32   pooled-sum accumulator (VMEM scratch)
    """
    t = pl.program_id(1)

    @pl.when(t == 0)
    def _init():
        acc_ref[...] = jnp.zeros_like(acc_ref)

    # (32, tile_hw) lane-dense activation tile; MXU bf16 with f32 accumulation.
    y = jnp.dot(wx_ref[...], p_ref[0], preferred_element_type=jnp.float32)
    y = y + jnp.dot(wb_ref[...], v_ref[...], preferred_element_type=jnp.float32)
    y = y + shift_ref[...]
    y = y * jax.nn.sigmoid(y)                                   # SiLU (f32 VPU/EUP)
    acc_ref[...] += jnp.sum(y, axis=1, keepdims=True)           # lane reduce (XLU)

    @pl.when(t == pl.num_programs(1) - 1)
    def _finalize():
        # Zero-padded spatial columns have p = v = 0, so each contributes exactly
        # silu(shift); subtract that once instead of masking every tile.
        s = shift_ref[...]
        pad_corr = float(hw_pad - hw_valid) * (s * jax.nn.sigmoid(s))
        out_ref[0] = (acc_ref[...] - pad_corr) * (1.0 / hw_valid)


def _head_kernel(p_ref, pw_ref, pb_ref, w1_ref, b1_ref, w2_ref, b2_ref, out_ref):
    """Fused post-pool MLP for the whole (3B) batch:
       proj 32->1280 + SiLU  ->  Linear(1280,512) [BN1d folded] -> ReLU
       -> Dropout(identity, eval) -> Linear(512,256) -> L2 normalize."""
    f = jnp.dot(p_ref[...].astype(jnp.bfloat16), pw_ref[...],
                preferred_element_type=jnp.float32) + pb_ref[...]
    f = f * jax.nn.sigmoid(f)                                   # backbone final SiLU
    h = jnp.dot(f.astype(jnp.bfloat16), w1_ref[...],
                preferred_element_type=jnp.float32) + b1_ref[...]
    h = jnp.maximum(h, 0.0)                                     # ReLU
    e = jnp.dot(h.astype(jnp.bfloat16), w2_ref[...],
                preferred_element_type=jnp.float32) + b2_ref[...]
    sq = jnp.sum(e * e, axis=1, keepdims=True)
    # torch F.normalize: e / max(||e||, eps) == e * rsqrt(max(||e||^2, eps^2))
    out_ref[...] = e * jax.lax.rsqrt(jnp.maximum(sq, NORM_EPS * NORM_EPS))


# ------------------------------ JAX wrappers --------------------------------

def _stem_patches(x_gray, max_tile=MAX_TILE_HW):
    """Lane-dense im2col: 3x3/stride-2/pad-1 taps of a single-channel image as
    9 planes with spatial on the last (lane) axis, plus per-tap validity planes
    (1 where the tap hits the real image, 0 where it hits the zero padding).

    x_gray: (B, H, W) -> patches (B, 9, hw_pad) bf16, valid (9, hw_pad) bf16."""
    B, H, W = x_gray.shape
    Ho, Wo = (H - 1) // 2 + 1, (W - 1) // 2 + 1
    HW = Ho * Wo
    xp = jnp.pad(x_gray, ((0, 0), (1, 1), (1, 1)))
    vp = jnp.pad(jnp.ones((H, W), jnp.float32), ((1, 1), (1, 1)))
    planes, vplanes = [], []
    for dh in range(3):
        for dw in range(3):
            planes.append(xp[:, dh:dh + 2 * Ho:2, dw:dw + 2 * Wo:2].reshape(B, HW))
            vplanes.append(vp[dh:dh + 2 * Ho:2, dw:dw + 2 * Wo:2].reshape(HW))
    patches = jnp.stack(planes, axis=1).astype(jnp.bfloat16)    # (B, 9, HW)
    valid = jnp.stack(vplanes, axis=0).astype(jnp.bfloat16)     # (9, HW)

    hw_pad = _round_up(HW, LANE)
    if hw_pad > max_tile:
        tile_hw = max_tile
        hw_pad = _round_up(HW, tile_hw)
    else:
        tile_hw = hw_pad                                        # whole image / step
    if hw_pad != HW:
        patches = jnp.pad(patches, ((0, 0), (0, 0), (0, hw_pad - HW)))
        valid = jnp.pad(valid, ((0, 0), (0, hw_pad - HW)))
    return patches, valid, HW, tile_hw


def backbone_pooled(x_gray, params):
    """Stand-in EfficientNet-B0 stem + global average pool.
    x_gray: (B, H, W) -> pooled stem features (B, 32) f32."""
    patches, valid, HW, tile_hw = _stem_patches(x_gray)
    B, K9, hw_pad = patches.shape
    n_tiles = hw_pad // tile_hw

    kernel = functools.partial(_stem_pool_kernel, hw_valid=HW, hw_pad=hw_pad)
    pooled = pl.pallas_call(
        kernel,
        out_shape=jax.ShapeDtypeStruct((B, STEM_CH, 1), jnp.float32),
        grid_spec=pltpu.PrefetchScalarGridSpec(
            num_scalar_prefetch=0,
            grid=(B, n_tiles),
            in_specs=[
                pl.BlockSpec((1, K9, tile_hw), lambda b, t: (b, 0, t)),
                pl.BlockSpec((K9, tile_hw), lambda b, t: (0, t)),
                pl.BlockSpec((STEM_CH, K9), lambda b, t: (0, 0)),
                pl.BlockSpec((STEM_CH, K9), lambda b, t: (0, 0)),
                pl.BlockSpec((STEM_CH, 1), lambda b, t: (0, 0)),
            ],
            out_specs=pl.BlockSpec((1, STEM_CH, 1), lambda b, t: (b, 0, 0)),
            scratch_shapes=[pltpu.VMEM((STEM_CH, 1), jnp.float32)],
        ),
        compiler_params=pltpu.CompilerParams(
            dimension_semantics=("parallel", "arbitrary"),
            # small footprint; stays well under v7x's 64 MiB physical VMEM
            vmem_limit_bytes=48 * 1024 * 1024),
    )(patches, valid, params["stem_wx"], params["stem_wb"], params["stem_shift"])
    return pooled.reshape(B, STEM_CH)


def embedding_head(pooled, params):
    """pooled (B, 32) -> L2-normalized embeddings (B, 256); one fused kernel,
    all weights (~1.7 MiB bf16) VMEM-resident."""
    B = pooled.shape[0]
    vmem = pl.BlockSpec(memory_space=pltpu.MemorySpace.VMEM)
    return pl.pallas_call(
        _head_kernel,
        out_shape=jax.ShapeDtypeStruct((B, EMBED_DIM), jnp.float32),
        in_specs=[vmem] * 7,
        out_specs=vmem,
        compiler_params=pltpu.CompilerParams(vmem_limit_bytes=32 * 1024 * 1024),
    )(pooled, params["proj_w"], params["proj_b"],
      params["fc1_w"], params["fc1_b"], params["fc2_w"], params["fc2_b"])


def forward_one(x_nchw, params):
    """x_nchw: (B, 1, H, W) grayscale -> L2-normalized embeddings (B, 256).
    The 1x1 grayscale Conv(1->3) is folded into the stem conv weights."""
    x = x_nchw.astype(jnp.float32)
    assert x.shape[1] == 1, "expects grayscale NCHW input (C == 1)"
    pooled = backbone_pooled(x[:, 0], params)
    return embedding_head(pooled, params)


def forward(anchor, positive, negative, params):
    """Triplet forward: run the three branches as one batched forward pass so
    every weight matrix is streamed from HBM only once."""
    B = anchor.shape[0]
    x = jnp.concatenate([anchor, positive, negative], axis=0)   # (3B, 1, H, W)
    emb = forward_one(x, params)
    return emb[:B], emb[B:2 * B], emb[2 * B:]


# ----------------------------- parameter init -------------------------------

def init_raw_params(key):
    """Module-style parameters (PyTorch layout / inits)."""
    ks = jax.random.split(key, 8)
    p = {}
    # grayscale_conv: Conv2d(1,3,1); kaiming_normal weight (fan_in=1 -> std sqrt(2)),
    # default uniform bias (bound 1).
    p["gray_w"] = (jax.random.normal(ks[0], (3,)) * jnp.sqrt(2.0)).astype(jnp.float32)
    p["gray_b"] = jax.random.uniform(ks[1], (3,), minval=-1.0, maxval=1.0).astype(jnp.float32)

    # Backbone stand-in: stem Conv2d(3,32,3,stride=2,pad=1,bias=False) + BN(32),
    # then 1x1 projection 32 -> 1280.
    fan_in = 9 * 3
    p["stem_w_raw"] = (jax.random.normal(ks[2], (9, 3, STEM_CH))
                       * jnp.sqrt(2.0 / fan_in)).astype(jnp.float32)  # (tap, cin, cout)
    p["stem_bn_gamma"] = jnp.ones((STEM_CH,), jnp.float32)
    p["stem_bn_beta"] = jnp.zeros((STEM_CH,), jnp.float32)
    p["stem_bn_mean"] = jnp.zeros((STEM_CH,), jnp.float32)
    p["stem_bn_var"] = jnp.ones((STEM_CH,), jnp.float32)
    p["proj_w_raw"] = (jax.random.normal(ks[3], (STEM_CH, BACKBONE_FEATS))
                       * jnp.sqrt(2.0 / STEM_CH)).astype(jnp.float32)
    p["proj_b_raw"] = jnp.zeros((BACKBONE_FEATS,), jnp.float32)

    # embedding_head: Linear(1280,512) -> BN1d(512) -> ReLU -> Dropout -> Linear(512,256)
    p["fc1_w_raw"] = (jax.random.normal(ks[4], (BACKBONE_FEATS, 512))
                      * jnp.sqrt(2.0 / BACKBONE_FEATS)).astype(jnp.float32)
    p["fc1_b_raw"] = jnp.zeros((512,), jnp.float32)
    p["bn1d_gamma"] = jnp.ones((512,), jnp.float32)
    p["bn1d_beta"] = jnp.zeros((512,), jnp.float32)
    p["bn1d_mean"] = jnp.zeros((512,), jnp.float32)
    p["bn1d_var"] = jnp.ones((512,), jnp.float32)
    p["fc2_w_raw"] = (jax.random.normal(ks[5], (512, EMBED_DIM))
                      * jnp.sqrt(2.0 / 512)).astype(jnp.float32)
    p["fc2_b_raw"] = jnp.zeros((EMBED_DIM,), jnp.float32)
    return p


def fold_inference_params(raw):
    """Algebraic folds (exact, eval mode):
      * grayscale conv + stem conv + stem BN -> (32,9) weight, (32,9) per-tap
        bias weight (applied through the validity planes, so zero-padded border
        taps correctly contribute nothing) and a (32,1) BN shift
      * fc1 bias + BatchNorm1d(512) eval     -> scaled fc1_w + fused bias
    Matmul operands stored in bf16 (MXU input dtype); f32 accumulation."""
    p = {}
    scale = raw["stem_bn_gamma"] / jnp.sqrt(raw["stem_bn_var"] + BN_EPS)       # (32,)
    shift = raw["stem_bn_beta"] - raw["stem_bn_mean"] * scale                  # (32,)
    w9 = jnp.einsum("kco,c->ko", raw["stem_w_raw"], raw["gray_w"])             # (9, 32)
    b9 = jnp.einsum("kco,c->ko", raw["stem_w_raw"], raw["gray_b"])             # (9, 32)
    p["stem_wx"] = (w9 * scale[None, :]).T.astype(jnp.bfloat16)                # (32, 9)
    p["stem_wb"] = (b9 * scale[None, :]).T.astype(jnp.bfloat16)                # (32, 9)
    p["stem_shift"] = shift.reshape(STEM_CH, 1).astype(jnp.float32)            # (32, 1)

    p["proj_w"] = raw["proj_w_raw"].astype(jnp.bfloat16)
    p["proj_b"] = raw["proj_b_raw"].reshape(1, BACKBONE_FEATS).astype(jnp.float32)

    s1 = raw["bn1d_gamma"] / jnp.sqrt(raw["bn1d_var"] + BN_EPS)
    sh1 = raw["bn1d_beta"] - raw["bn1d_mean"] * s1
    p["fc1_w"] = (raw["fc1_w_raw"] * s1[None, :]).astype(jnp.bfloat16)
    p["fc1_b"] = (raw["fc1_b_raw"] * s1 + sh1).reshape(1, 512).astype(jnp.float32)
    p["fc2_w"] = raw["fc2_w_raw"].astype(jnp.bfloat16)
    p["fc2_b"] = raw["fc2_b_raw"].reshape(1, EMBED_DIM).astype(jnp.float32)
    return p


# ---------------------------------- main -------------------------------------

if __name__ == "__main__":
    key = jax.random.PRNGKey(0)
    k_params, ka, kp, kn = jax.random.split(key, 4)
    params = fold_inference_params(init_raw_params(k_params))

    B, H, W = 2, 16, 16
    anchor = jax.random.normal(ka, (B, 1, H, W), jnp.float32)     # NCHW grayscale
    positive = jax.random.normal(kp, (B, 1, H, W), jnp.float32)
    negative = jax.random.normal(kn, (B, 1, H, W), jnp.float32)

    fwd = jax.jit(forward)
    a_emb, p_emb, n_emb = fwd(anchor, positive, negative, params)
    a_emb = jax.block_until_ready(a_emb)
    p_emb = jax.block_until_ready(p_emb)
    n_emb = jax.block_until_ready(n_emb)

    assert a_emb.shape == (B, EMBED_DIM)
    assert p_emb.shape == (B, EMBED_DIM)
    assert n_emb.shape == (B, EMBED_DIM)
    # embeddings must be L2-normalized along dim 1
    for e in (a_emb, p_emb, n_emb):
        norms = jnp.linalg.norm(e, axis=1)
        assert bool(jnp.all(jnp.abs(norms - 1.0) < 1e-4))

    print("KERNEL_OK")
</pallas_src>

<mosaic_0001>
module attributes {stable_mosaic.version = 11 : i64} {
  func.func @_stem_pool_kernel(%arg0: i32, %arg1: i32, %arg2: memref<1x9x128xbf16, #tpu.memory_space<vmem>>, %arg3: memref<9x128xbf16, #tpu.memory_space<vmem>>, %arg4: memref<32x9xbf16, #tpu.memory_space<vmem>>, %arg5: memref<32x9xbf16, #tpu.memory_space<vmem>>, %arg6: memref<32x1xf32, #tpu.memory_space<vmem>>, %arg7: memref<1x32x1xf32, #tpu.memory_space<vmem>>, %arg8: memref<32x1xf32, #tpu.memory_space<vmem>>) attributes {dimension_semantics = [#tpu.dimension_semantics<parallel>, #tpu.dimension_semantics<arbitrary>], iteration_bounds = array<i64: 6, 1>, scalar_prefetch = 0 : i64, scratch_operands = 1 : i64, tpu.core_type = #tpu.core_type<tc>, window_params = [{transform_indices = @transform_0, window_bounds = array<i64: 1, 9, 128>}, {transform_indices = @transform_1, window_bounds = array<i64: 9, 128>}, {pipeline_mode = #tpu.pipeline_mode<synchronous>, transform_indices = @transform_2, window_bounds = array<i64: 32, 9>}, {pipeline_mode = #tpu.pipeline_mode<synchronous>, transform_indices = @transform_3, window_bounds = array<i64: 32, 9>}, {pipeline_mode = #tpu.pipeline_mode<synchronous>, transform_indices = @transform_4, window_bounds = array<i64: 32, 1>}, {transform_indices = @transform_5, window_bounds = array<i64: 1, 32, 1>}]} {
    %c0_i32 = arith.constant 0 : i32
    %0 = arith.cmpi eq, %arg1, %c0_i32 : i32
    %1 = arith.extui %0 : i1 to i32
    %c0_i32_0 = arith.constant 0 : i32
    %2 = arith.cmpi ne, %1, %c0_i32_0 : i32
    scf.if %2 {
      %cst_20 = arith.constant 0.000000e+00 : f32
      %28 = vector.broadcast %cst_20 : f32 to vector<32x1xf32>
      %c0_21 = arith.constant 0 : index
      %c0_22 = arith.constant 0 : index
      %29 = vector.load %arg8[%c0_21, %c0_22] : memref<32x1xf32, #tpu.memory_space<vmem>>, vector<32x1xf32>
      tpu.vector_store %arg8[%c0_21, %c0_22], %28 {strides = array<i32>} : memref<32x1xf32, #tpu.memory_space<vmem>>, vector<32x1xf32>,
    } else {
    }
    %c0 = arith.constant 0 : index
    %c0_1 = arith.constant 0 : index
    %3 = vector.load %arg4[%c0, %c0_1] : memref<32x9xbf16, #tpu.memory_space<vmem>>, vector<32x9xbf16>
    %c0_2 = arith.constant 0 : index
    %c0_3 = arith.constant 0 : index
    %c0_4 = arith.constant 0 : index
    %4 = vector.load %arg2[%c0_2, %c0_3, %c0_4] : memref<1x9x128xbf16, #tpu.memory_space<vmem>>, vector<1x9x128xbf16>
    %5 = vector.shape_cast %4 : vector<1x9x128xbf16> to vector<9x128xbf16>
    %cst = arith.constant dense<0.000000e+00> : vector<32x128xf32>
    %6 = tpu.matmul %3, %5, %cst {dimension_numbers = #tpu.dot_dimension_numbers<[1], [0], [0], [1], [0, 0, 1, 1], [], []>} : vector<32x9xbf16>, vector<9x128xbf16>, vector<32x128xf32> -> vector<32x128xf32>
    %c0_5 = arith.constant 0 : index
    %c0_6 = arith.constant 0 : index
    %7 = vector.load %arg5[%c0_5, %c0_6] : memref<32x9xbf16, #tpu.memory_space<vmem>>, vector<32x9xbf16>
    %c0_7 = arith.constant 0 : index
    %c0_8 = arith.constant 0 : index
    %8 = vector.load %arg3[%c0_7, %c0_8] : memref<9x128xbf16, #tpu.memory_space<vmem>>, vector<9x128xbf16>
    %cst_9 = arith.constant dense<0.000000e+00> : vector<32x128xf32>
    %9 = tpu.matmul %7, %8, %cst_9 {dimension_numbers = #tpu.dot_dimension_numbers<[1], [0], [0], [1], [0, 0, 1, 1], [], []>} : vector<32x9xbf16>, vector<9x128xbf16>, vector<32x128xf32> -> vector<32x128xf32>
    %10 = arith.addf %6, %9 : vector<32x128xf32>
    %c0_10 = arith.constant 0 : index
    %c0_11 = arith.constant 0 : index
    %11 = vector.load %arg6[%c0_10, %c0_11] : memref<32x1xf32, #tpu.memory_space<vmem>>, vector<32x1xf32>
    %12 = vector.broadcast %11 : vector<32x1xf32> to vector<32x128xf32>
    %13 = arith.addf %10, %12 : vector<32x128xf32>
    %14 = arith.negf %13 : vector<32x128xf32>
    %15 = math.exp %14 : vector<32x128xf32>
    %cst_12 = arith.constant 1.000000e+00 : f32
    %16 = vector.broadcast %cst_12 : f32 to vector<32x128xf32>
    %17 = arith.addf %16, %15 : vector<32x128xf32>
    %18 = arith.divf %16, %17 : vector<32x128xf32>
    %19 = arith.mulf %13, %18 : vector<32x128xf32>
    %c0_13 = arith.constant 0 : index
    %c0_14 = arith.constant 0 : index
    %20 = vector.load %arg8[%c0_13, %c0_14] : memref<32x1xf32, #tpu.memory_space<vmem>>, vector<32x1xf32>
    %cst_15 = arith.constant dense<0.000000e+00> : vector<32xf32>
    %21 = vector.multi_reduction <add>, %19, %cst_15 [1] : vector<32x128xf32> to vector<32xf32>
    %22 = vector.shape_cast %21 : vector<32xf32> to vector<32x1xf32>
    %23 = arith.addf %20, %22 : vector<32x1xf32>
    %c0_16 = arith.constant 0 : index
    %c0_17 = arith.constant 0 : index
    %24 = vector.load %arg8[%c0_16, %c0_17] : memref<32x1xf32, #tpu.memory_space<vmem>>, vector<32x1xf32>
    tpu.vector_store %arg8[%c0_16, %c0_17], %23 {strides = array<i32>} : memref<32x1xf32, #tpu.memory_space<vmem>>, vector<32x1xf32>,
    %c0_i32_18 = arith.constant 0 : i32
    %25 = arith.cmpi eq, %arg1, %c0_i32_18 : i32
    %26 = arith.extui %25 : i1 to i32
    %c0_i32_19 = arith.constant 0 : i32
    %27 = arith.cmpi ne, %26, %c0_i32_19 : i32
    scf.if %27 {
      %c0_20 = arith.constant 0 : index
      %c0_21 = arith.constant 0 : index
      %28 = vector.load %arg6[%c0_20, %c0_21] : memref<32x1xf32, #tpu.memory_space<vmem>>, vector<32x1xf32>
      %29 = arith.negf %28 : vector<32x1xf32>
      %30 = math.exp %29 : vector<32x1xf32>
      %cst_22 = arith.constant 1.000000e+00 : f32
      %31 = vector.broadcast %cst_22 : f32 to vector<32x1xf32>
      %32 = arith.addf %31, %30 : vector<32x1xf32>
      %33 = arith.divf %31, %32 : vector<32x1xf32>
      %34 = arith.mulf %28, %33 : vector<32x1xf32>
      %cst_23 = arith.constant 6.400000e+01 : f32
      %35 = vector.broadcast %cst_23 : f32 to vector<32x1xf32>
      %36 = arith.mulf %35, %34 : vector<32x1xf32>
      %c0_24 = arith.constant 0 : index
      %c0_25 = arith.constant 0 : index
      %37 = vector.load %arg8[%c0_24, %c0_25] : memref<32x1xf32, #tpu.memory_space<vmem>>, vector<32x1xf32>
      %38 = arith.subf %37, %36 : vector<32x1xf32>
      %cst_26 = arith.constant 1.562500e-02 : f32
      %39 = vector.broadcast %cst_26 : f32 to vector<32x1xf32>
      %40 = arith.mulf %38, %39 : vector<32x1xf32>
      %c0_27 = arith.constant 0 : index
      %c0_28 = arith.constant 0 : index
      %c0_29 = arith.constant 0 : index
      %41 = vector.load %arg7[%c0_27, %c0_28, %c0_29] : memref<1x32x1xf32, #tpu.memory_space<vmem>>, vector<1x32x1xf32>
      %42 = vector.shape_cast %41 : vector<1x32x1xf32> to vector<32x1xf32>
      %43 = vector.shape_cast %40 : vector<32x1xf32> to vector<1x32x1xf32>
      tpu.vector_store %arg7[%c0_27, %c0_28, %c0_29], %43 {strides = array<i32>} : memref<1x32x1xf32, #tpu.memory_space<vmem>>, vector<1x32x1xf32>,
    } else {
    }
    return
  }
  func.func @transform_0(%arg0: i32, %arg1: i32) -> (i32, i32, i32) {
    %c0_i32 = arith.constant 0 : i32
    %c0_i32_0 = arith.constant 0 : i32
    return %arg0, %c0_i32, %arg1 : i32, i32, i32
  }
  func.func @transform_1(%arg0: i32, %arg1: i32) -> (i32, i32) {
    %c0_i32 = arith.constant 0 : i32
    %c0_i32_0 = arith.constant 0 : i32
    return %c0_i32, %arg1 : i32, i32
  }
  func.func @transform_2(%arg0: i32, %arg1: i32) -> (i32, i32) {
    %c0_i32 = arith.constant 0 : i32
    %c0_i32_0 = arith.constant 0 : i32
    %c0_i32_1 = arith.constant 0 : i32
    return %c0_i32, %c0_i32_0 : i32, i32
  }
  func.func @transform_3(%arg0: i32, %arg1: i32) -> (i32, i32) {
    %c0_i32 = arith.constant 0 : i32
    %c0_i32_0 = arith.constant 0 : i32
    %c0_i32_1 = arith.constant 0 : i32
    return %c0_i32, %c0_i32_0 : i32, i32
  }
  func.func @transform_4(%arg0: i32, %arg1: i32) -> (i32, i32) {
    %c0_i32 = arith.constant 0 : i32
    %c0_i32_0 = arith.constant 0 : i32
    %c0_i32_1 = arith.constant 0 : i32
    return %c0_i32, %c0_i32_0 : i32, i32
  }
  func.func @transform_5(%arg0: i32, %arg1: i32) -> (i32, i32, i32) {
    %c0_i32 = arith.constant 0 : i32
    %c0_i32_0 = arith.constant 0 : i32
    %c0_i32_1 = arith.constant 0 : i32
    return %arg0, %c0_i32, %c0_i32_0 : i32, i32, i32
  }
}

module attributes {stable_mosaic.version = 11 : i64} {
  func.func @_head_kernel(%arg0: memref<6x32xf32, #tpu.memory_space<vmem>>, %arg1: memref<32x1280xbf16, #tpu.memory_space<vmem>>, %arg2: memref<1x1280xf32, #tpu.memory_space<vmem>>, %arg3: memref<1280x512xbf16, #tpu.memory_space<vmem>>, %arg4: memref<1x512xf32, #tpu.memory_space<vmem>>, %arg5: memref<512x256xbf16, #tpu.memory_space<vmem>>, %arg6: memref<1x256xf32, #tpu.memory_space<vmem>>, %arg7: memref<6x256xf32, #tpu.memory_space<vmem>>) attributes {dimension_semantics = [], scalar_prefetch = 0 : i64, scratch_operands = 0 : i64, tpu.core_type = #tpu.core_type<tc>} {
    %c0 = arith.constant 0 : index
    %c0_0 = arith.constant 0 : index
    %0 = vector.load %arg0[%c0, %c0_0] : memref<6x32xf32, #tpu.memory_space<vmem>>, vector<6x32xf32>
    %1 = arith.truncf %0 : vector<6x32xf32> to vector<6x32xbf16>
    %c0_1 = arith.constant 0 : index
    %c0_2 = arith.constant 0 : index
    %2 = vector.load %arg1[%c0_1, %c0_2] : memref<32x1280xbf16, #tpu.memory_space<vmem>>, vector<32x1280xbf16>
    %cst = arith.constant dense<0.000000e+00> : vector<6x1280xf32>
    %3 = tpu.matmul %1, %2, %cst {dimension_numbers = #tpu.dot_dimension_numbers<[1], [0], [0], [1], [0, 0, 1, 1], [], []>} : vector<6x32xbf16>, vector<32x1280xbf16>, vector<6x1280xf32> -> vector<6x1280xf32>
    %c0_3 = arith.constant 0 : index
    %c0_4 = arith.constant 0 : index
    %4 = vector.load %arg2[%c0_3, %c0_4] : memref<1x1280xf32, #tpu.memory_space<vmem>>, vector<1x1280xf32>
    %5 = vector.broadcast %4 : vector<1x1280xf32> to vector<6x1280xf32>
    %6 = arith.addf %3, %5 : vector<6x1280xf32>
    %7 = arith.negf %6 : vector<6x1280xf32>
    %8 = math.exp %7 : vector<6x1280xf32>
    %cst_5 = arith.constant 1.000000e+00 : f32
    %9 = vector.broadcast %cst_5 : f32 to vector<6x1280xf32>
    %10 = arith.addf %9, %8 : vector<6x1280xf32>
    %11 = arith.divf %9, %10 : vector<6x1280xf32>
    %12 = arith.mulf %6, %11 : vector<6x1280xf32>
    %13 = arith.truncf %12 : vector<6x1280xf32> to vector<6x1280xbf16>
    %c0_6 = arith.constant 0 : index
    %c0_7 = arith.constant 0 : index
    %14 = vector.load %arg3[%c0_6, %c0_7] : memref<1280x512xbf16, #tpu.memory_space<vmem>>, vector<1280x512xbf16>
    %cst_8 = arith.constant dense<0.000000e+00> : vector<6x512xf32>
    %15 = tpu.matmul %13, %14, %cst_8 {dimension_numbers = #tpu.dot_dimension_numbers<[1], [0], [0], [1], [0, 0, 1, 1], [], []>} : vector<6x1280xbf16>, vector<1280x512xbf16>, vector<6x512xf32> -> vector<6x512xf32>
    %c0_9 = arith.constant 0 : index
    %c0_10 = arith.constant 0 : index
    %16 = vector.load %arg4[%c0_9, %c0_10] : memref<1x512xf32, #tpu.memory_space<vmem>>, vector<1x512xf32>
    %17 = vector.broadcast %16 : vector<1x512xf32> to vector<6x512xf32>
    %18 = arith.addf %15, %17 : vector<6x512xf32>
    %cst_11 = arith.constant 0.000000e+00 : f32
    %19 = vector.broadcast %cst_11 : f32 to vector<6x512xf32>
    %20 = arith.maximumf %18, %19 : vector<6x512xf32>
    %21 = arith.truncf %20 : vector<6x512xf32> to vector<6x512xbf16>
    %c0_12 = arith.constant 0 : index
    %c0_13 = arith.constant 0 : index
    %22 = vector.load %arg5[%c0_12, %c0_13] : memref<512x256xbf16, #tpu.memory_space<vmem>>, vector<512x256xbf16>
    %cst_14 = arith.constant dense<0.000000e+00> : vector<6x256xf32>
    %23 = tpu.matmul %21, %22, %cst_14 {dimension_numbers = #tpu.dot_dimension_numbers<[1], [0], [0], [1], [0, 0, 1, 1], [], []>} : vector<6x512xbf16>, vector<512x256xbf16>, vector<6x256xf32> -> vector<6x256xf32>
    %c0_15 = arith.constant 0 : index
    %c0_16 = arith.constant 0 : index
    %24 = vector.load %arg6[%c0_15, %c0_16] : memref<1x256xf32, #tpu.memory_space<vmem>>, vector<1x256xf32>
    %25 = vector.broadcast %24 : vector<1x256xf32> to vector<6x256xf32>
    %26 = arith.addf %23, %25 : vector<6x256xf32>
    %27 = arith.mulf %26, %26 : vector<6x256xf32>
    %cst_17 = arith.constant dense<0.000000e+00> : vector<6xf32>
    %28 = vector.multi_reduction <add>, %27, %cst_17 [1] : vector<6x256xf32> to vector<6xf32>
    %29 = vector.shape_cast %28 : vector<6xf32> to vector<6x1xf32>
    %cst_18 = arith.constant 1.000000e-24 : f32
    %30 = vector.broadcast %cst_18 : f32 to vector<6x1xf32>
    %31 = arith.maximumf %29, %30 : vector<6x1xf32>
    %32 = math.rsqrt %31 : vector<6x1xf32>
    %33 = vector.broadcast %32 : vector<6x1xf32> to vector<6x256xf32>
    %34 = arith.mulf %26, %33 : vector<6x256xf32>
    %c0_19 = arith.constant 0 : index
    %c0_20 = arith.constant 0 : index
    %35 = vector.load %arg7[%c0_19, %c0_20] : memref<6x256xf32, #tpu.memory_space<vmem>>, vector<6x256xf32>
    tpu.vector_store %arg7[%c0_19, %c0_20], %34 {strides = array<i32>} : memref<6x256xf32, #tpu.memory_space<vmem>>, vector<6x256xf32>,
    return
  }
}

</mosaic_0001>

<llo_original>
// kernel: forward.2
$region0: #{forward.2}
  #allocation0 [shape = 'u32[]', space=smem, size = 0x4, offset = 0x4, fixed_abs, tag = 'smem constant byte address 0x4 - core index']
  #allocation1 [shape = 'u32[144,128]{1,0:T(1,128)}', space=vmem, size = 0x12000, scoped, tag = 'internal scratch']
  #allocation2 [shape = 'f32[32,1]{1,0:T(8,128)}', space=vmem, size = 0x4000, scoped, tag = 'scratch operand']
  %s0 = inlined_call_operand.vmem [shape: bf16[6,9,128], index: 0, kind: input, shape index: {}]
  %s1 = inlined_call_operand.vmem [shape: bf16[9,128], index: 1, kind: input, shape index: {}]
  %s2 = inlined_call_operand.vmem [shape: bf16[32,9], index: 2, kind: input, shape index: {}]
  %s3 = inlined_call_operand.vmem [shape: bf16[32,9], index: 3, kind: input, shape index: {}]
  %s4 = inlined_call_operand.vmem [shape: f32[32,1], index: 4, kind: input, shape index: {}]
  %s5 = inlined_call_operand.vmem [shape: f32[6,32,1], index: 5, kind: output, shape index: {}]
  %s6 = sld [smem:[#allocation0]]
  $region61: #{forward.2} parent=0
    _
  %s8 = ssub.s32 1, %s6
  %s9 = scalar_select 0, %s8, %s6
  loop: start=0, step=1, limit=8
  $region2: #{forward.2} parent=0 // loop_pre_header
    _
  $region3: #{forward.2} parent=0 // loop_header
    %s11 = sphi 0, %s15
    %p12 = scmp.ge.s32.totalorder %s11, 8
    %s18 = sphi 0, %s30
    %s19 = sphi 0, %s26
    %s20 = sphi 0, %s18
    %s21 = sphi 0, %s19
    %s22 = sphi 0, %s20
    %s23 = sphi 0, %s21
    %s35 = sphi 0, %s37
    %s38 = sphi 0, %s35
    %s39 = sphi 0, %s38
    %s55 = sphi 0, %s39
    %s61 = sphi 0, %s63
    %s64 = sphi 0, %s61
    %s65 = sphi 0, %s64
    %s81 = sphi 0, %s65
    %s85 = sphi 0, %s85
    %s87 = sphi 0, %s85
    %s88 = sphi 0, %s87
    %s102 = sphi 0, %s88
    %s106 = sphi 0, %s106
    %s108 = sphi 0, %s106
    %s109 = sphi 0, %s108
    %s123 = sphi 0, %s109
    %s127 = sphi 0, %s127
    %s129 = sphi 0, %s127
    %s130 = sphi 0, %s129
    %s144 = sphi 0, %s130
    %s150 = sphi 0, %s152
    %s153 = sphi 0, %s150
    %s154 = sphi 0, %s153
    %s170 = sphi 0, %s154
  $region4: #{forward.2} parent=0 // loop_header_branch
    %14 = sbr.rel (%p12) target = $region8
  $region5: #{forward.2} parent=0 // loop_body
    %s16 = ssub.s32 %s11, 1
    %s17 = ssub.s32 %s11, 2
    %s24 = sadd.s32 1, %s19
    %p25 = scmp.ge.s32.totalorder %s24, 1
    %s26 = scalar_select %p25, 0, %s24
    %s27 = sadd.s32 1, %s18
    %s28 = scalar_select %p25, %s27, %s18
    %p29 = scmp.ge.s32.totalorder %s28, 6
    %s30 = scalar_select %p29, 0, %s28
    %s31 = ssub.s32 %s18, %s30
    %s32 = ssub.s32 %s19, %s26
    %s33 = sor.u32 %s31, %s32
    %p34 = scmp.eq.s32.totalorder %s33, 0
    %s36 = sadd.s32 %s35, 1
    %s37 = scalar_select %p34, %s35, %s36
    %p40 = pneg %p34
    %p41 = scmp.eq.s32.totalorder %s11, 5
    %p42 = por %p40, %p41
    %p43 = scmp.ne.s32.totalorder %s35, %s38
    %p44 = scmp.eq.s32.totalorder %s11, 0
    %p45 = por %p43, %p44
    %p46 = scmp.ne.s32.totalorder %s35, %s38
    %p47 = scmp.eq.s32.totalorder %s16, 5
    %p48 = por %p46, %p47
    %p49 = scmp.ne.s32.totalorder %s38, %s39
    %p50 = scmp.eq.s32.totalorder %s16, 0
    %p51 = por %p49, %p50
    %p52 = scmp.ne.s32.totalorder %s38, %s39
    %p53 = scmp.eq.s32.totalorder %s17, 5
    %p54 = por %p52, %p53
    %p56 = scmp.ne.s32.totalorder %s39, %s55
    %p57 = scmp.eq.s32.totalorder %s17, 0
    %p58 = por %p56, %p57
    %s59 = ssub.s32 %s19, %s26
    %p60 = scmp.eq.s32.totalorder %s59, 0
    %s62 = sadd.s32 %s61, 1
    %s63 = scalar_select %p60, %s61, %s62
    %p66 = pneg %p60
    %p67 = scmp.eq.s32.totalorder %s11, 5
    %p68 = por %p66, %p67
    %p69 = scmp.ne.s32.totalorder %s61, %s64
    %p70 = scmp.eq.s32.totalorder %s11, 0
    %p71 = por %p69, %p70
    %p72 = scmp.ne.s32.totalorder %s61, %s64
    %p73 = scmp.eq.s32.totalorder %s16, 5
    %p74 = por %p72, %p73
    %p75 = scmp.ne.s32.totalorder %s64, %s65
    %p76 = scmp.eq.s32.totalorder %s16, 0
    %p77 = por %p75, %p76
    %p78 = scmp.ne.s32.totalorder %s64, %s65
    %p79 = scmp.eq.s32.totalorder %s17, 5
    %p80 = por %p78, %p79
    %p82 = scmp.ne.s32.totalorder %s65, %s81
    %p83 = scmp.eq.s32.totalorder %s17, 0
    %p84 = por %p82, %p83
    %s86 = sadd.s32 %s85, 1
    %p89 = scmp.eq.s32.totalorder %s11, 5
    %p90 = scmp.ne.s32.totalorder %s85, %s87
    %p91 = scmp.eq.s32.totalorder %s11, 0
    %p92 = por %p90, %p91
    %p93 = scmp.ne.s32.totalorder %s85, %s87
    %p94 = scmp.eq.s32.totalorder %s16, 5
    %p95 = por %p93, %p94
    %p96 = scmp.ne.s32.totalorder %s87, %s88
    %p97 = scmp.eq.s32.totalorder %s16, 0
    %p98 = por %p96, %p97
    %p99 = scmp.ne.s32.totalorder %s87, %s88
    %p100 = scmp.eq.s32.totalorder %s17, 5
    %p101 = por %p99, %p100
    %p103 = scmp.ne.s32.totalorder %s88, %s102
    %p104 = scmp.eq.s32.totalorder %s17, 0
    %p105 = por %p103, %p104
    %s107 = sadd.s32 %s106, 1
    %p110 = scmp.eq.s32.totalorder %s11, 5
    %p111 = scmp.ne.s32.totalorder %s106, %s108
    %p112 = scmp.eq.s32.totalorder %s11, 0
    %p113 = por %p111, %p112
    %p114 = scmp.ne.s32.totalorder %s106, %s108
    %p115 = scmp.eq.s32.totalorder %s16, 5
    %p116 = por %p114, %p115
    %p117 = scmp.ne.s32.totalorder %s108, %s109
    %p118 = scmp.eq.s32.totalorder %s16, 0
    %p119 = por %p117, %p118
    %p120 = scmp.ne.s32.totalorder %s108, %s109
    %p121 = scmp.eq.s32.totalorder %s17, 5
    %p122 = por %p120, %p121
    %p124 = scmp.ne.s32.totalorder %s109, %s123
    %p125 = scmp.eq.s32.totalorder %s17, 0
    %p126 = por %p124, %p125
    %s128 = sadd.s32 %s127, 1
    %p131 = scmp.eq.s32.totalorder %s11, 5
    %p132 = scmp.ne.s32.totalorder %s127, %s129
    %p133 = scmp.eq.s32.totalorder %s11, 0
    %p134 = por %p132, %p133
    %p135 = scmp.ne.s32.totalorder %s127, %s129
    %p136 = scmp.eq.s32.totalorder %s16, 5
    %p137 = por %p135, %p136
    %p138 = scmp.ne.s32.totalorder %s129, %s130
    %p139 = scmp.eq.s32.totalorder %s16, 0
    %p140 = por %p138, %p139
    %p141 = scmp.ne.s32.totalorder %s129, %s130
    %p142 = scmp.eq.s32.totalorder %s17, 5
    %p143 = por %p141, %p142
    %p145 = scmp.ne.s32.totalorder %s130, %s144
    %p146 = scmp.eq.s32.totalorder %s17, 0
    %p147 = por %p145, %p146
    %s148 = ssub.s32 %s18, %s30
    %p149 = scmp.eq.s32.totalorder %s148, 0
    %s151 = sadd.s32 %s150, 1
    %s152 = scalar_select %p149, %s150, %s151
    %p155 = pneg %p149
    %p156 = scmp.eq.s32.totalorder %s11, 5
    %p157 = por %p155, %p156
    %p158 = scmp.ne.s32.totalorder %s150, %s153
    %p159 = scmp.eq.s32.totalorder %s11, 0
    %p160 = por %p158, %p159
    %p161 = scmp.ne.s32.totalorder %s150, %s153
    %p162 = scmp.eq.s32.totalorder %s16, 5
    %p163 = por %p161, %p162
    %p164 = scmp.ne.s32.totalorder %s153, %s154
    %p165 = scmp.eq.s32.totalorder %s16, 0
    %p166 = por %p164, %p165
    %p167 = scmp.ne.s32.totalorder %s153, %s154
    %p168 = scmp.eq.s32.totalorder %s17, 5
    %p169 = por %p167, %p168
    %p171 = scmp.ne.s32.totalorder %s154, %s170
    %p172 = scmp.eq.s32.totalorder %s17, 0
    %p173 = por %p171, %p172
    %p174 = scmp.le.s32.totalorder 1, %s11
    %p175 = scmp.lt.s32.totalorder %s11, 7
    %p176 = pnand %p174, %p175
    %p177 = pneg %p176
    // Predicated region
    $region9: #{forward.2} parent=5 // pred_check
      _
    $region10: #{forward.2} parent=5 // pred_check_branch
      %179 = sbr.rel (%p176) target = $region12
    $region11: #{forward.2} parent=5 // pred_region
      %s180 = ssub.s32 %s11, 1
      // Predicated region
      $region13: #{forward.2} parent=11 // pred_check
        %p181 = pneg %p77
      $region14: #{forward.2} parent=11 // pred_check_branch
        %183 = sbr.rel (%p181) target = $region16
      $region15: #{forward.2} parent=11 // pred_region
        %p184 = scmp.lt.s32.totalorder %s21, 0
        %s185 = scalar_select %p184, %s21, 0
        %s186 = smul.addr %s185, 4
        %s187 = scalar_lea.vmem %s1, %s186
      $region16: #{forward.2} parent=11 // pred_fallthru
        _
      // Predicated region
      $region17: #{forward.2} parent=11 // pred_check
        %p188 = pneg %p98
      $region18: #{forward.2} parent=11 // pred_check_branch
        %190 = sbr.rel (%p188) target = $region20
      $region19: #{forward.2} parent=11 // pred_region
        _
      $region20: #{forward.2} parent=11 // pred_fallthru
        _
      // Predicated region
      $region21: #{forward.2} parent=11 // pred_check
        %p191 = pneg %p119
      $region22: #{forward.2} parent=11 // pred_check_branch
        %193 = sbr.rel (%p191) target = $region24
      $region23: #{forward.2} parent=11 // pred_region
        _
      $region24: #{forward.2} parent=11 // pred_fallthru
        _
      // Predicated region
      $region25: #{forward.2} parent=11 // pred_check
        %p194 = pneg %p140
      $region26: #{forward.2} parent=11 // pred_check_branch
        %196 = sbr.rel (%p194) target = $region28
      $region27: #{forward.2} parent=11 // pred_region
        _
      $region28: #{forward.2} parent=11 // pred_fallthru
        _
    $region12: #{forward.2} parent=5 // pred_fallthru
      _
    %p197 = scmp.lt.s32.totalorder %s11, 6
    // Predicated region
    $region29: #{forward.2} parent=5 // pred_check
      %p198 = pneg %p197
    $region30: #{forward.2} parent=5 // pred_check_branch
      %200 = sbr.rel (%p198) target = $region32
    $region31: #{forward.2} parent=5 // pred_region
      // Predicated region
      $region33: #{forward.2} parent=31 // pred_check
        %p201 = pneg %p45
      $region34: #{forward.2} parent=31 // pred_check_branch
        %203 = sbr.rel (%p201) target = $region36
      $region35: #{forward.2} parent=31 // pred_region
        %p204 = scmp.lt.s32.totalorder %s18, 5
        %s205 = scalar_select %p204, %s18, 5
        %p206 = scmp.lt.s32.totalorder %s19, 0
        %s207 = scalar_select %p206, %s19, 0
        %s208 = smul.addr %s205, 2
        %s209 = sadd.s32 %s207, %s208
        %s210 = smul.addr %s209, 4
        %s211 = scalar_lea.vmem %s0, %s210
      $region36: #{forward.2} parent=31 // pred_fallthru
        _
    $region32: #{forward.2} parent=5 // pred_fallthru
      _
    %p212 = scmp.le.s32.totalorder 1, %s11
    %p213 = scmp.lt.s32.totalorder %s11, 7
    %p214 = pnand %p212, %p213
    %p215 = pneg %p214
    // Predicated region
    $region37: #{forward.2} parent=5 // pred_check
      _
    $region38: #{forward.2} parent=5 // pred_check_branch
      %217 = sbr.rel (%p214) target = $region40
    $region39: #{forward.2} parent=5 // pred_region
      %s218 = ssub.s32 %s11, 1
      %p219 = scmp.lt.s32.totalorder %s20, 5
      %s220 = scalar_select %p219, %s20, 5
      %p221 = scmp.lt.s32.totalorder %s21, 0
      %s222 = scalar_select %p221, %s21, 0
      %s223 = smul.addr %s220, 2
      %s224 = sadd.s32 %s222, %s223
      %s225 = smul.addr %s224, 4
      %s226 = scalar_lea.vmem %s0, %s225
      %p227 = pneg %p51
      %p228 = pneg %p48
      %p229 = scmp.lt.s32.totalorder %s21, 0
      %s230 = scalar_select %p229, %s21, 0
      %s231 = smul.addr %s230, 4
      %s232 = scalar_lea.vmem %s1, %s231
      %p233 = pneg %p77
      %p234 = pneg %p74
      %p235 = pneg %p98
      %p236 = pneg %p95
      %p237 = pneg %p119
      %p238 = pneg %p116
      %p239 = pneg %p140
      %p240 = pneg %p137
      %p241 = pneg %p166
      %p242 = pneg %p163
      %p243 = scmp.lt.s32.totalorder %s20, 5
      %s244 = scalar_select %p243, %s20, 5
      %s245 = smul.addr %s244, 4
      %s246 = smul.addr %s245, 8
      %s247 = scalar_lea.vmem %s5, %s246
      %p248 = scmp.lt.s32.totalorder %s20, 5
      %s249 = scalar_select %p248, %s20, 5
      %p250 = scmp.lt.s32.totalorder %s21, 0
      %s251 = scalar_select %p250, %s21, 0
      %s252 = smul.addr %s249, 2
      %s253 = sadd.s32 %s251, %s252
      %s254 = smul.addr %s253, 4
      %s255 = scalar_lea.vmem %s0, %s254
      %p256 = scmp.lt.s32.totalorder %s21, 0
      %s257 = scalar_select %p256, %s21, 0
      %s258 = smul.addr %s257, 4
      %s259 = scalar_lea.vmem %s1, %s258
      %p260 = scmp.lt.s32.totalorder %s20, 5
      %s261 = scalar_select %p260, %s20, 5
      %s262 = smul.addr %s261, 4
      %s263 = smul.addr %s262, 8
      %s264 = scalar_lea.vmem %s5, %s263
      %p266 = scmp.eq.s32.totalorder %s21, 0
      // Predicated region
      $region41: #{forward.2} parent=39 // pred_check
        %p267 = pneg %p266
      $region42: #{forward.2} parent=39 // pred_check_branch
        %269 = sbr.rel (%p267) target = $region44
      $region43: #{forward.2} parent=39 // pred_region
        %vm270 = vcmask 7168
        %271 = vst.msk [vmem:[#allocation2] sm:$0xff] %vm270, 0.0
        %272 = vst.msk [vmem:[#allocation2 + $0x8] sm:$0xff] %vm270, 0.0
        %273 = vst.msk [vmem:[#allocation2 + $0x10] sm:$0xff] %vm270, 0.0
        %274 = vst.msk [vmem:[#allocation2 + $0x18] sm:$0xff] %vm270, 0.0
      $region44: #{forward.2} parent=39 // pred_fallthru
        _
      %v275 = vld [vmem:[%s2] sm:$0xf]
      %v276 = vld [vmem:[%s2 + $0x4] sm:$0xf]
      %v277 = vld [vmem:[%s2 + $0x8] sm:$0xf]
      %v278 = vld [vmem:[%s2 + $0xc] sm:$0xf]
      %v279 = vld [vmem:[%s255] sm:$0xf]
      %v280 = vld [vmem:[%s255 + $0x4] sm:$0x1]
      %v281 = vld [vmem:[%s3] sm:$0xf]
      %v282 = vld [vmem:[%s3 + $0x4] sm:$0xf]
      %v283 = vld [vmem:[%s3 + $0x8] sm:$0xf]
      %v284 = vld [vmem:[%s3 + $0xc] sm:$0xf]
      %v285 = vld [vmem:[%s259] sm:$0xf]
      %v286 = vld [vmem:[%s259 + $0x4] sm:$0x1]
      %v291 = vunpack.c.l.b16 %v281
      %v292 = vunpack.c.l.b16 %v282
      %v293 = vunpack.c.l.b16 %v283
      %v294 = vunpack.c.l.b16 %v284
      %v295 = vpack.c.b16 %v292, %v291
      %v296 = vpack.c.b16 %v294, %v293
      %v299 = vunpack.c.l.b16 %v285
      %v300 = vunpack.c.l.b16 %v286
      %v301 = vpack.c.b16 %v300, %v299
      %vm302 = vcmask 72704
      %v304 = vsel %vm302, %v295, 0
      %v307 = vsel %vm302, %v296, 0
      %vm309 = vcmask 1043456
      %vm310 = vcmask 1044480
      %v311 = vsel %vm309, 4294967295, 65535
      %v312 = vsel %vm310, %v311, 0
      %v314 = vand.u32 %v301, %v312
      %316 = vmatprep.subr.bf16.mxu0 0
      %317 = vmatpush1.bf16.msra.mxu0 0
      %318 = vmatprep.subr.bf16.mxu0 0
      %319 = vmatpush1.bf16.msra.mxu0 0
      %320 = vmatprep.subr.bf16.mxu0 0
      %321 = vmatpush1.bf16.msra.mxu0 0
      %322 = vmatprep.subr.bf16.mxu0 0
      %323 = vmatpush1.bf16.msra.mxu0 0
      %324 = vmatprep.subr.bf16.mxu0 0
      %325 = vmatpush1.bf16.msra.mxu0 0
      %326 = vmatprep.subr.bf16.mxu0 0
      %327 = vmatpush1.bf16.msra.mxu0 0
      %328 = vmatprep.subr.bf16.mxu0 0
      %329 = vmatpush1.bf16.msra.mxu0 0
      %330 = vmatprep.subr.bf16.mxu0 0
      %331 = vmatpush1.bf16.msra.mxu0 %v314
      %332 = vmatprep.subr.bf16.mxu0 0
      %333 = vmatpush2.bf16.msra.mxu0 0
      %334 = vmatprep.subr.bf16.mxu0 0
      %335 = vmatpush2.bf16.msra.mxu0 0
      %336 = vmatprep.subr.bf16.mxu0 0
      %337 = vmatpush2.bf16.msra.mxu0 0
      %338 = vmatprep.subr.bf16.mxu0 0
      %339 = vmatpush2.bf16.msra.mxu0 0
      %340 = vmatprep.subr.bf16.mxu0 0
      %341 = vmatpush2.bf16.msra.mxu0 0
      %342 = vmatprep.subr.bf16.mxu0 0
      %343 = vmatpush2.bf16.msra.mxu0 0
      %344 = vmatprep.subr.bf16.mxu0 0
      %345 = vmatpush2.bf16.msra.mxu0 0
      %346 = vmatprep.subr.bf16.mxu0 0
      %347 = vmatpush2.bf16.msra.mxu0 0
      %348 = vmatprep.mubr.bf16.mxu0 0
      %349 = vmatmul.mubr.bf16.gmra.mxu0 %v304
      %v350 = vpop.f32.mrf.mxu0
      %v351 = vadd.f32 0.0, %v350
      %v352 = vpop.f32.mrf.mxu0
      %v353 = vpop.f32.mrf.mxu0
      %v354 = vadd.f32 0.0, %v353
      %v355 = vpop.f32.mrf.mxu0
      %356 = vmatprep.mubr.bf16.mxu0 0
      %357 = vmatmul.mubr.bf16.gmra.mxu0 %v307
      %v358 = vpop.f32.mrf.mxu0
      %v359 = vadd.f32 0.0, %v358
      %v360 = vpop.f32.mrf.mxu0
      %v361 = vpop.f32.mrf.mxu0
      %v362 = vadd.f32 0.0, %v361
      %v363 = vpop.f32.mrf.mxu0
      %364 = vdwg.mxu0
      %v369 = vunpack.c.l.b16 %v275
      %v370 = vunpack.c.l.b16 %v276
      %v371 = vunpack.c.l.b16 %v277
      %v372 = vunpack.c.l.b16 %v278
      %v373 = vpack.c.b16 %v370, %v369
      %v374 = vpack.c.b16 %v372, %v371
      %v377 = vunpack.c.l.b16 %v279
      %v378 = vunpack.c.l.b16 %v280
      %v379 = vpack.c.b16 %v378, %v377
      %v381 = vsel %vm302, %v373, 0
      %v384 = vsel %vm302, %v374, 0
      %v387 = vand.u32 %v379, %v312
      %389 = vmatprep.subr.bf16.mxu0 0
      %390 = vmatpush1.bf16.msra.mxu0 0
      %391 = vmatprep.subr.bf16.mxu0 0
      %392 = vmatpush1.bf16.msra.mxu0 0
      %393 = vmatprep.subr.bf16.mxu0 0
      %394 = vmatpush1.bf16.msra.mxu0 0
      %395 = vmatprep.subr.bf16.mxu0 0
      %396 = vmatpush1.bf16.msra.mxu0 0
      %397 = vmatprep.subr.bf16.mxu0 0
      %398 = vmatpush1.bf16.msra.mxu0 0
      %399 = vmatprep.subr.bf16.mxu0 0
      %400 = vmatpush1.bf16.msra.mxu0 0
      %401 = vmatprep.subr.bf16.mxu0 0
      %402 = vmatpush1.bf16.msra.mxu0 0
      %403 = vmatprep.subr.bf16.mxu0 0
      %404 = vmatpush1.bf16.msra.mxu0 %v387
      %405 = vmatprep.subr.bf16.mxu0 0
      %406 = vmatpush2.bf16.msra.mxu0 0
      %407 = vmatprep.subr.bf16.mxu0 0
      %408 = vmatpush2.bf16.msra.mxu0 0
      %409 = vmatprep.subr.bf16.mxu0 0
      %410 = vmatpush2.bf16.msra.mxu0 0
      %411 = vmatprep.subr.bf16.mxu0 0
      %412 = vmatpush2.bf16.msra.mxu0 0
      %413 = vmatprep.subr.bf16.mxu0 0
      %414 = vmatpush2.bf16.msra.mxu0 0
      %415 = vmatprep.subr.bf16.mxu0 0
      %416 = vmatpush2.bf16.msra.mxu0 0
      %417 = vmatprep.subr.bf16.mxu0 0
      %418 = vmatpush2.bf16.msra.mxu0 0
      %419 = vmatprep.subr.bf16.mxu0 0
      %420 = vmatpush2.bf16.msra.mxu0 0
      %421 = vmatprep.mubr.bf16.mxu0 0
      %422 = vmatmul.mubr.bf16.gmra.mxu0 %v381
      %v423 = vpop.f32.mrf.mxu0
      %v424 = vadd.f32 %v351, %v423
      %v425 = vpop.f32.mrf.mxu0
      %v426 = vpop.f32.mrf.mxu0
      %v427 = vadd.f32 %v354, %v426
      %v428 = vpop.f32.mrf.mxu0
      %429 = vmatprep.mubr.bf16.mxu0 0
      %430 = vmatmul.mubr.bf16.gmra.mxu0 %v384
      %v431 = vpop.f32.mrf.mxu0
      %v432 = vadd.f32 %v359, %v431
      %v433 = vpop.f32.mrf.mxu0
      %v434 = vpop.f32.mrf.mxu0
      %v435 = vadd.f32 %v362, %v434
      %v436 = vpop.f32.mrf.mxu0
      %437 = vdwg.mxu0
      %v438 = vld [vmem:[%s4] sm:$0xff]
      %v439 = vld [vmem:[%s4 + $0x8] sm:$0xff]
      %v440 = vld [vmem:[%s4 + $0x10] sm:$0xff]
      %v441 = vld [vmem:[%s4 + $0x18] sm:$0xff]
      %443 = vset.pattern.permute.xlu0 0
      %444 = vperm.xlu0 %443, %v438
      %v445 = vpop.permute.xlu0 %444
      %448 = vset.pattern.permute.xlu0 0
      %449 = vperm.xlu0 %448, %v439
      %v450 = vpop.permute.xlu0 %449
      %453 = vset.pattern.permute.xlu0 0
      %454 = vperm.xlu0 %453, %v440
      %v455 = vpop.permute.xlu0 %454
      %458 = vset.pattern.permute.xlu0 0
      %459 = vperm.xlu0 %458, %v441
      %v460 = vpop.permute.xlu0 %459
      %v462 = vadd.f32 %v424, %v445
      %v463 = vadd.f32 %v427, %v450
      %v464 = vadd.f32 %v432, %v455
      %v465 = vadd.f32 %v435, %v460
      %v466 = vxor.u32 %v462, 2147483648
      %v467 = vxor.u32 %v463, 2147483648
      %v468 = vxor.u32 %v464, 2147483648
      %v469 = vxor.u32 %v465, 2147483648
      %v470 = vmul.f32 %v466, 1.442695
      %v471 = vpow.pop %v470
      %v472 = vmul.f32 %v467, 1.442695
      %v473 = vpow.pop %v472
      %v474 = vmul.f32 %v468, 1.442695
      %v475 = vpow.pop %v474
      %v476 = vmul.f32 %v469, 1.442695
      %v477 = vpow.pop %v476
      %v478 = vadd.f32 %v471, 1.0
      %v479 = vadd.f32 %v473, 1.0
      %v480 = vadd.f32 %v475, 1.0
      %v481 = vadd.f32 %v477, 1.0
      %v482 = vrcp.pop %v478
      %v483 = vmul.f32 1.0, %v482
      %v484 = vrcp.pop %v479
      %v485 = vmul.f32 1.0, %v484
      %v486 = vrcp.pop %v480
      %v487 = vmul.f32 1.0, %v486
      %v488 = vrcp.pop %v481
      %v489 = vmul.f32 1.0, %v488
      %v490 = vmul.f32 %v462, %v483
      %v491 = vmul.f32 %v463, %v485
      %v492 = vmul.f32 %v464, %v487
      %v493 = vmul.f32 %v465, %v489
      %v494 = vld [vmem:[#allocation2] sm:$0xff]
      %v495 = vld [vmem:[#allocation2 + $0x8] sm:$0xff]
      %v496 = vld [vmem:[#allocation2 + $0x10] sm:$0xff]
      %v497 = vld [vmem:[#allocation2 + $0x18] sm:$0xff]
      %498 = vadd.xlane.f32.xlu0 %v490
      %v499 = vpop.xlane.xlu0 %498
      %500 = vadd.xlane.f32.xlu0 %v491
      %v501 = vpop.xlane.xlu0 %500
      %502 = vadd.xlane.f32.xlu0 %v492
      %v503 = vpop.xlane.xlu0 %502
      %504 = vadd.xlane.f32.xlu0 %v493
      %v505 = vpop.xlane.xlu0 %504
      %v506 = vadd.f32 %v494, %v499
      %v507 = vadd.f32 %v495, %v501
      %v508 = vadd.f32 %v496, %v503
      %v509 = vadd.f32 %v497, %v505
      %vm510 = vcmask 7168
      %511 = vst.msk [vmem:[#allocation2] sm:$0xff] %vm510, %v506
      %512 = vst.msk [vmem:[#allocation2 + $0x8] sm:$0xff] %vm510, %v507
      %513 = vst.msk [vmem:[#allocation2 + $0x10] sm:$0xff] %vm510, %v508
      %514 = vst.msk [vmem:[#allocation2 + $0x18] sm:$0xff] %vm510, %v509
      // Predicated region
      $region45: #{forward.2} parent=39 // pred_check
        %p515 = pneg %p266
      $region46: #{forward.2} parent=39 // pred_check_branch
        %517 = sbr.rel (%p515) target = $region48
      $region47: #{forward.2} parent=39 // pred_region
        %v518 = vld [vmem:[%s4] sm:$0xff]
        %v519 = vld [vmem:[%s4 + $0x8] sm:$0xff]
        %v520 = vld [vmem:[%s4 + $0x10] sm:$0xff]
        %v521 = vld [vmem:[%s4 + $0x18] sm:$0xff]
        %v522 = vxor.u32 %v518, 2147483648
        %v523 = vxor.u32 %v519, 2147483648
        %v524 = vxor.u32 %v520, 2147483648
        %v525 = vxor.u32 %v521, 2147483648
        %v526 = vmul.f32 %v522, 1.442695
        %v527 = vpow.pop %v526
        %v528 = vmul.f32 %v523, 1.442695
        %v529 = vpow.pop %v528
        %v530 = vmul.f32 %v524, 1.442695
        %v531 = vpow.pop %v530
        %v532 = vmul.f32 %v525, 1.442695
        %v533 = vpow.pop %v532
        %v534 = vadd.f32 %v527, 1.0
        %v535 = vadd.f32 %v529, 1.0
        %v536 = vadd.f32 %v531, 1.0
        %v537 = vadd.f32 %v533, 1.0
        %v538 = vrcp.pop %v534
        %v539 = vmul.f32 1.0, %v538
        %v540 = vrcp.pop %v535
        %v541 = vmul.f32 1.0, %v540
        %v542 = vrcp.pop %v536
        %v543 = vmul.f32 1.0, %v542
        %v544 = vrcp.pop %v537
        %v545 = vmul.f32 1.0, %v544
        %v546 = vmul.f32 %v518, %v539
        %v547 = vmul.f32 %v519, %v541
        %v548 = vmul.f32 %v520, %v543
        %v549 = vmul.f32 %v521, %v545
        %v550 = vmul.f32 %v546, 64.0
        %v551 = vmul.f32 %v547, 64.0
        %v552 = vmul.f32 %v548, 64.0
        %v553 = vmul.f32 %v549, 64.0
        %v554 = vld [vmem:[#allocation2] sm:$0xff]
        %v555 = vld [vmem:[#allocation2 + $0x8] sm:$0xff]
        %v556 = vld [vmem:[#allocation2 + $0x10] sm:$0xff]
        %v557 = vld [vmem:[#allocation2 + $0x18] sm:$0xff]
        %v558 = vsub.f32 %v554, %v550
        %v559 = vsub.f32 %v555, %v551
        %v560 = vsub.f32 %v556, %v552
        %v561 = vsub.f32 %v557, %v553
        %v562 = vmul.f32 %v558, 0.015625
        %v563 = vmul.f32 %v559, 0.015625
        %v564 = vmul.f32 %v560, 0.015625
        %v565 = vmul.f32 %v561, 0.015625
        %566 = vst.msk [vmem:[%s264] sm:$0xff] %vm510, %v562
        %567 = vst.msk [vmem:[%s264 + $0x8] sm:$0xff] %vm510, %v563
        %568 = vst.msk [vmem:[%s264 + $0x10] sm:$0xff] %vm510, %v564
        %569 = vst.msk [vmem:[%s264 + $0x18] sm:$0xff] %vm510, %v565
      $region48: #{forward.2} parent=39 // pred_fallthru
        _
      %p570 = scmp.lt.s32.totalorder %s20, 5
      %s571 = scalar_select %p570, %s20, 5
      %s572 = smul.addr %s571, 4
      %s573 = smul.addr %s572, 8
      %s574 = scalar_lea.vmem %s5, %s573
      // Predicated region
      $region49: #{forward.2} parent=39 // pred_check
        %p575 = pneg %p163
      $region50: #{forward.2} parent=39 // pred_check_branch
        %577 = sbr.rel (%p575) target = $region52
      $region51: #{forward.2} parent=39 // pred_region
        _
      $region52: #{forward.2} parent=39 // pred_fallthru
        _
    $region40: #{forward.2} parent=5 // pred_fallthru
      _
    %p578 = scmp.le.s32.totalorder 2, %s11
    // Predicated region
    $region53: #{forward.2} parent=5 // pred_check
      %p579 = pneg %p578
    $region54: #{forward.2} parent=5 // pred_check_branch
      %581 = sbr.rel (%p579) target = $region56
    $region55: #{forward.2} parent=5 // pred_region
      %s582 = ssub.s32 %s11, 2
      // Predicated region
      $region57: #{forward.2} parent=55 // pred_check
        %p583 = pneg %p169
      $region58: #{forward.2} parent=55 // pred_check_branch
        %585 = sbr.rel (%p583) target = $region60
      $region59: #{forward.2} parent=55 // pred_region
        %p586 = scmp.lt.s32.totalorder %s22, 5
        %s587 = scalar_select %p586, %s22, 5
        %s588 = smul.addr %s587, 4
        %s589 = smul.addr %s588, 8
        %s590 = scalar_lea.vmem %s5, %s589
      $region60: #{forward.2} parent=55 // pred_fallthru
        _
    $region56: #{forward.2} parent=5 // pred_fallthru
      _
  $region6: #{forward.2} parent=0 // loop_footer
    %s15 = sadd.s32 1, %s11
  $region7: #{forward.2} parent=0 // loop_footer_branch
    %10 = sbr.rel target = $region3
  $region8: #{forward.2} parent=0 // loop_exit
    _

// kernel: forward.3
$region0: #{forward.3}
  #allocation0 [shape = 'u32[]', space=smem, size = 0x4, offset = 0x4, fixed_abs, tag = 'smem constant byte address 0x4 - core index']
  #allocation1 [shape = 'u32[144,128]{1,0:T(1,128)}', space=vmem, size = 0x12000, scoped, tag = 'internal scratch']
  %s0 = inlined_call_operand.vmem [shape: f32[6,32], index: 0, kind: input, shape index: {}]
  %s1 = inlined_call_operand.hbm [shape: bf16[32,1280], index: 1, kind: input, shape index: {}]
  %s2 = inlined_call_operand.hbm [shape: f32[1,1280], index: 2, kind: input, shape index: {}]
  %s3 = inlined_call_operand.hbm [shape: bf16[1280,512], index: 3, kind: input, shape index: {}]
  %s4 = inlined_call_operand.hbm [shape: f32[1,512], index: 4, kind: input, shape index: {}]
  %s5 = inlined_call_operand.hbm [shape: bf16[512,256], index: 5, kind: input, shape index: {}]
  %s6 = inlined_call_operand.hbm [shape: f32[1,256], index: 6, kind: input, shape index: {}]
  %s7 = inlined_call_operand.vmem [shape: f32[6,256], index: 7, kind: output, shape index: {}]
  %s8 = sld [smem:[#allocation0]]
  $region62: #{forward.3} parent=0
    _
  %s10 = ssub.s32 1, %s8
  %s11 = scalar_select 0, %s10, %s8
  $region1: #{forward.3} parent=0
    #allocation2 [shape = 'u8[81920]{0}', space=vmem, size = 0x14000, scoped, tag = 'input window, operand 1, single buffered']
    #allocation3 [shape = 's32[1]{0}', space=sflag, size = 0x4, scoped, tag = 'scoped memory for forward.3']
    #allocation4 [shape = 'u8[5120]{0}', space=vmem, size = 0x1400, scoped, tag = 'input window, operand 2, single buffered']
    #allocation5 [shape = 's32[1]{0}', space=sflag, size = 0x4, scoped, tag = 'scoped memory for forward.3']
    #allocation6 [shape = 'u8[1310720]{0}', space=vmem, size = 0x140000, scoped, tag = 'input window, operand 3, single buffered']
    #allocation7 [shape = 'u8[2048]{0}', space=vmem, size = 0x800, scoped, tag = 'input window, operand 4, single buffered']
    #allocation8 [shape = 's32[1]{0}', space=sflag, size = 0x4, scoped, tag = 'scoped memory for forward.3']
    #allocation9 [shape = 'u8[262144]{0}', space=vmem, size = 0x40000, scoped, tag = 'input window, operand 5, single buffered']
    #allocation10 [shape = 'u8[1024]{0}', space=vmem, size = 0x400, scoped, tag = 'input window, operand 6, single buffered']
    #allocation11 [shape = 's32[1]{0}', space=sflag, size = 0x4, scoped, tag = 'scoped memory for forward.3']
    %12 = vsyncpa [#allocation3], 0
    %13 = vsyncpa [#allocation5], 0
    %14 = vsyncpa [#allocation8], 0
    %15 = vsyncpa [#allocation11], 0
    // Predicated region
    $region2: #{forward.3} parent=1 // pred_check
      _
    $region3: #{forward.3} parent=1 // pred_check_branch
      %17 = sbr.rel (0) target = $region5
    $region4: #{forward.3} parent=1 // pred_region
      _
    $region5: #{forward.3} parent=1 // pred_fallthru
      _
    // Predicated region
    $region6: #{forward.3} parent=1 // pred_check
      _
    $region7: #{forward.3} parent=1 // pred_check_branch
      %19 = sbr.rel (0) target = $region9
    $region8: #{forward.3} parent=1 // pred_region
      %s21 = ssub.s32 2560, 2560
      %22 = vsyncadd [#allocation3], %s21
      %s23 = sshll.u32 [#allocation2], 4
      %s24 = int_to_ptr.vmem [resolvable:$true] %s23
      %29 = dma.hbm_to_vmem [thread:$0]  %s1, 2560, %s24, [#allocation3], 640, 640, 40
    $region9: #{forward.3} parent=1 // pred_fallthru
      _
    // Predicated region
    $region10: #{forward.3} parent=1 // pred_check
      _
    $region11: #{forward.3} parent=1 // pred_check_branch
      %31 = sbr.rel (0) target = $region13
    $region12: #{forward.3} parent=1 // pred_region
      %s33 = ssub.s32 160, 160
      %34 = vsyncadd [#allocation5], %s33
      %s36 = sshll.u32 [#allocation4], 4
      %s37 = int_to_ptr.vmem [resolvable:$true] %s36
      %39 = dma.hbm_to_vmem [thread:$0]  %s2, 160, %s37, [#allocation5]
    $region13: #{forward.3} parent=1 // pred_fallthru
      _
    // Predicated region
    $region14: #{forward.3} parent=1 // pred_check
      _
    $region15: #{forward.3} parent=1 // pred_check_branch
      %41 = sbr.rel (0) target = $region17
    $region16: #{forward.3} parent=1 // pred_region
      %s43 = ssub.s32 40960, 40960
      %44 = vsyncadd [#allocation5], %s43
      %s45 = sshll.u32 [#allocation6], 4
      %s46 = int_to_ptr.vmem [resolvable:$true] %s45
      %51 = dma.hbm_to_vmem [thread:$0]  %s3, 40960, %s46, [#allocation5], 256, 256, 16
    $region17: #{forward.3} parent=1 // pred_fallthru
      _
    // Predicated region
    $region18: #{forward.3} parent=1 // pred_check
      _
    $region19: #{forward.3} parent=1 // pred_check_branch
      %53 = sbr.rel (0) target = $region21
    $region20: #{forward.3} parent=1 // pred_region
      %s55 = ssub.s32 64, 64
      %56 = vsyncadd [#allocation8], %s55
      %s58 = sshll.u32 [#allocation7], 4
      %s59 = int_to_ptr.vmem [resolvable:$true] %s58
      %61 = dma.hbm_to_vmem [thread:$0]  %s4, 64, %s59, [#allocation8]
    $region21: #{forward.3} parent=1 // pred_fallthru
      _
    // Predicated region
    $region22: #{forward.3} parent=1 // pred_check
      _
    $region23: #{forward.3} parent=1 // pred_check_branch
      %63 = sbr.rel (0) target = $region25
    $region24: #{forward.3} parent=1 // pred_region
      %s65 = ssub.s32 8192, 8192
      %66 = vsyncadd [#allocation8], %s65
      %s67 = sshll.u32 [#allocation9], 4
      %s68 = int_to_ptr.vmem [resolvable:$true] %s67
      %73 = dma.hbm_to_vmem [thread:$0]  %s5, 8192, %s68, [#allocation8], 128, 128, 8
    $region25: #{forward.3} parent=1 // pred_fallthru
      _
    // Predicated region
    $region26: #{forward.3} parent=1 // pred_check
      _
    $region27: #{forward.3} parent=1 // pred_check_branch
      %75 = sbr.rel (0) target = $region29
    $region28: #{forward.3} parent=1 // pred_region
      %s77 = ssub.s32 32, 32
      %78 = vsyncadd [#allocation11], %s77
      %s80 = sshll.u32 [#allocation10], 4
      %s81 = int_to_ptr.vmem [resolvable:$true] %s80
      %83 = dma.hbm_to_vmem [thread:$0]  %s6, 32, %s81, [#allocation11]
    $region29: #{forward.3} parent=1 // pred_fallthru
      _
    // Predicated region
    $region30: #{forward.3} parent=1 // pred_check
      _
    $region31: #{forward.3} parent=1 // pred_check_branch
      %85 = sbr.rel (0) target = $region33
    $region32: #{forward.3} parent=1 // pred_region
      %86 = dma.done [#allocation3], 2560
    $region33: #{forward.3} parent=1 // pred_fallthru
      _
    // Predicated region
    $region34: #{forward.3} parent=1 // pred_check
      _
    $region35: #{forward.3} parent=1 // pred_check_branch
      %88 = sbr.rel (0) target = $region37
    $region36: #{forward.3} parent=1 // pred_region
      %89 = dma.done [#allocation5], 160
    $region37: #{forward.3} parent=1 // pred_fallthru
      _
    // Predicated region
    $region38: #{forward.3} parent=1 // pred_check
      _
    $region39: #{forward.3} parent=1 // pred_check_branch
      %91 = sbr.rel (0) target = $region41
    $region40: #{forward.3} parent=1 // pred_region
      %92 = dma.done [#allocation5], 40960
    $region41: #{forward.3} parent=1 // pred_fallthru
      _
    // Predicated region
    $region42: #{forward.3} parent=1 // pred_check
      _
    $region43: #{forward.3} parent=1 // pred_check_branch
      %94 = sbr.rel (0) target = $region45
    $region44: #{forward.3} parent=1 // pred_region
      %95 = dma.done [#allocation8], 64
    $region45: #{forward.3} parent=1 // pred_fallthru
      _
    // Predicated region
    $region46: #{forward.3} parent=1 // pred_check
      _
    $region47: #{forward.3} parent=1 // pred_check_branch
      %97 = sbr.rel (0) target = $region49
    $region48: #{forward.3} parent=1 // pred_region
      %98 = dma.done [#allocation8], 8192
    $region49: #{forward.3} parent=1 // pred_fallthru
      _
    // Predicated region
    $region50: #{forward.3} parent=1 // pred_check
      _
    $region51: #{forward.3} parent=1 // pred_check_branch
      %100 = sbr.rel (0) target = $region53
    $region52: #{forward.3} parent=1 // pred_region
      %101 = dma.done [#allocation11], 32
    $region53: #{forward.3} parent=1 // pred_fallthru
      _
    %v103 = vld [vmem:[%s0] sm:$0x3f]
    %v104 = vpack.c.bf16 %v103, %v103
    %v105 = vld [vmem:[#allocation2] sm:$0xff]
    %v106 = vld [vmem:[#allocation2 + $0x8] sm:$0xff]
    %v107 = vld [vmem:[#allocation2 + $0x10] sm:$0xff]
    %v108 = vld [vmem:[#allocation2 + $0x18] sm:$0xff]
    %v109 = vld [vmem:[#allocation2 + $0x20] sm:$0xff]
    %v110 = vld [vmem:[#allocation2 + $0x28] sm:$0xff]
    %v111 = vld [vmem:[#allocation2 + $0x30] sm:$0xff]
    %v112 = vld [vmem:[#allocation2 + $0x38] sm:$0xff]
    %v113 = vld [vmem:[#allocation2 + $0x40] sm:$0xff]
    %v114 = vld [vmem:[#allocation2 + $0x48] sm:$0xff]
    %v115 = vld [vmem:[#allocation2 + $0x50] sm:$0xff]
    %v116 = vld [vmem:[#allocation2 + $0x58] sm:$0xff]
    %v117 = vld [vmem:[#allocation2 + $0x60] sm:$0xff]
    %v118 = vld [vmem:[#allocation2 + $0x68] sm:$0xff]
    %v119 = vld [vmem:[#allocation2 + $0x70] sm:$0xff]
    %v120 = vld [vmem:[#allocation2 + $0x78] sm:$0xff]
    %v121 = vld [vmem:[#allocation2 + $0x80] sm:$0xff]
    %v122 = vld [vmem:[#allocation2 + $0x88] sm:$0xff]
    %v123 = vld [vmem:[#allocation2 + $0x90] sm:$0xff]
    %v124 = vld [vmem:[#allocation2 + $0x98] sm:$0xff]
    %v125 = vld [vmem:[#allocation4] sm:$0xff]
    %v126 = vld [vmem:[#allocation4 + $0x8] sm:$0x3]
    %v129 = vlaneseq
    %v130 = vshrl.u32 %v129, 7
    %v131 = vsub.s32 0, %v130
    %v132 = vrot.slane %v125, %v131
    %v133 = vlaneseq
    %v134 = vshrl.u32 %v133, 7
    %v135 = vsub.s32 1, %v134
    %v136 = vrot.slane %v125, %v135
    %v137 = vlaneseq
    %v138 = vshrl.u32 %v137, 7
    %v139 = vsub.s32 2, %v138
    %v140 = vrot.slane %v125, %v139
    %v141 = vlaneseq
    %v142 = vshrl.u32 %v141, 7
    %v143 = vsub.s32 3, %v142
    %v144 = vrot.slane %v125, %v143
    %v145 = vlaneseq
    %v146 = vshrl.u32 %v145, 7
    %v147 = vsub.s32 4, %v146
    %v148 = vrot.slane %v125, %v147
    %v149 = vlaneseq
    %v150 = vshrl.u32 %v149, 7
    %v151 = vsub.s32 5, %v150
    %v152 = vrot.slane %v125, %v151
    %v153 = vlaneseq
    %v154 = vshrl.u32 %v153, 7
    %v155 = vsub.s32 6, %v154
    %v156 = vrot.slane %v125, %v155
    %v157 = vlaneseq
    %v158 = vshrl.u32 %v157, 7
    %v159 = vsub.s32 7, %v158
    %v160 = vrot.slane %v125, %v159
    %v161 = vlaneseq
    %v162 = vshrl.u32 %v161, 7
    %v163 = vsub.s32 0, %v162
    %v164 = vrot.slane %v126, %v163
    %v165 = vlaneseq
    %v166 = vshrl.u32 %v165, 7
    %v167 = vsub.s32 1, %v166
    %v168 = vrot.slane %v126, %v167
    %v199 = vunpack.c.l.b16 %v105
    %v200 = vunpack.c.h.b16 %v105
    %v201 = vunpack.c.l.b16 %v106
    %v202 = vunpack.c.h.b16 %v106
    %v203 = vunpack.c.l.b16 %v107
    %v204 = vunpack.c.h.b16 %v107
    %v205 = vunpack.c.l.b16 %v108
    %v206 = vunpack.c.h.b16 %v108
    %v207 = vunpack.c.l.b16 %v109
    %v208 = vunpack.c.h.b16 %v109
    %v209 = vunpack.c.l.b16 %v110
    %v210 = vunpack.c.h.b16 %v110
    %v211 = vunpack.c.l.b16 %v111
    %v212 = vunpack.c.h.b16 %v111
    %v213 = vunpack.c.l.b16 %v112
    %v214 = vunpack.c.h.b16 %v112
    %v215 = vunpack.c.l.b16 %v113
    %v216 = vunpack.c.h.b16 %v113
    %v217 = vunpack.c.l.b16 %v114
    %v218 = vunpack.c.h.b16 %v114
    %v219 = vunpack.c.l.b16 %v115
    %v220 = vunpack.c.h.b16 %v115
    %v221 = vunpack.c.l.b16 %v116
    %v222 = vunpack.c.h.b16 %v116
    %v223 = vunpack.c.l.b16 %v117
    %v224 = vunpack.c.h.b16 %v117
    %v225 = vunpack.c.l.b16 %v118
    %v226 = vunpack.c.h.b16 %v118
    %v227 = vunpack.c.l.b16 %v119
    %v228 = vunpack.c.h.b16 %v119
    %v229 = vunpack.c.l.b16 %v120
    %v230 = vunpack.c.h.b16 %v120
    %v231 = vunpack.c.l.b16 %v121
    %v232 = vunpack.c.h.b16 %v121
    %v233 = vunpack.c.l.b16 %v122
    %v234 = vunpack.c.h.b16 %v122
    %v235 = vunpack.c.l.b16 %v123
    %v236 = vunpack.c.h.b16 %v123
    %v237 = vunpack.c.l.b16 %v124
    %v238 = vunpack.c.h.b16 %v124
    %v239 = vpack.c.b16 %v209, %v199
    %v240 = vpack.c.b16 %v210, %v200
    %v241 = vpack.c.b16 %v211, %v201
    %v242 = vpack.c.b16 %v212, %v202
    %v243 = vpack.c.b16 %v213, %v203
    %v244 = vpack.c.b16 %v214, %v204
    %v245 = vpack.c.b16 %v215, %v205
    %v246 = vpack.c.b16 %v216, %v206
    %v247 = vpack.c.b16 %v217, %v207
    %v248 = vpack.c.b16 %v218, %v208
    %v249 = vpack.c.b16 %v229, %v219
    %v250 = vpack.c.b16 %v230, %v220
    %v251 = vpack.c.b16 %v231, %v221
    %v252 = vpack.c.b16 %v232, %v222
    %v253 = vpack.c.b16 %v233, %v223
    %v254 = vpack.c.b16 %v234, %v224
    %v255 = vpack.c.b16 %v235, %v225
    %v256 = vpack.c.b16 %v236, %v226
    %v257 = vpack.c.b16 %v237, %v227
    %v258 = vpack.c.b16 %v238, %v228
    %vm279 = vcmask 261120
    %v281 = vsel %vm279, %v104, 0
    %283 = vmatprep.subr.bf16.mxu0 0
    %284 = vmatpush1.bf16.msra.mxu0 0
    %285 = vmatprep.subr.bf16.mxu0 0
    %286 = vmatpush1.bf16.msra.mxu0 0
    %287 = vmatprep.subr.bf16.mxu0 0
    %288 = vmatpush1.bf16.msra.mxu0 0
    %289 = vmatprep.subr.bf16.mxu0 0
    %290 = vmatpush1.bf16.msra.mxu0 0
    %291 = vmatprep.subr.bf16.mxu0 0
    %292 = vmatpush1.bf16.msra.mxu0 0
    %293 = vmatprep.subr.bf16.mxu0 0
    %294 = vmatpush1.bf16.msra.mxu0 0
    %295 = vmatprep.subr.bf16.mxu0 %v250
    %296 = vmatpush1.bf16.msra.mxu0 %v249
    %297 = vmatprep.subr.bf16.mxu0 %v240
    %298 = vmatpush1.bf16.msra.mxu0 %v239
    %299 = vmatprep.subr.bf16.mxu0 0
    %300 = vmatpush2.bf16.msra.mxu0 0
    %301 = vmatprep.subr.bf16.mxu0 0
    %302 = vmatpush2.bf16.msra.mxu0 0
    %303 = vmatprep.subr.bf16.mxu0 0
    %304 = vmatpush2.bf16.msra.mxu0 0
    %305 = vmatprep.subr.bf16.mxu0 0
    %306 = vmatpush2.bf16.msra.mxu0 0
    %307 = vmatprep.subr.bf16.mxu0 0
    %308 = vmatpush2.bf16.msra.mxu0 0
    %309 = vmatprep.subr.bf16.mxu0 0
    %310 = vmatpush2.bf16.msra.mxu0 0
    %311 = vmatprep.subr.bf16.mxu0 0
    %312 = vmatpush2.bf16.msra.mxu0 0
    %313 = vmatprep.subr.bf16.mxu0 0
    %314 = vmatpush2.bf16.msra.mxu0 0
    %315 = vmatprep.mubr.bf16.mxu0 0
    %316 = vmatmul.mubr.bf16.gmra.mxu0 %v281
    %v317 = vpop.f32.mrf.mxu0
    %v318 = vadd.f32 %v132, %v317
    %v319 = vpop.f32.mrf.mxu0
    %v320 = vadd.f32 %v136, %v319
    %v321 = vpop.f32.mrf.mxu0
    %v322 = vpop.f32.mrf.mxu0
    %323 = vdwg.mxu0
    %324 = vmatprep.subr.bf16.mxu0 0
    %325 = vmatpush1.bf16.msra.mxu0 0
    %326 = vmatprep.subr.bf16.mxu0 0
    %327 = vmatpush1.bf16.msra.mxu0 0
    %328 = vmatprep.subr.bf16.mxu0 0
    %329 = vmatpush1.bf16.msra.mxu0 0
    %330 = vmatprep.subr.bf16.mxu0 0
    %331 = vmatpush1.bf16.msra.mxu0 0
    %332 = vmatprep.subr.bf16.mxu0 0
    %333 = vmatpush1.bf16.msra.mxu0 0
    %334 = vmatprep.subr.bf16.mxu0 0
    %335 = vmatpush1.bf16.msra.mxu0 0
    %336 = vmatprep.subr.bf16.mxu0 %v252
    %337 = vmatpush1.bf16.msra.mxu0 %v251
    %338 = vmatprep.subr.bf16.mxu0 %v242
    %339 = vmatpush1.bf16.msra.mxu0 %v241
    %340 = vmatprep.subr.bf16.mxu0 0
    %341 = vmatpush2.bf16.msra.mxu0 0
    %342 = vmatprep.subr.bf16.mxu0 0
    %343 = vmatpush2.bf16.msra.mxu0 0
    %344 = vmatprep.subr.bf16.mxu0 0
    %345 = vmatpush2.bf16.msra.mxu0 0
    %346 = vmatprep.subr.bf16.mxu0 0
    %347 = vmatpush2.bf16.msra.mxu0 0
    %348 = vmatprep.subr.bf16.mxu0 0
    %349 = vmatpush2.bf16.msra.mxu0 0
    %350 = vmatprep.subr.bf16.mxu0 0
    %351 = vmatpush2.bf16.msra.mxu0 0
    %352 = vmatprep.subr.bf16.mxu0 0
    %353 = vmatpush2.bf16.msra.mxu0 0
    %354 = vmatprep.subr.bf16.mxu0 0
    %355 = vmatpush2.bf16.msra.mxu0 0
    %356 = vmatprep.mubr.bf16.mxu0 0
    %357 = vmatmul.mubr.bf16.gmra.mxu0 %v281
    %v358 = vpop.f32.mrf.mxu0
    %v359 = vadd.f32 %v140, %v358
    %v360 = vpop.f32.mrf.mxu0
    %v361 = vadd.f32 %v144, %v360
    %v362 = vpop.f32.mrf.mxu0
    %v363 = vpop.f32.mrf.mxu0
    %364 = vdwg.mxu0
    %365 = vmatprep.subr.bf16.mxu0 0
    %366 = vmatpush1.bf16.msra.mxu0 0
    %367 = vmatprep.subr.bf16.mxu0 0
    %368 = vmatpush1.bf16.msra.mxu0 0
    %369 = vmatprep.subr.bf16.mxu0 0
    %370 = vmatpush1.bf16.msra.mxu0 0
    %371 = vmatprep.subr.bf16.mxu0 0
    %372 = vmatpush1.bf16.msra.mxu0 0
    %373 = vmatprep.subr.bf16.mxu0 0
    %374 = vmatpush1.bf16.msra.mxu0 0
    %375 = vmatprep.subr.bf16.mxu0 0
    %376 = vmatpush1.bf16.msra.mxu0 0
    %377 = vmatprep.subr.bf16.mxu0 %v254
    %378 = vmatpush1.bf16.msra.mxu0 %v253
    %379 = vmatprep.subr.bf16.mxu0 %v244
    %380 = vmatpush1.bf16.msra.mxu0 %v243
    %381 = vmatprep.subr.bf16.mxu0 0
    %382 = vmatpush2.bf16.msra.mxu0 0
    %383 = vmatprep.subr.bf16.mxu0 0
    %384 = vmatpush2.bf16.msra.mxu0 0
    %385 = vmatprep.subr.bf16.mxu0 0
    %386 = vmatpush2.bf16.msra.mxu0 0
    %387 = vmatprep.subr.bf16.mxu0 0
    %388 = vmatpush2.bf16.msra.mxu0 0
    %389 = vmatprep.subr.bf16.mxu0 0
    %390 = vmatpush2.bf16.msra.mxu0 0
    %391 = vmatprep.subr.bf16.mxu0 0
    %392 = vmatpush2.bf16.msra.mxu0 0
    %393 = vmatprep.subr.bf16.mxu0 0
    %394 = vmatpush2.bf16.msra.mxu0 0
    %395 = vmatprep.subr.bf16.mxu0 0
    %396 = vmatpush2.bf16.msra.mxu0 0
    %397 = vmatprep.mubr.bf16.mxu0 0
    %398 = vmatmul.mubr.bf16.gmra.mxu0 %v281
    %v399 = vpop.f32.mrf.mxu0
    %v400 = vadd.f32 %v148, %v399
    %v401 = vpop.f32.mrf.mxu0
    %v402 = vadd.f32 %v152, %v401
    %v403 = vpop.f32.mrf.mxu0
    %v404 = vpop.f32.mrf.mxu0
    %405 = vdwg.mxu0
    %406 = vmatprep.subr.bf16.mxu0 0
    %407 = vmatpush1.bf16.msra.mxu0 0
    %408 = vmatprep.subr.bf16.mxu0 0
    %409 = vmatpush1.bf16.msra.mxu0 0
    %410 = vmatprep.subr.bf16.mxu0 0
    %411 = vmatpush1.bf16.msra.mxu0 0
    %412 = vmatprep.subr.bf16.mxu0 0
    %413 = vmatpush1.bf16.msra.mxu0 0
    %414 = vmatprep.subr.bf16.mxu0 0
    %415 = vmatpush1.bf16.msra.mxu0 0
    %416 = vmatprep.subr.bf16.mxu0 0
    %417 = vmatpush1.bf16.msra.mxu0 0
    %418 = vmatprep.subr.bf16.mxu0 %v256
    %419 = vmatpush1.bf16.msra.mxu0 %v255
    %420 = vmatprep.subr.bf16.mxu0 %v246
    %421 = vmatpush1.bf16.msra.mxu0 %v245
    %422 = vmatprep.subr.bf16.mxu0 0
    %423 = vmatpush2.bf16.msra.mxu0 0
    %424 = vmatprep.subr.bf16.mxu0 0
    %425 = vmatpush2.bf16.msra.mxu0 0
    %426 = vmatprep.subr.bf16.mxu0 0
    %427 = vmatpush2.bf16.msra.mxu0 0
    %428 = vmatprep.subr.bf16.mxu0 0
    %429 = vmatpush2.bf16.msra.mxu0 0
    %430 = vmatprep.subr.bf16.mxu0 0
    %431 = vmatpush2.bf16.msra.mxu0 0
    %432 = vmatprep.subr.bf16.mxu0 0
    %433 = vmatpush2.bf16.msra.mxu0 0
    %434 = vmatprep.subr.bf16.mxu0 0
    %435 = vmatpush2.bf16.msra.mxu0 0
    %436 = vmatprep.subr.bf16.mxu0 0
    %437 = vmatpush2.bf16.msra.mxu0 0
    %438 = vmatprep.mubr.bf16.mxu0 0
    %439 = vmatmul.mubr.bf16.gmra.mxu0 %v281
    %v440 = vpop.f32.mrf.mxu0
    %v441 = vadd.f32 %v156, %v440
    %v442 = vpop.f32.mrf.mxu0
    %v443 = vadd.f32 %v160, %v442
    %v444 = vpop.f32.mrf.mxu0
    %v445 = vpop.f32.mrf.mxu0
    %446 = vdwg.mxu0
    %447 = vmatprep.subr.bf16.mxu0 0
    %448 = vmatpush1.bf16.msra.mxu0 0
    %449 = vmatprep.subr.bf16.mxu0 0
    %450 = vmatpush1.bf16.msra.mxu0 0
    %451 = vmatprep.subr.bf16.mxu0 0
    %452 = vmatpush1.bf16.msra.mxu0 0
    %453 = vmatprep.subr.bf16.mxu0 0
    %454 = vmatpush1.bf16.msra.mxu0 0
    %455 = vmatprep.subr.bf16.mxu0 0
    %456 = vmatpush1.bf16.msra.mxu0 0
    %457 = vmatprep.subr.bf16.mxu0 0
    %458 = vmatpush1.bf16.msra.mxu0 0
    %459 = vmatprep.subr.bf16.mxu0 %v258
    %460 = vmatpush1.bf16.msra.mxu0 %v257
    %461 = vmatprep.subr.bf16.mxu0 %v248
    %462 = vmatpush1.bf16.msra.mxu0 %v247
    %463 = vmatprep.subr.bf16.mxu0 0
    %464 = vmatpush2.bf16.msra.mxu0 0
    %465 = vmatprep.subr.bf16.mxu0 0
    %466 = vmatpush2.bf16.msra.mxu0 0
    %467 = vmatprep.subr.bf16.mxu0 0
    %468 = vmatpush2.bf16.msra.mxu0 0
    %469 = vmatprep.subr.bf16.mxu0 0
    %470 = vmatpush2.bf16.msra.mxu0 0
    %471 = vmatprep.subr.bf16.mxu0 0
    %472 = vmatpush2.bf16.msra.mxu0 0
    %473 = vmatprep.subr.bf16.mxu0 0
    %474 = vmatpush2.bf16.msra.mxu0 0
    %475 = vmatprep.subr.bf16.mxu0 0
    %476 = vmatpush2.bf16.msra.mxu0 0
    %477 = vmatprep.subr.bf16.mxu0 0
    %478 = vmatpush2.bf16.msra.mxu0 0
    %479 = vmatprep.mubr.bf16.mxu0 0
    %480 = vmatmul.mubr.bf16.gmra.mxu0 %v281
    %v481 = vpop.f32.mrf.mxu0
    %v482 = vadd.f32 %v164, %v481
    %v483 = vpop.f32.mrf.mxu0
    %v484 = vadd.f32 %v168, %v483
    %v485 = vpop.f32.mrf.mxu0
    %v486 = vpop.f32.mrf.mxu0
    %487 = vdwg.mxu0
    %v488 = vxor.u32 %v318, 2147483648
    %v489 = vxor.u32 %v320, 2147483648
    %v490 = vxor.u32 %v359, 2147483648
    %v491 = vxor.u32 %v361, 2147483648
    %v492 = vxor.u32 %v400, 2147483648
    %v493 = vxor.u32 %v402, 2147483648
    %v494 = vxor.u32 %v441, 2147483648
    %v495 = vxor.u32 %v443, 2147483648
    %v496 = vxor.u32 %v482, 2147483648
    %v497 = vxor.u32 %v484, 2147483648
    %v498 = vmul.f32 %v488, 1.442695
    %v499 = vpow.pop %v498
    %v500 = vmul.f32 %v489, 1.442695
    %v501 = vpow.pop %v500
    %v502 = vmul.f32 %v490, 1.442695
    %v503 = vpow.pop %v502
    %v504 = vmul.f32 %v491, 1.442695
    %v505 = vpow.pop %v504
    %v506 = vmul.f32 %v492, 1.442695
    %v507 = vpow.pop %v506
    %v508 = vmul.f32 %v493, 1.442695
    %v509 = vpow.pop %v508
    %v510 = vmul.f32 %v494, 1.442695
    %v511 = vpow.pop %v510
    %v512 = vmul.f32 %v495, 1.442695
    %v513 = vpow.pop %v512
    %v514 = vmul.f32 %v496, 1.442695
    %v515 = vpow.pop %v514
    %v516 = vmul.f32 %v497, 1.442695
    %v517 = vpow.pop %v516
    %v518 = vadd.f32 %v499, 1.0
    %v519 = vadd.f32 %v501, 1.0
    %v520 = vadd.f32 %v503, 1.0
    %v521 = vadd.f32 %v505, 1.0
    %v522 = vadd.f32 %v507, 1.0
    %v523 = vadd.f32 %v509, 1.0
    %v524 = vadd.f32 %v511, 1.0
    %v525 = vadd.f32 %v513, 1.0
    %v526 = vadd.f32 %v515, 1.0
    %v527 = vadd.f32 %v517, 1.0
    %v528 = vrcp.pop %v518
    %v529 = vmul.f32 1.0, %v528
    %v530 = vrcp.pop %v519
    %v531 = vmul.f32 1.0, %v530
    %v532 = vrcp.pop %v520
    %v533 = vmul.f32 1.0, %v532
    %v534 = vrcp.pop %v521
    %v535 = vmul.f32 1.0, %v534
    %v536 = vrcp.pop %v522
    %v537 = vmul.f32 1.0, %v536
    %v538 = vrcp.pop %v523
    %v539 = vmul.f32 1.0, %v538
    %v540 = vrcp.pop %v524
    %v541 = vmul.f32 1.0, %v540
    %v542 = vrcp.pop %v525
    %v543 = vmul.f32 1.0, %v542
    %v544 = vrcp.pop %v526
    %v545 = vmul.f32 1.0, %v544
    %v546 = vrcp.pop %v527
    %v547 = vmul.f32 1.0, %v546
    %v548 = vmul.f32 %v318, %v529
    %v549 = vmul.f32 %v320, %v531
    %v550 = vmul.f32 %v359, %v533
    %v551 = vmul.f32 %v361, %v535
    %v552 = vmul.f32 %v400, %v537
    %v553 = vmul.f32 %v402, %v539
    %v554 = vmul.f32 %v441, %v541
    %v555 = vmul.f32 %v443, %v543
    %v556 = vmul.f32 %v482, %v545
    %v557 = vmul.f32 %v484, %v547
    %v558 = vpack.c.bf16 %v548, %v548
    %v559 = vpack.c.bf16 %v549, %v549
    %v560 = vpack.c.bf16 %v550, %v550
    %v561 = vpack.c.bf16 %v551, %v551
    %v562 = vpack.c.bf16 %v552, %v552
    %v563 = vpack.c.bf16 %v553, %v553
    %v564 = vpack.c.bf16 %v554, %v554
    %v565 = vpack.c.bf16 %v555, %v555
    %v566 = vpack.c.bf16 %v556, %v556
    %v567 = vpack.c.bf16 %v557, %v557
    %v568 = vld [vmem:[#allocation6] sm:$0xff]
    %v569 = vld [vmem:[#allocation6 + $0x8] sm:$0xff]
    %v570 = vld [vmem:[#allocation6 + $0x10] sm:$0xff]
    %v571 = vld [vmem:[#allocation6 + $0x18] sm:$0xff]
    %v572 = vld [vmem:[#allocation6 + $0x20] sm:$0xff]
    %v573 = vld [vmem:[#allocation6 + $0x28] sm:$0xff]
    %v574 = vld [vmem:[#allocation6 + $0x30] sm:$0xff]
    %v575 = vld [vmem:[#allocation6 + $0x38] sm:$0xff]
    %v576 = vld [vmem:[#allocation6 + $0x40] sm:$0xff]
    %v577 = vld [vmem:[#allocation6 + $0x48] sm:$0xff]
    %v578 = vld [vmem:[#allocation6 + $0x50] sm:$0xff]
    %v579 = vld [vmem:[#allocation6 + $0x58] sm:$0xff]
    %v580 = vld [vmem:[#allocation6 + $0x60] sm:$0xff]
    %v581 = vld [vmem:[#allocation6 + $0x68] sm:$0xff]
    %v582 = vld [vmem:[#allocation6 + $0x70] sm:$0xff]
    %v583 = vld [vmem:[#allocation6 + $0x78] sm:$0xff]
    %v584 = vld [vmem:[#allocation6 + $0x80] sm:$0xff]
    %v585 = vld [vmem:[#allocation6 + $0x88] sm:$0xff]
    %v586 = vld [vmem:[#allocation6 + $0x90] sm:$0xff]
    %v587 = vld [vmem:[#allocation6 + $0x98] sm:$0xff]
    %v588 = vld [vmem:[#allocation6 + $0xa0] sm:$0xff]
    %v589 = vld [vmem:[#allocation6 + $0xa8] sm:$0xff]
    %v590 = vld [vmem:[#allocation6 + $0xb0] sm:$0xff]
    %v591 = vld [vmem:[#allocation6 + $0xb8] sm:$0xff]
    %v592 = vld [vmem:[#allocation6 + $0xc0] sm:$0xff]
    %v593 = vld [vmem:[#allocation6 + $0xc8] sm:$0xff]
    %v594 = vld [vmem:[#allocation6 + $0xd0] sm:$0xff]
    %v595 = vld [vmem:[#allocation6 + $0xd8] sm:$0xff]
    %v596 = vld [vmem:[#allocation6 + $0xe0] sm:$0xff]
    %v597 = vld [vmem:[#allocation6 + $0xe8] sm:$0xff]
    %v598 = vld [vmem:[#allocation6 + $0xf0] sm:$0xff]
    %v599 = vld [vmem:[#allocation6 + $0xf8] sm:$0xff]
    %v600 = vld [vmem:[#allocation6 + $0x100] sm:$0xff]
    %v601 = vld [vmem:[#allocation6 + $0x108] sm:$0xff]
    %v602 = vld [vmem:[#allocation6 + $0x110] sm:$0xff]
    %v603 = vld [vmem:[#allocation6 + $0x118] sm:$0xff]
    %v604 = vld [vmem:[#allocation6 + $0x120] sm:$0xff]
    %v605 = vld [vmem:[#allocation6 + $0x128] sm:$0xff]
    %v606 = vld [vmem:[#allocation6 + $0x130] sm:$0xff]
    %v607 = vld [vmem:[#allocation6 + $0x138] sm:$0xff]
    %v608 = vld [vmem:[#allocation6 + $0x140] sm:$0xff]
    %v609 = vld [vmem:[#allocation6 + $0x148] sm:$0xff]
    %v610 = vld [vmem:[#allocation6 + $0x150] sm:$0xff]
    %v611 = vld [vmem:[#allocation6 + $0x158] sm:$0xff]
    %v612 = vld [vmem:[#allocation6 + $0x160] sm:$0xff]
    %v613 = vld [vmem:[#allocation6 + $0x168] sm:$0xff]
    %v614 = vld [vmem:[#allocation6 + $0x170] sm:$0xff]
    %v615 = vld [vmem:[#allocation6 + $0x178] sm:$0xff]
    %v616 = vld [vmem:[#allocation6 + $0x180] sm:$0xff]
    %v617 = vld [vmem:[#allocation6 + $0x188] sm:$0xff]
    %v618 = vld [vmem:[#allocation6 + $0x190] sm:$0xff]
    %v619 = vld [vmem:[#allocation6 + $0x198] sm:$0xff]
    %v620 = vld [vmem:[#allocation6 + $0x1a0] sm:$0xff]
    %v621 = vld [vmem:[#allocation6 + $0x1a8] sm:$0xff]
    %v622 = vld [vmem:[#allocation6 + $0x1b0] sm:$0xff]
    %v623 = vld [vmem:[#allocation6 + $0x1b8] sm:$0xff]
    %v624 = vld [vmem:[#allocation6 + $0x1c0] sm:$0xff]
    %v625 = vld [vmem:[#allocation6 + $0x1c8] sm:$0xff]
    %v626 = vld [vmem:[#allocation6 + $0x1d0] sm:$0xff]
    %v627 = vld [vmem:[#allocation6 + $0x1d8] sm:$0xff]
    %v628 = vld [vmem:[#allocation6 + $0x1e0] sm:$0xff]
    %v629 = vld [vmem:[#allocation6 + $0x1e8] sm:$0xff]
    %v630 = vld [vmem:[#allocation6 + $0x1f0] sm:$0xff]
    %v631 = vld [vmem:[#allocation6 + $0x1f8] sm:$0xff]
    %v632 = vld [vmem:[#allocation6 + $0x200] sm:$0xff]
    %v633 = vld [vmem:[#allocation6 + $0x208] sm:$0xff]
    %v634 = vld [vmem:[#allocation6 + $0x210] sm:$0xff]
    %v635 = vld [vmem:[#allocation6 + $0x218] sm:$0xff]
    %v636 = vld [vmem:[#allocation6 + $0x220] sm:$0xff]
    %v637 = vld [vmem:[#allocation6 + $0x228] sm:$0xff]
    %v638 = vld [vmem:[#allocation6 + $0x230] sm:$0xff]
    %v639 = vld [vmem:[#allocation6 + $0x238] sm:$0xff]
    %v640 = vld [vmem:[#allocation6 + $0x240] sm:$0xff]
    %v641 = vld [vmem:[#allocation6 + $0x248] sm:$0xff]
    %v642 = vld [vmem:[#allocation6 + $0x250] sm:$0xff]
    %v643 = vld [vmem:[#allocation6 + $0x258] sm:$0xff]
    %v644 = vld [vmem:[#allocation6 + $0x260] sm:$0xff]
    %v645 = vld [vmem:[#allocation6 + $0x268] sm:$0xff]
    %v646 = vld [vmem:[#allocation6 + $0x270] sm:$0xff]
    %v647 = vld [vmem:[#allocation6 + $0x278] sm:$0xff]
    %v648 = vld [vmem:[#allocation6 + $0x280] sm:$0xff]
    %v649 = vld [vmem:[#allocation6 + $0x288] sm:$0xff]
    %v650 = vld [vmem:[#allocation6 + $0x290] sm:$0xff]
    %v651 = vld [vmem:[#allocation6 + $0x298] sm:$0xff]
    %v652 = vld [vmem:[#allocation6 + $0x2a0] sm:$0xff]
    %v653 = vld [vmem:[#allocation6 + $0x2a8] sm:$0xff]
    %v654 = vld [vmem:[#allocation6 + $0x2b0] sm:$0xff]
    %v655 = vld [vmem:[#allocation6 + $0x2b8] sm:$0xff]
    %v656 = vld [vmem:[#allocation6 + $0x2c0] sm:$0xff]
    %v657 = vld [vmem:[#allocation6 + $0x2c8] sm:$0xff]
    %v658 = vld [vmem:[#allocation6 + $0x2d0] sm:$0xff]
    %v659 = vld [vmem:[#allocation6 + $0x2d8] sm:$0xff]
    %v660 = vld [vmem:[#allocation6 + $0x2e0] sm:$0xff]
    %v661 = vld [vmem:[#allocation6 + $0x2e8] sm:$0xff]
    %v662 = vld [vmem:[#allocation6 + $0x2f0] sm:$0xff]
    %v663 = vld [vmem:[#allocation6 + $0x2f8] sm:$0xff]
    %v664 = vld [vmem:[#allocation6 + $0x300] sm:$0xff]
    %v665 = vld [vmem:[#allocation6 + $0x308] sm:$0xff]
    %v666 = vld [vmem:[#allocation6 + $0x310] sm:$0xff]
    %v667 = vld [vmem:[#allocation6 + $0x318] sm:$0xff]
    %v668 = vld [vmem:[#allocation6 + $0x320] sm:$0xff]
    %v669 = vld [vmem:[#allocation6 + $0x328] sm:$0xff]
    %v670 = vld [vmem:[#allocation6 + $0x330] sm:$0xff]
    %v671 = vld [vmem:[#allocation6 + $0x338] sm:$0xff]
    %v672 = vld [vmem:[#allocation6 + $0x340] sm:$0xff]
    %v673 = vld [vmem:[#allocation6 + $0x348] sm:$0xff]
    %v674 = vld [vmem:[#allocation6 + $0x350] sm:$0xff]
    %v675 = vld [vmem:[#allocation6 + $0x358] sm:$0xff]
    %v676 = vld [vmem:[#allocation6 + $0x360] sm:$0xff]
    %v677 = vld [vmem:[#allocation6 + $0x368] sm:$0xff]
    %v678 = vld [vmem:[#allocation6 + $0x370] sm:$0xff]
    %v679 = vld [vmem:[#allocation6 + $0x378] sm:$0xff]
    %v680 = vld [vmem:[#allocation6 + $0x380] sm:$0xff]
    %v681 = vld [vmem:[#allocation6 + $0x388] sm:$0xff]
    %v682 = vld [vmem:[#allocation6 + $0x390] sm:$0xff]
    %v683 = vld [vmem:[#allocation6 + $0x398] sm:$0xff]
    %v684 = vld [vmem:[#allocation6 + $0x3a0] sm:$0xff]
    %v685 = vld [vmem:[#allocation6 + $0x3a8] sm:$0xff]
    %v686 = vld [vmem:[#allocation6 + $0x3b0] sm:$0xff]
    %v687 = vld [vmem:[#allocation6 + $0x3b8] sm:$0xff]
    %v688 = vld [vmem:[#allocation6 + $0x3c0] sm:$0xff]
    %v689 = vld [vmem:[#allocation6 + $0x3c8] sm:$0xff]
    %v690 = vld [vmem:[#allocation6 + $0x3d0] sm:$0xff]
    %v691 = vld [vmem:[#allocation6 + $0x3d8] sm:$0xff]
    %v692 = vld [vmem:[#allocation6 + $0x3e0] sm:$0xff]
    %v693 = vld [vmem:[#allocation6 + $0x3e8] sm:$0xff]
    %v694 = vld [vmem:[#allocation6 + $0x3f0] sm:$0xff]
    %v695 = vld [vmem:[#allocation6 + $0x3f8] sm:$0xff]
    %v696 = vld [vmem:[#allocation6 + $0x400] sm:$0xff]
    %v697 = vld [vmem:[#allocation6 + $0x408] sm:$0xff]
    %v698 = vld [vmem:[#allocation6 + $0x410] sm:$0xff]
    %v699 = vld [vmem:[#allocation6 + $0x418] sm:$0xff]
    %v700 = vld [vmem:[#allocation6 + $0x420] sm:$0xff]
    %v701 = vld [vmem:[#allocation6 + $0x428] sm:$0xff]
    %v702 = vld [vmem:[#allocation6 + $0x430] sm:$0xff]
    %v703 = vld [vmem:[#allocation6 + $0x438] sm:$0xff]
    %v704 = vld [vmem:[#allocation6 + $0x440] sm:$0xff]
    %v705 = vld [vmem:[#allocation6 + $0x448] sm:$0xff]
    %v706 = vld [vmem:[#allocation6 + $0x450] sm:$0xff]
    %v707 = vld [vmem:[#allocation6 + $0x458] sm:$0xff]
    %v708 = vld [vmem:[#allocation6 + $0x460] sm:$0xff]
    %v709 = vld [vmem:[#allocation6 + $0x468] sm:$0xff]
    %v710 = vld [vmem:[#allocation6 + $0x470] sm:$0xff]
    %v711 = vld [vmem:[#allocation6 + $0x478] sm:$0xff]
    %v712 = vld [vmem:[#allocation6 + $0x480] sm:$0xff]
    %v713 = vld [vmem:[#allocation6 + $0x488] sm:$0xff]
    %v714 = vld [vmem:[#allocation6 + $0x490] sm:$0xff]
    %v715 = vld [vmem:[#allocation6 + $0x498] sm:$0xff]
    %v716 = vld [vmem:[#allocation6 + $0x4a0] sm:$0xff]
    %v717 = vld [vmem:[#allocation6 + $0x4a8] sm:$0xff]
    %v718 = vld [vmem:[#allocation6 + $0x4b0] sm:$0xff]
    %v719 = vld [vmem:[#allocation6 + $0x4b8] sm:$0xff]
    %v720 = vld [vmem:[#allocation6 + $0x4c0] sm:$0xff]
    %v721 = vld [vmem:[#allocation6 + $0x4c8] sm:$0xff]
    %v722 = vld [vmem:[#allocation6 + $0x4d0] sm:$0xff]
    %v723 = vld [vmem:[#allocation6 + $0x4d8] sm:$0xff]
    %v724 = vld [vmem:[#allocation6 + $0x4e0] sm:$0xff]
    %v725 = vld [vmem:[#allocation6 + $0x4e8] sm:$0xff]
    %v726 = vld [vmem:[#allocation6 + $0x4f0] sm:$0xff]
    %v727 = vld [vmem:[#allocation6 + $0x4f8] sm:$0xff]
    %v728 = vld [vmem:[#allocation6 + $0x500] sm:$0xff]
    %v729 = vld [vmem:[#allocation6 + $0x508] sm:$0xff]
    %v730 = vld [vmem:[#allocation6 + $0x510] sm:$0xff]
    %v731 = vld [vmem:[#allocation6 + $0x518] sm:$0xff]
    %v732 = vld [vmem:[#allocation6 + $0x520] sm:$0xff]
    %v733 = vld [vmem:[#allocation6 + $0x528] sm:$0xff]
    %v734 = vld [vmem:[#allocation6 + $0x530] sm:$0xff]
    %v735 = vld [vmem:[#allocation6 + $0x538] sm:$0xff]
    %v736 = vld [vmem:[#allocation6 + $0x540] sm:$0xff]
    %v737 = vld [vmem:[#allocation6 + $0x548] sm:$0xff]
    %v738 = vld [vmem:[#allocation6 + $0x550] sm:$0xff]
    %v739 = vld [vmem:[#allocation6 + $0x558] sm:$0xff]
    %v740 = vld [vmem:[#allocation6 + $0x560] sm:$0xff]
    %v741 = vld [vmem:[#allocation6 + $0x568] sm:$0xff]
    %v742 = vld [vmem:[#allocation6 + $0x570] sm:$0xff]
    %v743 = vld [vmem:[#allocation6 + $0x578] sm:$0xff]
    %v744 = vld [vmem:[#allocation6 + $0x580] sm:$0xff]
    %v745 = vld [vmem:[#allocation6 + $0x588] sm:$0xff]
    %v746 = vld [vmem:[#allocation6 + $0x590] sm:$0xff]
    %v747 = vld [vmem:[#allocation6 + $0x598] sm:$0xff]
    %v748 = vld [vmem:[#allocation6 + $0x5a0] sm:$0xff]
    %v749 = vld [vmem:[#allocation6 + $0x5a8] sm:$0xff]
    %v750 = vld [vmem:[#allocation6 + $0x5b0] sm:$0xff]
    %v751 = vld [vmem:[#allocation6 + $0x5b8] sm:$0xff]
    %v752 = vld [vmem:[#allocation6 + $0x5c0] sm:$0xff]
    %v753 = vld [vmem:[#allocation6 + $0x5c8] sm:$0xff]
    %v754 = vld [vmem:[#allocation6 + $0x5d0] sm:$0xff]
    %v755 = vld [vmem:[#allocation6 + $0x5d8] sm:$0xff]
    %v756 = vld [vmem:[#allocation6 + $0x5e0] sm:$0xff]
    %v757 = vld [vmem:[#allocation6 + $0x5e8] sm:$0xff]
    %v758 = vld [vmem:[#allocation6 + $0x5f0] sm:$0xff]
    %v759 = vld [vmem:[#allocation6 + $0x5f8] sm:$0xff]
    %v760 = vld [vmem:[#allocation6 + $0x600] sm:$0xff]
    %v761 = vld [vmem:[#allocation6 + $0x608] sm:$0xff]
    %v762 = vld [vmem:[#allocation6 + $0x610] sm:$0xff]
    %v763 = vld [vmem:[#allocation6 + $0x618] sm:$0xff]
    %v764 = vld [vmem:[#allocation6 + $0x620] sm:$0xff]
    %v765 = vld [vmem:[#allocation6 + $0x628] sm:$0xff]
    %v766 = vld [vmem:[#allocation6 + $0x630] sm:$0xff]
    %v767 = vld [vmem:[#allocation6 + $0x638] sm:$0xff]
    %v768 = vld [vmem:[#allocation6 + $0x640] sm:$0xff]
    %v769 = vld [vmem:[#allocation6 + $0x648] sm:$0xff]
    %v770 = vld [vmem:[#allocation6 + $0x650] sm:$0xff]
    %v771 = vld [vmem:[#allocation6 + $0x658] sm:$0xff]
    %v772 = vld [vmem:[#allocation6 + $0x660] sm:$0xff]
    %v773 = vld [vmem:[#allocation6 + $0x668] sm:$0xff]
    %v774 = vld [vmem:[#allocation6 + $0x670] sm:$0xff]
    %v775 = vld [vmem:[#allocation6 + $0x678] sm:$0xff]
    %v776 = vld [vmem:[#allocation6 + $0x680] sm:$0xff]
    %v777 = vld [vmem:[#allocation6 + $0x688] sm:$0xff]
    %v778 = vld [vmem:[#allocation6 + $0x690] sm:$0xff]
    %v779 = vld [vmem:[#allocation6 + $0x698] sm:$0xff]
    %v780 = vld [vmem:[#allocation6 + $0x6a0] sm:$0xff]
    %v781 = vld [vmem:[#allocation6 + $0x6a8] sm:$0xff]
    %v782 = vld [vmem:[#allocation6 + $0x6b0] sm:$0xff]
    %v783 = vld [vmem:[#allocation6 + $0x6b8] sm:$0xff]
    %v784 = vld [vmem:[#allocation6 + $0x6c0] sm:$0xff]
    %v785 = vld [vmem:[#allocation6 + $0x6c8] sm:$0xff]
    %v786 = vld [vmem:[#allocation6 + $0x6d0] sm:$0xff]
    %v787 = vld [vmem:[#allocation6 + $0x6d8] sm:$0xff]
    %v788 = vld [vmem:[#allocation6 + $0x6e0] sm:$0xff]
    %v789 = vld [vmem:[#allocation6 + $0x6e8] sm:$0xff]
    %v790 = vld [vmem:[#allocation6 + $0x6f0] sm:$0xff]
    %v791 = vld [vmem:[#allocation6 + $0x6f8] sm:$0xff]
    %v792 = vld [vmem:[#allocation6 + $0x700] sm:$0xff]
    %v793 = vld [vmem:[#allocation6 + $0x708] sm:$0xff]
    %v794 = vld [vmem:[#allocation6 + $0x710] sm:$0xff]
    %v795 = vld [vmem:[#allocation6 + $0x718] sm:$0xff]
    %v796 = vld [vmem:[#allocation6 + $0x720] sm:$0xff]
    %v797 = vld [vmem:[#allocation6 + $0x728] sm:$0xff]
    %v798 = vld [vmem:[#allocation6 + $0x730] sm:$0xff]
    %v799 = vld [vmem:[#allocation6 + $0x738] sm:$0xff]
    %v800 = vld [vmem:[#allocation6 + $0x740] sm:$0xff]
    %v801 = vld [vmem:[#allocation6 + $0x748] sm:$0xff]
    %v802 = vld [vmem:[#allocation6 + $0x750] sm:$0xff]
    %v803 = vld [vmem:[#allocation6 + $0x758] sm:$0xff]
    %v804 = vld [vmem:[#allocation6 + $0x760] sm:$0xff]
    %v805 = vld [vmem:[#allocation6 + $0x768] sm:$0xff]
    %v806 = vld [vmem:[#allocation6 + $0x770] sm:$0xff]
    %v807 = vld [vmem:[#allocation6 + $0x778] sm:$0xff]
    %v808 = vld [vmem:[#allocation6 + $0x780] sm:$0xff]
    %v809 = vld [vmem:[#allocation6 + $0x788] sm:$0xff]
    %v810 = vld [vmem:[#allocation6 + $0x790] sm:$0xff]
    %v811 = vld [vmem:[#allocation6 + $0x798] sm:$0xff]
    %v812 = vld [vmem:[#allocation6 + $0x7a0] sm:$0xff]
    %v813 = vld [vmem:[#allocation6 + $0x7a8] sm:$0xff]
    %v814 = vld [vmem:[#allocation6 + $0x7b0] sm:$0xff]
    %v815 = vld [vmem:[#allocation6 + $0x7b8] sm:$0xff]
    %v816 = vld [vmem:[#allocation6 + $0x7c0] sm:$0xff]
    %v817 = vld [vmem:[#allocation6 + $0x7c8] sm:$0xff]
    %v818 = vld [vmem:[#allocation6 + $0x7d0] sm:$0xff]
    %v819 = vld [vmem:[#allocation6 + $0x7d8] sm:$0xff]
    %v820 = vld [vmem:[#allocation6 + $0x7e0] sm:$0xff]
    %v821 = vld [vmem:[#allocation6 + $0x7e8] sm:$0xff]
    %v822 = vld [vmem:[#allocation6 + $0x7f0] sm:$0xff]
    %v823 = vld [vmem:[#allocation6 + $0x7f8] sm:$0xff]
    %v824 = vld [vmem:[#allocation6 + $0x800] sm:$0xff]
    %v825 = vld [vmem:[#allocation6 + $0x808] sm:$0xff]
    %v826 = vld [vmem:[#allocation6 + $0x810] sm:$0xff]
    %v827 = vld [vmem:[#allocation6 + $0x818] sm:$0xff]
    %v828 = vld [vmem:[#allocation6 + $0x820] sm:$0xff]
    %v829 = vld [vmem:[#allocation6 + $0x828] sm:$0xff]
    %v830 = vld [vmem:[#allocation6 + $0x830] sm:$0xff]
    %v831 = vld [vmem:[#allocation6 + $0x838] sm:$0xff]
    %v832 = vld [vmem:[#allocation6 + $0x840] sm:$0xff]
    %v833 = vld [vmem:[#allocation6 + $0x848] sm:$0xff]
    %v834 = vld [vmem:[#allocation6 + $0x850] sm:$0xff]
    %v835 = vld [vmem:[#allocation6 + $0x858] sm:$0xff]
    %v836 = vld [vmem:[#allocation6 + $0x860] sm:$0xff]
    %v837 = vld [vmem:[#allocation6 + $0x868] sm:$0xff]
    %v838 = vld [vmem:[#allocation6 + $0x870] sm:$0xff]
    %v839 = vld [vmem:[#allocation6 + $0x878] sm:$0xff]
    %v840 = vld [vmem:[#allocation6 + $0x880] sm:$0xff]
    %v841 = vld [vmem:[#allocation6 + $0x888] sm:$0xff]
    %v842 = vld [vmem:[#allocation6 + $0x890] sm:$0xff]
    %v843 = vld [vmem:[#allocation6 + $0x898] sm:$0xff]
    %v844 = vld [vmem:[#allocation6 + $0x8a0] sm:$0xff]
    %v845 = vld [vmem:[#allocation6 + $0x8a8] sm:$0xff]
    %v846 = vld [vmem:[#allocation6 + $0x8b0] sm:$0xff]
    %v847 = vld [vmem:[#allocation6 + $0x8b8] sm:$0xff]
    %v848 = vld [vmem:[#allocation6 + $0x8c0] sm:$0xff]
    %v849 = vld [vmem:[#allocation6 + $0x8c8] sm:$0xff]
    %v850 = vld [vmem:[#allocation6 + $0x8d0] sm:$0xff]
    %v851 = vld [vmem:[#allocation6 + $0x8d8] sm:$0xff]
    %v852 = vld [vmem:[#allocation6 + $0x8e0] sm:$0xff]
    %v853 = vld [vmem:[#allocation6 + $0x8e8] sm:$0xff]
    %v854 = vld [vmem:[#allocation6 + $0x8f0] sm:$0xff]
    %v855 = vld [vmem:[#allocation6 + $0x8f8] sm:$0xff]
    %v856 = vld [vmem:[#allocation6 + $0x900] sm:$0xff]
    %v857 = vld [vmem:[#allocation6 + $0x908] sm:$0xff]
    %v858 = vld [vmem:[#allocation6 + $0x910] sm:$0xff]
    %v859 = vld [vmem:[#allocation6 + $0x918] sm:$0xff]
    %v860 = vld [vmem:[#allocation6 + $0x920] sm:$0xff]
    %v861 = vld [vmem:[#allocation6 + $0x928] sm:$0xff]
    %v862 = vld [vmem:[#allocation6 + $0x930] sm:$0xff]
    %v863 = vld [vmem:[#allocation6 + $0x938] sm:$0xff]
    %v864 = vld [vmem:[#allocation6 + $0x940] sm:$0xff]
    %v865 = vld [vmem:[#allocation6 + $0x948] sm:$0xff]
    %v866 = vld [vmem:[#allocation6 + $0x950] sm:$0xff]
    %v867 = vld [vmem:[#allocation6 + $0x958] sm:$0xff]
    %v868 = vld [vmem:[#allocation6 + $0x960] sm:$0xff]
    %v869 = vld [vmem:[#allocation6 + $0x968] sm:$0xff]
    %v870 = vld [vmem:[#allocation6 + $0x970] sm:$0xff]
    %v871 = vld [vmem:[#allocation6 + $0x978] sm:$0xff]
    %v872 = vld [vmem:[#allocation6 + $0x980] sm:$0xff]
    %v873 = vld [vmem:[#allocation6 + $0x988] sm:$0xff]
    %v874 = vld [vmem:[#allocation6 + $0x990] sm:$0xff]
    %v875 = vld [vmem:[#allocation6 + $0x998] sm:$0xff]
    %v876 = vld [vmem:[#allocation6 + $0x9a0] sm:$0xff]
    %v877 = vld [vmem:[#allocation6 + $0x9a8] sm:$0xff]
    %v878 = vld [vmem:[#allocation6 + $0x9b0] sm:$0xff]
    %v879 = vld [vmem:[#allocation6 + $0x9b8] sm:$0xff]
    %v880 = vld [vmem:[#allocation6 + $0x9c0] sm:$0xff]
    %v881 = vld [vmem:[#allocation6 + $0x9c8] sm:$0xff]
    %v882 = vld [vmem:[#allocation6 + $0x9d0] sm:$0xff]
    %v883 = vld [vmem:[#allocation6 + $0x9d8] sm:$0xff]
    %v884 = vld [vmem:[#allocation6 + $0x9e0] sm:$0xff]
    %v885 = vld [vmem:[#allocation6 + $0x9e8] sm:$0xff]
    %v886 = vld [vmem:[#allocation6 + $0x9f0] sm:$0xff]
    %v887 = vld [vmem:[#allocation6 + $0x9f8] sm:$0xff]
    %v888 = vld [vmem:[#allocation7] sm:$0xf]
    %v890 = vlaneseq
    %v891 = vshrl.u32 %v890, 7
    %v892 = vsub.s32 0, %v891
    %v893 = vrot.slane %v888, %v892
    %v894 = vlaneseq
    %v895 = vshrl.u32 %v894, 7
    %v896 = vsub.s32 1, %v895
    %v897 = vrot.slane %v888, %v896
    %v898 = vlaneseq
    %v899 = vshrl.u32 %v898, 7
    %v900 = vsub.s32 2, %v899
    %v901 = vrot.slane %v888, %v900
    %v902 = vlaneseq
    %v903 = vshrl.u32 %v902, 7
    %v904 = vsub.s32 3, %v903
    %v905 = vrot.slane %v888, %v904
    %v1230 = vunpack.c.l.b16 %v568
    %v1231 = vunpack.c.h.b16 %v568
    %v1232 = vunpack.c.l.b16 %v569
    %v1233 = vunpack.c.h.b16 %v569
    %v1234 = vunpack.c.l.b16 %v570
    %v1235 = vunpack.c.h.b16 %v570
    %v1236 = vunpack.c.l.b16 %v571
    %v1237 = vunpack.c.h.b16 %v571
    %v1238 = vunpack.c.l.b16 %v572
    %v1239 = vunpack.c.h.b16 %v572
    %v1240 = vunpack.c.l.b16 %v573
    %v1241 = vunpack.c.h.b16 %v573
    %v1242 = vunpack.c.l.b16 %v574
    %v1243 = vunpack.c.h.b16 %v574
    %v1244 = vunpack.c.l.b16 %v575
    %v1245 = vunpack.c.h.b16 %v575
    %v1246 = vunpack.c.l.b16 %v576
    %v1247 = vunpack.c.h.b16 %v576
    %v1248 = vunpack.c.l.b16 %v577
    %v1249 = vunpack.c.h.b16 %v577
    %v1250 = vunpack.c.l.b16 %v578
    %v1251 = vunpack.c.h.b16 %v578
    %v1252 = vunpack.c.l.b16 %v579
    %v1253 = vunpack.c.h.b16 %v579
    %v1254 = vunpack.c.l.b16 %v580
    %v1255 = vunpack.c.h.b16 %v580
    %v1256 = vunpack.c.l.b16 %v581
    %v1257 = vunpack.c.h.b16 %v581
    %v1258 = vunpack.c.l.b16 %v582
    %v1259 = vunpack.c.h.b16 %v582
    %v1260 = vunpack.c.l.b16 %v583
    %v1261 = vunpack.c.h.b16 %v583
    %v1262 = vunpack.c.l.b16 %v584
    %v1263 = vunpack.c.h.b16 %v584
    %v1264 = vunpack.c.l.b16 %v585
    %v1265 = vunpack.c.h.b16 %v585
    %v1266 = vunpack.c.l.b16 %v586
    %v1267 = vunpack.c.h.b16 %v586
    %v1268 = vunpack.c.l.b16 %v587
    %v1269 = vunpack.c.h.b16 %v587
    %v1270 = vunpack.c.l.b16 %v588
    %v1271 = vunpack.c.h.b16 %v588
    %v1272 = vunpack.c.l.b16 %v589
    %v1273 = vunpack.c.h.b16 %v589
    %v1274 = vunpack.c.l.b16 %v590
    %v1275 = vunpack.c.h.b16 %v590
    %v1276 = vunpack.c.l.b16 %v591
    %v1277 = vunpack.c.h.b16 %v591
    %v1278 = vunpack.c.l.b16 %v592
    %v1279 = vunpack.c.h.b16 %v592
    %v1280 = vunpack.c.l.b16 %v593
    %v1281 = vunpack.c.h.b16 %v593
    %v1282 = vunpack.c.l.b16 %v594
    %v1283 = vunpack.c.h.b16 %v594
    %v1284 = vunpack.c.l.b16 %v595
    %v1285 = vunpack.c.h.b16 %v595
    %v1286 = vunpack.c.l.b16 %v596
    %v1287 = vunpack.c.h.b16 %v596
    %v1288 = vunpack.c.l.b16 %v597
    %v1289 = vunpack.c.h.b16 %v597
    %v1290 = vunpack.c.l.b16 %v598
    %v1291 = vunpack.c.h.b16 %v598
    %v1292 = vunpack.c.l.b16 %v599
    %v1293 = vunpack.c.h.b16 %v599
    %v1294 = vunpack.c.l.b16 %v600
    %v1295 = vunpack.c.h.b16 %v600
    %v1296 = vunpack.c.l.b16 %v601
    %v1297 = vunpack.c.h.b16 %v601
    %v1298 = vunpack.c.l.b16 %v602
    %v1299 = vunpack.c.h.b16 %v602
    %v1300 = vunpack.c.l.b16 %v603
    %v1301 = vunpack.c.h.b16 %v603
    %v1302 = vunpack.c.l.b16 %v604
    %v1303 = vunpack.c.h.b16 %v604
    %v1304 = vunpack.c.l.b16 %v605
    %v1305 = vunpack.c.h.b16 %v605
    %v1306 = vunpack.c.l.b16 %v606
    %v1307 = vunpack.c.h.b16 %v606
    %v1308 = vunpack.c.l.b16 %v607
    %v1309 = vunpack.c.h.b16 %v607
    %v1310 = vunpack.c.l.b16 %v608
    %v1311 = vunpack.c.h.b16 %v608
    %v1312 = vunpack.c.l.b16 %v609
    %v1313 = vunpack.c.h.b16 %v609
    %v1314 = vunpack.c.l.b16 %v610
    %v1315 = vunpack.c.h.b16 %v610
    %v1316 = vunpack.c.l.b16 %v611
    %v1317 = vunpack.c.h.b16 %v611
    %v1318 = vunpack.c.l.b16 %v612
    %v1319 = vunpack.c.h.b16 %v612
    %v1320 = vunpack.c.l.b16 %v613
    %v1321 = vunpack.c.h.b16 %v613
    %v1322 = vunpack.c.l.b16 %v614
    %v1323 = vunpack.c.h.b16 %v614
    %v1324 = vunpack.c.l.b16 %v615
    %v1325 = vunpack.c.h.b16 %v615
    %v1326 = vunpack.c.l.b16 %v616
    %v1327 = vunpack.c.h.b16 %v616
    %v1328 = vunpack.c.l.b16 %v617
    %v1329 = vunpack.c.h.b16 %v617
    %v1330 = vunpack.c.l.b16 %v618
    %v1331 = vunpack.c.h.b16 %v618
    %v1332 = vunpack.c.l.b16 %v619
    %v1333 = vunpack.c.h.b16 %v619
    %v1334 = vunpack.c.l.b16 %v620
    %v1335 = vunpack.c.h.b16 %v620
    %v1336 = vunpack.c.l.b16 %v621
    %v1337 = vunpack.c.h.b16 %v621
    %v1338 = vunpack.c.l.b16 %v622
    %v1339 = vunpack.c.h.b16 %v622
    %v1340 = vunpack.c.l.b16 %v623
    %v1341 = vunpack.c.h.b16 %v623
    %v1342 = vunpack.c.l.b16 %v624
    %v1343 = vunpack.c.h.b16 %v624
    %v1344 = vunpack.c.l.b16 %v625
    %v1345 = vunpack.c.h.b16 %v625
    %v1346 = vunpack.c.l.b16 %v626
    %v1347 = vunpack.c.h.b16 %v626
    %v1348 = vunpack.c.l.b16 %v627
    %v1349 = vunpack.c.h.b16 %v627
    %v1350 = vunpack.c.l.b16 %v628
    %v1351 = vunpack.c.h.b16 %v628
    %v1352 = vunpack.c.l.b16 %v629
    %v1353 = vunpack.c.h.b16 %v629
    %v1354 = vunpack.c.l.b16 %v630
    %v1355 = vunpack.c.h.b16 %v630
    %v1356 = vunpack.c.l.b16 %v631
    %v1357 = vunpack.c.h.b16 %v631
    %v1358 = vunpack.c.l.b16 %v632
    %v1359 = vunpack.c.h.b16 %v632
    %v1360 = vunpack.c.l.b16 %v633
    %v1361 = vunpack.c.h.b16 %v633
    %v1362 = vunpack.c.l.b16 %v634
    %v1363 = vunpack.c.h.b16 %v634
    %v1364 = vunpack.c.l.b16 %v635
    %v1365 = vunpack.c.h.b16 %v635
    %v1366 = vunpack.c.l.b16 %v636
    %v1367 = vunpack.c.h.b16 %v636
    %v1368 = vunpack.c.l.b16 %v637
    %v1369 = vunpack.c.h.b16 %v637
    %v1370 = vunpack.c.l.b16 %v638
    %v1371 = vunpack.c.h.b16 %v638
    %v1372 = vunpack.c.l.b16 %v639
    %v1373 = vunpack.c.h.b16 %v639
    %v1374 = vunpack.c.l.b16 %v640
    %v1375 = vunpack.c.h.b16 %v640
    %v1376 = vunpack.c.l.b16 %v641
    %v1377 = vunpack.c.h.b16 %v641
    %v1378 = vunpack.c.l.b16 %v642
    %v1379 = vunpack.c.h.b16 %v642
    %v1380 = vunpack.c.l.b16 %v643
    %v1381 = vunpack.c.h.b16 %v643
    %v1382 = vunpack.c.l.b16 %v644
    %v1383 = vunpack.c.h.b16 %v644
    %v1384 = vunpack.c.l.b16 %v645
    %v1385 = vunpack.c.h.b16 %v645
    %v1386 = vunpack.c.l.b16 %v646
    %v1387 = vunpack.c.h.b16 %v646
    %v1388 = vunpack.c.l.b16 %v647
    %v1389 = vunpack.c.h.b16 %v647
    %v1390 = vunpack.c.l.b16 %v648
    %v1391 = vunpack.c.h.b16 %v648
    %v1392 = vunpack.c.l.b16 %v649
    %v1393 = vunpack.c.h.b16 %v649
    %v1394 = vunpack.c.l.b16 %v650
    %v1395 = vunpack.c.h.b16 %v650
    %v1396 = vunpack.c.l.b16 %v651
    %v1397 = vunpack.c.h.b16 %v651
    %v1398 = vunpack.c.l.b16 %v652
    %v1399 = vunpack.c.h.b16 %v652
    %v1400 = vunpack.c.l.b16 %v653
    %v1401 = vunpack.c.h.b16 %v653
    %v1402 = vunpack.c.l.b16 %v654
    %v1403 = vunpack.c.h.b16 %v654
    %v1404 = vunpack.c.l.b16 %v655
    %v1405 = vunpack.c.h.b16 %v655
    %v1406 = vunpack.c.l.b16 %v656
    %v1407 = vunpack.c.h.b16 %v656
    %v1408 = vunpack.c.l.b16 %v657
    %v1409 = vunpack.c.h.b16 %v657
    %v1410 = vunpack.c.l.b16 %v658
    %v1411 = vunpack.c.h.b16 %v658
    %v1412 = vunpack.c.l.b16 %v659
    %v1413 = vunpack.c.h.b16 %v659
    %v1414 = vunpack.c.l.b16 %v660
    %v1415 = vunpack.c.h.b16 %v660
    %v1416 = vunpack.c.l.b16 %v661
    %v1417 = vunpack.c.h.b16 %v661
    %v1418 = vunpack.c.l.b16 %v662
    %v1419 = vunpack.c.h.b16 %v662
    %v1420 = vunpack.c.l.b16 %v663
    %v1421 = vunpack.c.h.b16 %v663
    %v1422 = vunpack.c.l.b16 %v664
    %v1423 = vunpack.c.h.b16 %v664
    %v1424 = vunpack.c.l.b16 %v665
    %v1425 = vunpack.c.h.b16 %v665
    %v1426 = vunpack.c.l.b16 %v666
    %v1427 = vunpack.c.h.b16 %v666
    %v1428 = vunpack.c.l.b16 %v667
    %v1429 = vunpack.c.h.b16 %v667
    %v1430 = vunpack.c.l.b16 %v668
    %v1431 = vunpack.c.h.b16 %v668
    %v1432 = vunpack.c.l.b16 %v669
    %v1433 = vunpack.c.h.b16 %v669
    %v1434 = vunpack.c.l.b16 %v670
    %v1435 = vunpack.c.h.b16 %v670
    %v1436 = vunpack.c.l.b16 %v671
    %v1437 = vunpack.c.h.b16 %v671
    %v1438 = vunpack.c.l.b16 %v672
    %v1439 = vunpack.c.h.b16 %v672
    %v1440 = vunpack.c.l.b16 %v673
    %v1441 = vunpack.c.h.b16 %v673
    %v1442 = vunpack.c.l.b16 %v674
    %v1443 = vunpack.c.h.b16 %v674
    %v1444 = vunpack.c.l.b16 %v675
    %v1445 = vunpack.c.h.b16 %v675
    %v1446 = vunpack.c.l.b16 %v676
    %v1447 = vunpack.c.h.b16 %v676
    %v1448 = vunpack.c.l.b16 %v677
    %v1449 = vunpack.c.h.b16 %v677
    %v1450 = vunpack.c.l.b16 %v678
    %v1451 = vunpack.c.h.b16 %v678
    %v1452 = vunpack.c.l.b16 %v679
    %v1453 = vunpack.c.h.b16 %v679
    %v1454 = vunpack.c.l.b16 %v680
    %v1455 = vunpack.c.h.b16 %v680
    %v1456 = vunpack.c.l.b16 %v681
    %v1457 = vunpack.c.h.b16 %v681
    %v1458 = vunpack.c.l.b16 %v682
    %v1459 = vunpack.c.h.b16 %v682
    %v1460 = vunpack.c.l.b16 %v683
    %v1461 = vunpack.c.h.b16 %v683
    %v1462 = vunpack.c.l.b16 %v684
    %v1463 = vunpack.c.h.b16 %v684
    %v1464 = vunpack.c.l.b16 %v685
    %v1465 = vunpack.c.h.b16 %v685
    %v1466 = vunpack.c.l.b16 %v686
    %v1467 = vunpack.c.h.b16 %v686
    %v1468 = vunpack.c.l.b16 %v687
    %v1469 = vunpack.c.h.b16 %v687
    %v1470 = vunpack.c.l.b16 %v688
    %v1471 = vunpack.c.h.b16 %v688
    %v1472 = vunpack.c.l.b16 %v689
    %v1473 = vunpack.c.h.b16 %v689
    %v1474 = vunpack.c.l.b16 %v690
    %v1475 = vunpack.c.h.b16 %v690
    %v1476 = vunpack.c.l.b16 %v691
    %v1477 = vunpack.c.h.b16 %v691
    %v1478 = vunpack.c.l.b16 %v692
    %v1479 = vunpack.c.h.b16 %v692
    %v1480 = vunpack.c.l.b16 %v693
    %v1481 = vunpack.c.h.b16 %v693
    %v1482 = vunpack.c.l.b16 %v694
    %v1483 = vunpack.c.h.b16 %v694
    %v1484 = vunpack.c.l.b16 %v695
    %v1485 = vunpack.c.h.b16 %v695
    %v1486 = vunpack.c.l.b16 %v696
    %v1487 = vunpack.c.h.b16 %v696
    %v1488 = vunpack.c.l.b16 %v697
    %v1489 = vunpack.c.h.b16 %v697
    %v1490 = vunpack.c.l.b16 %v698
    %v1491 = vunpack.c.h.b16 %v698
    %v1492 = vunpack.c.l.b16 %v699
    %v1493 = vunpack.c.h.b16 %v699
    %v1494 = vunpack.c.l.b16 %v700
    %v1495 = vunpack.c.h.b16 %v700
    %v1496 = vunpack.c.l.b16 %v701
    %v1497 = vunpack.c.h.b16 %v701
    %v1498 = vunpack.c.l.b16 %v702
    %v1499 = vunpack.c.h.b16 %v702
    %v1500 = vunpack.c.l.b16 %v703
    %v1501 = vunpack.c.h.b16 %v703
    %v1502 = vunpack.c.l.b16 %v704
    %v1503 = vunpack.c.h.b16 %v704
    %v1504 = vunpack.c.l.b16 %v705
    %v1505 = vunpack.c.h.b16 %v705
    %v1506 = vunpack.c.l.b16 %v706
    %v1507 = vunpack.c.h.b16 %v706
    %v1508 = vunpack.c.l.b16 %v707
    %v1509 = vunpack.c.h.b16 %v707
    %v1510 = vunpack.c.l.b16 %v708
    %v1511 = vunpack.c.h.b16 %v708
    %v1512 = vunpack.c.l.b16 %v709
    %v1513 = vunpack.c.h.b16 %v709
    %v1514 = vunpack.c.l.b16 %v710
    %v1515 = vunpack.c.h.b16 %v710
    %v1516 = vunpack.c.l.b16 %v711
    %v1517 = vunpack.c.h.b16 %v711
    %v1518 = vunpack.c.l.b16 %v712
    %v1519 = vunpack.c.h.b16 %v712
    %v1520 = vunpack.c.l.b16 %v713
    %v1521 = vunpack.c.h.b16 %v713
    %v1522 = vunpack.c.l.b16 %v714
    %v1523 = vunpack.c.h.b16 %v714
    %v1524 = vunpack.c.l.b16 %v715
    %v1525 = vunpack.c.h.b16 %v715
    %v1526 = vunpack.c.l.b16 %v716
    %v1527 = vunpack.c.h.b16 %v716
    %v1528 = vunpack.c.l.b16 %v717
    %v1529 = vunpack.c.h.b16 %v717
    %v1530 = vunpack.c.l.b16 %v718
    %v1531 = vunpack.c.h.b16 %v718
    %v1532 = vunpack.c.l.b16 %v719
    %v1533 = vunpack.c.h.b16 %v719
    %v1534 = vunpack.c.l.b16 %v720
    %v1535 = vunpack.c.h.b16 %v720
    %v1536 = vunpack.c.l.b16 %v721
    %v1537 = vunpack.c.h.b16 %v721
    %v1538 = vunpack.c.l.b16 %v722
    %v1539 = vunpack.c.h.b16 %v722
    %v1540 = vunpack.c.l.b16 %v723
    %v1541 = vunpack.c.h.b16 %v723
    %v1542 = vunpack.c.l.b16 %v724
    %v1543 = vunpack.c.h.b16 %v724
    %v1544 = vunpack.c.l.b16 %v725
    %v1545 = vunpack.c.h.b16 %v725
    %v1546 = vunpack.c.l.b16 %v726
    %v1547 = vunpack.c.h.b16 %v726
    %v1548 = vunpack.c.l.b16 %v727
    %v1549 = vunpack.c.h.b16 %v727
    %v1550 = vunpack.c.l.b16 %v728
    %v1551 = vunpack.c.h.b16 %v728
    %v1552 = vunpack.c.l.b16 %v729
    %v1553 = vunpack.c.h.b16 %v729
    %v1554 = vunpack.c.l.b16 %v730
    %v1555 = vunpack.c.h.b16 %v730
    %v1556 = vunpack.c.l.b16 %v731
    %v1557 = vunpack.c.h.b16 %v731
    %v1558 = vunpack.c.l.b16 %v732
    %v1559 = vunpack.c.h.b16 %v732
    %v1560 = vunpack.c.l.b16 %v733
    %v1561 = vunpack.c.h.b16 %v733
    %v1562 = vunpack.c.l.b16 %v734
    %v1563 = vunpack.c.h.b16 %v734
    %v1564 = vunpack.c.l.b16 %v735
    %v1565 = vunpack.c.h.b16 %v735
    %v1566 = vunpack.c.l.b16 %v736
    %v1567 = vunpack.c.h.b16 %v736
    %v1568 = vunpack.c.l.b16 %v737
    %v1569 = vunpack.c.h.b16 %v737
    %v1570 = vunpack.c.l.b16 %v738
    %v1571 = vunpack.c.h.b16 %v738
    %v1572 = vunpack.c.l.b16 %v739
    %v1573 = vunpack.c.h.b16 %v739
    %v1574 = vunpack.c.l.b16 %v740
    %v1575 = vunpack.c.h.b16 %v740
    %v1576 = vunpack.c.l.b16 %v741
    %v1577 = vunpack.c.h.b16 %v741
    %v1578 = vunpack.c.l.b16 %v742
    %v1579 = vunpack.c.h.b16 %v742
    %v1580 = vunpack.c.l.b16 %v743
    %v1581 = vunpack.c.h.b16 %v743
    %v1582 = vunpack.c.l.b16 %v744
    %v1583 = vunpack.c.h.b16 %v744
    %v1584 = vunpack.c.l.b16 %v745
    %v1585 = vunpack.c.h.b16 %v745
    %v1586 = vunpack.c.l.b16 %v746
    %v1587 = vunpack.c.h.b16 %v746
    %v1588 = vunpack.c.l.b16 %v747
    %v1589 = vunpack.c.h.b16 %v747
    %v1590 = vunpack.c.l.b16 %v748
    %v1591 = vunpack.c.h.b16 %v748
    %v1592 = vunpack.c.l.b16 %v749
    %v1593 = vunpack.c.h.b16 %v749
    %v1594 = vunpack.c.l.b16 %v750
    %v1595 = vunpack.c.h.b16 %v750
    %v1596 = vunpack.c.l.b16 %v751
    %v1597 = vunpack.c.h.b16 %v751
    %v1598 = vunpack.c.l.b16 %v752
    %v1599 = vunpack.c.h.b16 %v752
    %v1600 = vunpack.c.l.b16 %v753
    %v1601 = vunpack.c.h.b16 %v753
    %v1602 = vunpack.c.l.b16 %v754
    %v1603 = vunpack.c.h.b16 %v754
    %v1604 = vunpack.c.l.b16 %v755
    %v1605 = vunpack.c.h.b16 %v755
    %v1606 = vunpack.c.l.b16 %v756
    %v1607 = vunpack.c.h.b16 %v756
    %v1608 = vunpack.c.l.b16 %v757
    %v1609 = vunpack.c.h.b16 %v757
    %v1610 = vunpack.c.l.b16 %v758
    %v1611 = vunpack.c.h.b16 %v758
    %v1612 = vunpack.c.l.b16 %v759
    %v1613 = vunpack.c.h.b16 %v759
    %v1614 = vunpack.c.l.b16 %v760
    %v1615 = vunpack.c.h.b16 %v760
    %v1616 = vunpack.c.l.b16 %v761
    %v1617 = vunpack.c.h.b16 %v761
    %v1618 = vunpack.c.l.b16 %v762
    %v1619 = vunpack.c.h.b16 %v762
    %v1620 = vunpack.c.l.b16 %v763
    %v1621 = vunpack.c.h.b16 %v763
    %v1622 = vunpack.c.l.b16 %v764
    %v1623 = vunpack.c.h.b16 %v764
    %v1624 = vunpack.c.l.b16 %v765
    %v1625 = vunpack.c.h.b16 %v765
    %v1626 = vunpack.c.l.b16 %v766
    %v1627 = vunpack.c.h.b16 %v766
    %v1628 = vunpack.c.l.b16 %v767
    %v1629 = vunpack.c.h.b16 %v767
    %v1630 = vunpack.c.l.b16 %v768
    %v1631 = vunpack.c.h.b16 %v768
    %v1632 = vunpack.c.l.b16 %v769
    %v1633 = vunpack.c.h.b16 %v769
    %v1634 = vunpack.c.l.b16 %v770
    %v1635 = vunpack.c.h.b16 %v770
    %v1636 = vunpack.c.l.b16 %v771
    %v1637 = vunpack.c.h.b16 %v771
    %v1638 = vunpack.c.l.b16 %v772
    %v1639 = vunpack.c.h.b16 %v772
    %v1640 = vunpack.c.l.b16 %v773
    %v1641 = vunpack.c.h.b16 %v773
    %v1642 = vunpack.c.l.b16 %v774
    %v1643 = vunpack.c.h.b16 %v774
    %v1644 = vunpack.c.l.b16 %v775
    %v1645 = vunpack.c.h.b16 %v775
    %v1646 = vunpack.c.l.b16 %v776
    %v1647 = vunpack.c.h.b16 %v776
    %v1648 = vunpack.c.l.b16 %v777
    %v1649 = vunpack.c.h.b16 %v777
    %v1650 = vunpack.c.l.b16 %v778
    %v1651 = vunpack.c.h.b16 %v778
    %v1652 = vunpack.c.l.b16 %v779
    %v1653 = vunpack.c.h.b16 %v779
    %v1654 = vunpack.c.l.b16 %v780
    %v1655 = vunpack.c.h.b16 %v780
    %v1656 = vunpack.c.l.b16 %v781
    %v1657 = vunpack.c.h.b16 %v781
    %v1658 = vunpack.c.l.b16 %v782
    %v1659 = vunpack.c.h.b16 %v782
    %v1660 = vunpack.c.l.b16 %v783
    %v1661 = vunpack.c.h.b16 %v783
    %v1662 = vunpack.c.l.b16 %v784
    %v1663 = vunpack.c.h.b16 %v784
    %v1664 = vunpack.c.l.b16 %v785
    %v1665 = vunpack.c.h.b16 %v785
    %v1666 = vunpack.c.l.b16 %v786
    %v1667 = vunpack.c.h.b16 %v786
    %v1668 = vunpack.c.l.b16 %v787
    %v1669 = vunpack.c.h.b16 %v787
    %v1670 = vunpack.c.l.b16 %v788
    %v1671 = vunpack.c.h.b16 %v788
    %v1672 = vunpack.c.l.b16 %v789
    %v1673 = vunpack.c.h.b16 %v789
    %v1674 = vunpack.c.l.b16 %v790
    %v1675 = vunpack.c.h.b16 %v790
    %v1676 = vunpack.c.l.b16 %v791
    %v1677 = vunpack.c.h.b16 %v791
    %v1678 = vunpack.c.l.b16 %v792
    %v1679 = vunpack.c.h.b16 %v792
    %v1680 = vunpack.c.l.b16 %v793
    %v1681 = vunpack.c.h.b16 %v793
    %v1682 = vunpack.c.l.b16 %v794
    %v1683 = vunpack.c.h.b16 %v794
    %v1684 = vunpack.c.l.b16 %v795
    %v1685 = vunpack.c.h.b16 %v795
    %v1686 = vunpack.c.l.b16 %v796
    %v1687 = vunpack.c.h.b16 %v796
    %v1688 = vunpack.c.l.b16 %v797
    %v1689 = vunpack.c.h.b16 %v797
    %v1690 = vunpack.c.l.b16 %v798
    %v1691 = vunpack.c.h.b16 %v798
    %v1692 = vunpack.c.l.b16 %v799
    %v1693 = vunpack.c.h.b16 %v799
    %v1694 = vunpack.c.l.b16 %v800
    %v1695 = vunpack.c.h.b16 %v800
    %v1696 = vunpack.c.l.b16 %v801
    %v1697 = vunpack.c.h.b16 %v801
    %v1698 = vunpack.c.l.b16 %v802
    %v1699 = vunpack.c.h.b16 %v802
    %v1700 = vunpack.c.l.b16 %v803
    %v1701 = vunpack.c.h.b16 %v803
    %v1702 = vunpack.c.l.b16 %v804
    %v1703 = vunpack.c.h.b16 %v804
    %v1704 = vunpack.c.l.b16 %v805
    %v1705 = vunpack.c.h.b16 %v805
    %v1706 = vunpack.c.l.b16 %v806
    %v1707 = vunpack.c.h.b16 %v806
    %v1708 = vunpack.c.l.b16 %v807
    %v1709 = vunpack.c.h.b16 %v807
    %v1710 = vunpack.c.l.b16 %v808
    %v1711 = vunpack.c.h.b16 %v808
    %v1712 = vunpack.c.l.b16 %v809
    %v1713 = vunpack.c.h.b16 %v809
    %v1714 = vunpack.c.l.b16 %v810
    %v1715 = vunpack.c.h.b16 %v810
    %v1716 = vunpack.c.l.b16 %v811
    %v1717 = vunpack.c.h.b16 %v811
    %v1718 = vunpack.c.l.b16 %v812
    %v1719 = vunpack.c.h.b16 %v812
    %v1720 = vunpack.c.l.b16 %v813
    %v1721 = vunpack.c.h.b16 %v813
    %v1722 = vunpack.c.l.b16 %v814
    %v1723 = vunpack.c.h.b16 %v814
    %v1724 = vunpack.c.l.b16 %v815
    %v1725 = vunpack.c.h.b16 %v815
    %v1726 = vunpack.c.l.b16 %v816
    %v1727 = vunpack.c.h.b16 %v816
    %v1728 = vunpack.c.l.b16 %v817
    %v1729 = vunpack.c.h.b16 %v817
    %v1730 = vunpack.c.l.b16 %v818
    %v1731 = vunpack.c.h.b16 %v818
    %v1732 = vunpack.c.l.b16 %v819
    %v1733 = vunpack.c.h.b16 %v819
    %v1734 = vunpack.c.l.b16 %v820
    %v1735 = vunpack.c.h.b16 %v820
    %v1736 = vunpack.c.l.b16 %v821
    %v1737 = vunpack.c.h.b16 %v821
    %v1738 = vunpack.c.l.b16 %v822
    %v1739 = vunpack.c.h.b16 %v822
    %v1740 = vunpack.c.l.b16 %v823
    %v1741 = vunpack.c.h.b16 %v823
    %v1742 = vunpack.c.l.b16 %v824
    %v1743 = vunpack.c.h.b16 %v824
    %v1744 = vunpack.c.l.b16 %v825
    %v1745 = vunpack.c.h.b16 %v825
    %v1746 = vunpack.c.l.b16 %v826
    %v1747 = vunpack.c.h.b16 %v826
    %v1748 = vunpack.c.l.b16 %v827
    %v1749 = vunpack.c.h.b16 %v827
    %v1750 = vunpack.c.l.b16 %v828
    %v1751 = vunpack.c.h.b16 %v828
    %v1752 = vunpack.c.l.b16 %v829
    %v1753 = vunpack.c.h.b16 %v829
    %v1754 = vunpack.c.l.b16 %v830
    %v1755 = vunpack.c.h.b16 %v830
    %v1756 = vunpack.c.l.b16 %v831
    %v1757 = vunpack.c.h.b16 %v831
    %v1758 = vunpack.c.l.b16 %v832
    %v1759 = vunpack.c.h.b16 %v832
    %v1760 = vunpack.c.l.b16 %v833
    %v1761 = vunpack.c.h.b16 %v833
    %v1762 = vunpack.c.l.b16 %v834
    %v1763 = vunpack.c.h.b16 %v834
    %v1764 = vunpack.c.l.b16 %v835
    %v1765 = vunpack.c.h.b16 %v835
    %v1766 = vunpack.c.l.b16 %v836
    %v1767 = vunpack.c.h.b16 %v836
    %v1768 = vunpack.c.l.b16 %v837
    %v1769 = vunpack.c.h.b16 %v837
    %v1770 = vunpack.c.l.b16 %v838
    %v1771 = vunpack.c.h.b16 %v838
    %v1772 = vunpack.c.l.b16 %v839
    %v1773 = vunpack.c.h.b16 %v839
    %v1774 = vunpack.c.l.b16 %v840
    %v1775 = vunpack.c.h.b16 %v840
    %v1776 = vunpack.c.l.b16 %v841
    %v1777 = vunpack.c.h.b16 %v841
    %v1778 = vunpack.c.l.b16 %v842
    %v1779 = vunpack.c.h.b16 %v842
    %v1780 = vunpack.c.l.b16 %v843
    %v1781 = vunpack.c.h.b16 %v843
    %v1782 = vunpack.c.l.b16 %v844
    %v1783 = vunpack.c.h.b16 %v844
    %v1784 = vunpack.c.l.b16 %v845
    %v1785 = vunpack.c.h.b16 %v845
    %v1786 = vunpack.c.l.b16 %v846
    %v1787 = vunpack.c.h.b16 %v846
    %v1788 = vunpack.c.l.b16 %v847
    %v1789 = vunpack.c.h.b16 %v847
    %v1790 = vunpack.c.l.b16 %v848
    %v1791 = vunpack.c.h.b16 %v848
    %v1792 = vunpack.c.l.b16 %v849
    %v1793 = vunpack.c.h.b16 %v849
    %v1794 = vunpack.c.l.b16 %v850
    %v1795 = vunpack.c.h.b16 %v850
    %v1796 = vunpack.c.l.b16 %v851
    %v1797 = vunpack.c.h.b16 %v851
    %v1798 = vunpack.c.l.b16 %v852
    %v1799 = vunpack.c.h.b16 %v852
    %v1800 = vunpack.c.l.b16 %v853
    %v1801 = vunpack.c.h.b16 %v853
    %v1802 = vunpack.c.l.b16 %v854
    %v1803 = vunpack.c.h.b16 %v854
    %v1804 = vunpack.c.l.b16 %v855
    %v1805 = vunpack.c.h.b16 %v855
    %v1806 = vunpack.c.l.b16 %v856
    %v1807 = vunpack.c.h.b16 %v856
    %v1808 = vunpack.c.l.b16 %v857
    %v1809 = vunpack.c.h.b16 %v857
    %v1810 = vunpack.c.l.b16 %v858
    %v1811 = vunpack.c.h.b16 %v858
    %v1812 = vunpack.c.l.b16 %v859
    %v1813 = vunpack.c.h.b16 %v859
    %v1814 = vunpack.c.l.b16 %v860
    %v1815 = vunpack.c.h.b16 %v860
    %v1816 = vunpack.c.l.b16 %v861
    %v1817 = vunpack.c.h.b16 %v861
    %v1818 = vunpack.c.l.b16 %v862
    %v1819 = vunpack.c.h.b16 %v862
    %v1820 = vunpack.c.l.b16 %v863
    %v1821 = vunpack.c.h.b16 %v863
    %v1822 = vunpack.c.l.b16 %v864
    %v1823 = vunpack.c.h.b16 %v864
    %v1824 = vunpack.c.l.b16 %v865
    %v1825 = vunpack.c.h.b16 %v865
    %v1826 = vunpack.c.l.b16 %v866
    %v1827 = vunpack.c.h.b16 %v866
    %v1828 = vunpack.c.l.b16 %v867
    %v1829 = vunpack.c.h.b16 %v867
    %v1830 = vunpack.c.l.b16 %v868
    %v1831 = vunpack.c.h.b16 %v868
    %v1832 = vunpack.c.l.b16 %v869
    %v1833 = vunpack.c.h.b16 %v869
    %v1834 = vunpack.c.l.b16 %v870
    %v1835 = vunpack.c.h.b16 %v870
    %v1836 = vunpack.c.l.b16 %v871
    %v1837 = vunpack.c.h.b16 %v871
    %v1838 = vunpack.c.l.b16 %v872
    %v1839 = vunpack.c.h.b16 %v872
    %v1840 = vunpack.c.l.b16 %v873
    %v1841 = vunpack.c.h.b16 %v873
    %v1842 = vunpack.c.l.b16 %v874
    %v1843 = vunpack.c.h.b16 %v874
    %v1844 = vunpack.c.l.b16 %v875
    %v1845 = vunpack.c.h.b16 %v875
    %v1846 = vunpack.c.l.b16 %v876
    %v1847 = vunpack.c.h.b16 %v876
    %v1848 = vunpack.c.l.b16 %v877
    %v1849 = vunpack.c.h.b16 %v877
    %v1850 = vunpack.c.l.b16 %v878
    %v1851 = vunpack.c.h.b16 %v878
    %v1852 = vunpack.c.l.b16 %v879
    %v1853 = vunpack.c.h.b16 %v879
    %v1854 = vunpack.c.l.b16 %v880
    %v1855 = vunpack.c.h.b16 %v880
    %v1856 = vunpack.c.l.b16 %v881
    %v1857 = vunpack.c.h.b16 %v881
    %v1858 = vunpack.c.l.b16 %v882
    %v1859 = vunpack.c.h.b16 %v882
    %v1860 = vunpack.c.l.b16 %v883
    %v1861 = vunpack.c.h.b16 %v883
    %v1862 = vunpack.c.l.b16 %v884
    %v1863 = vunpack.c.h.b16 %v884
    %v1864 = vunpack.c.l.b16 %v885
    %v1865 = vunpack.c.h.b16 %v885
    %v1866 = vunpack.c.l.b16 %v886
    %v1867 = vunpack.c.h.b16 %v886
    %v1868 = vunpack.c.l.b16 %v887
    %v1869 = vunpack.c.h.b16 %v887
    %v1870 = vpack.c.b16 %v1234, %v1230
    %v1871 = vpack.c.b16 %v1235, %v1231
    %v1872 = vpack.c.b16 %v1236, %v1232
    %v1873 = vpack.c.b16 %v1237, %v1233
    %v1874 = vpack.c.b16 %v1242, %v1238
    %v1875 = vpack.c.b16 %v1243, %v1239
    %v1876 = vpack.c.b16 %v1244, %v1240
    %v1877 = vpack.c.b16 %v1245, %v1241
    %v1878 = vpack.c.b16 %v1250, %v1246
    %v1879 = vpack.c.b16 %v1251, %v1247
    %v1880 = vpack.c.b16 %v1252, %v1248
    %v1881 = vpack.c.b16 %v1253, %v1249
    %v1882 = vpack.c.b16 %v1258, %v1254
    %v1883 = vpack.c.b16 %v1259, %v1255
    %v1884 = vpack.c.b16 %v1260, %v1256
    %v1885 = vpack.c.b16 %v1261, %v1257
    %v1886 = vpack.c.b16 %v1266, %v1262
    %v1887 = vpack.c.b16 %v1267, %v1263
    %v1888 = vpack.c.b16 %v1268, %v1264
    %v1889 = vpack.c.b16 %v1269, %v1265
    %v1890 = vpack.c.b16 %v1274, %v1270
    %v1891 = vpack.c.b16 %v1275, %v1271
    %v1892 = vpack.c.b16 %v1276, %v1272
    %v1893 = vpack.c.b16 %v1277, %v1273
    %v1894 = vpack.c.b16 %v1282, %v1278
    %v1895 = vpack.c.b16 %v1283, %v1279
    %v1896 = vpack.c.b16 %v1284, %v1280
    %v1897 = vpack.c.b16 %v1285, %v1281
    %v1898 = vpack.c.b16 %v1290, %v1286
    %v1899 = vpack.c.b16 %v1291, %v1287
    %v1900 = vpack.c.b16 %v1292, %v1288
    %v1901 = vpack.c.b16 %v1293, %v1289
    %v1902 = vpack.c.b16 %v1298, %v1294
    %v1903 = vpack.c.b16 %v1299, %v1295
    %v1904 = vpack.c.b16 %v1300, %v1296
    %v1905 = vpack.c.b16 %v1301, %v1297
    %v1906 = vpack.c.b16 %v1306, %v1302
    %v1907 = vpack.c.b16 %v1307, %v1303
    %v1908 = vpack.c.b16 %v1308, %v1304
    %v1909 = vpack.c.b16 %v1309, %v1305
    %v1910 = vpack.c.b16 %v1314, %v1310
    %v1911 = vpack.c.b16 %v1315, %v1311
    %v1912 = vpack.c.b16 %v1316, %v1312
    %v1913 = vpack.c.b16 %v1317, %v1313
    %v1914 = vpack.c.b16 %v1322, %v1318
    %v1915 = vpack.c.b16 %v1323, %v1319
    %v1916 = vpack.c.b16 %v1324, %v1320
    %v1917 = vpack.c.b16 %v1325, %v1321
    %v1918 = vpack.c.b16 %v1330, %v1326
    %v1919 = vpack.c.b16 %v1331, %v1327
    %v1920 = vpack.c.b16 %v1332, %v1328
    %v1921 = vpack.c.b16 %v1333, %v1329
    %v1922 = vpack.c.b16 %v1338, %v1334
    %v1923 = vpack.c.b16 %v1339, %v1335
    %v1924 = vpack.c.b16 %v1340, %v1336
    %v1925 = vpack.c.b16 %v1341, %v1337
    %v1926 = vpack.c.b16 %v1346, %v1342
    %v1927 = vpack.c.b16 %v1347, %v1343
    %v1928 = vpack.c.b16 %v1348, %v1344
    %v1929 = vpack.c.b16 %v1349, %v1345
    %v1930 = vpack.c.b16 %v1354, %v1350
    %v1931 = vpack.c.b16 %v1355, %v1351
    %v1932 = vpack.c.b16 %v1356, %v1352
    %v1933 = vpack.c.b16 %v1357, %v1353
    %v1934 = vpack.c.b16 %v1362, %v1358
    %v1935 = vpack.c.b16 %v1363, %v1359
    %v1936 = vpack.c.b16 %v1364, %v1360
    %v1937 = vpack.c.b16 %v1365, %v1361
    %v1938 = vpack.c.b16 %v1370, %v1366
    %v1939 = vpack.c.b16 %v1371, %v1367
    %v1940 = vpack.c.b16 %v1372, %v1368
    %v1941 = vpack.c.b16 %v1373, %v1369
    %v1942 = vpack.c.b16 %v1378, %v1374
    %v1943 = vpack.c.b16 %v1379, %v1375
    %v1944 = vpack.c.b16 %v1380, %v1376
    %v1945 = vpack.c.b16 %v1381, %v1377
    %v1946 = vpack.c.b16 %v1386, %v1382
    %v1947 = vpack.c.b16 %v1387, %v1383
    %v1948 = vpack.c.b16 %v1388, %v1384
    %v1949 = vpack.c.b16 %v1389, %v1385
    %v1950 = vpack.c.b16 %v1394, %v1390
    %v1951 = vpack.c.b16 %v1395, %v1391
    %v1952 = vpack.c.b16 %v1396, %v1392
    %v1953 = vpack.c.b16 %v1397, %v1393
    %v1954 = vpack.c.b16 %v1402, %v1398
    %v1955 = vpack.c.b16 %v1403, %v1399
    %v1956 = vpack.c.b16 %v1404, %v1400
    %v1957 = vpack.c.b16 %v1405, %v1401
    %v1958 = vpack.c.b16 %v1410, %v1406
    %v1959 = vpack.c.b16 %v1411, %v1407
    %v1960 = vpack.c.b16 %v1412, %v1408
    %v1961 = vpack.c.b16 %v1413, %v1409
    %v1962 = vpack.c.b16 %v1418, %v1414
    %v1963 = vpack.c.b16 %v1419, %v1415
    %v1964 = vpack.c.b16 %v1420, %v1416
    %v1965 = vpack.c.b16 %v1421, %v1417
    %v1966 = vpack.c.b16 %v1426, %v1422
    %v1967 = vpack.c.b16 %v1427, %v1423
    %v1968 = vpack.c.b16 %v1428, %v1424
    %v1969 = vpack.c.b16 %v1429, %v1425
    %v1970 = vpack.c.b16 %v1434, %v1430
    %v1971 = vpack.c.b16 %v1435, %v1431
    %v1972 = vpack.c.b16 %v1436, %v1432
    %v1973 = vpack.c.b16 %v1437, %v1433
    %v1974 = vpack.c.b16 %v1442, %v1438
    %v1975 = vpack.c.b16 %v1443, %v1439
    %v1976 = vpack.c.b16 %v1444, %v1440
    %v1977 = vpack.c.b16 %v1445, %v1441
    %v1978 = vpack.c.b16 %v1450, %v1446
    %v1979 = vpack.c.b16 %v1451, %v1447
    %v1980 = vpack.c.b16 %v1452, %v1448
    %v1981 = vpack.c.b16 %v1453, %v1449
    %v1982 = vpack.c.b16 %v1458, %v1454
    %v1983 = vpack.c.b16 %v1459, %v1455
    %v1984 = vpack.c.b16 %v1460, %v1456
    %v1985 = vpack.c.b16 %v1461, %v1457
    %v1986 = vpack.c.b16 %v1466, %v1462
    %v1987 = vpack.c.b16 %v1467, %v1463
    %v1988 = vpack.c.b16 %v1468, %v1464
    %v1989 = vpack.c.b16 %v1469, %v1465
    %v1990 = vpack.c.b16 %v1474, %v1470
    %v1991 = vpack.c.b16 %v1475, %v1471
    %v1992 = vpack.c.b16 %v1476, %v1472
    %v1993 = vpack.c.b16 %v1477, %v1473
    %v1994 = vpack.c.b16 %v1482, %v1478
    %v1995 = vpack.c.b16 %v1483, %v1479
    %v1996 = vpack.c.b16 %v1484, %v1480
    %v1997 = vpack.c.b16 %v1485, %v1481
    %v1998 = vpack.c.b16 %v1490, %v1486
    %v1999 = vpack.c.b16 %v1491, %v1487
    %v2000 = vpack.c.b16 %v1492, %v1488
    %v2001 = vpack.c.b16 %v1493, %v1489
    %v2002 = vpack.c.b16 %v1498, %v1494
    %v2003 = vpack.c.b16 %v1499, %v1495
    %v2004 = vpack.c.b16 %v1500, %v1496
    %v2005 = vpack.c.b16 %v1501, %v1497
    %v2006 = vpack.c.b16 %v1506, %v1502
    %v2007 = vpack.c.b16 %v1507, %v1503
    %v2008 = vpack.c.b16 %v1508, %v1504
    %v2009 = vpack.c.b16 %v1509, %v1505
    %v2010 = vpack.c.b16 %v1514, %v1510
    %v2011 = vpack.c.b16 %v1515, %v1511
    %v2012 = vpack.c.b16 %v1516, %v1512
    %v2013 = vpack.c.b16 %v1517, %v1513
    %v2014 = vpack.c.b16 %v1522, %v1518
    %v2015 = vpack.c.b16 %v1523, %v1519
    %v2016 = vpack.c.b16 %v1524, %v1520
    %v2017 = vpack.c.b16 %v1525, %v1521
    %v2018 = vpack.c.b16 %v1530, %v1526
    %v2019 = vpack.c.b16 %v1531, %v1527
    %v2020 = vpack.c.b16 %v1532, %v1528
    %v2021 = vpack.c.b16 %v1533, %v1529
    %v2022 = vpack.c.b16 %v1538, %v1534
    %v2023 = vpack.c.b16 %v1539, %v1535
    %v2024 = vpack.c.b16 %v1540, %v1536
    %v2025 = vpack.c.b16 %v1541, %v1537
    %v2026 = vpack.c.b16 %v1546, %v1542
    %v2027 = vpack.c.b16 %v1547, %v1543
    %v2028 = vpack.c.b16 %v1548, %v1544
    %v2029 = vpack.c.b16 %v1549, %v1545
    %v2030 = vpack.c.b16 %v1554, %v1550
    %v2031 = vpack.c.b16 %v1555, %v1551
    %v2032 = vpack.c.b16 %v1556, %v1552
    %v2033 = vpack.c.b16 %v1557, %v1553
    %v2034 = vpack.c.b16 %v1562, %v1558
    %v2035 = vpack.c.b16 %v1563, %v1559
    %v2036 = vpack.c.b16 %v1564, %v1560
    %v2037 = vpack.c.b16 %v1565, %v1561
    %v2038 = vpack.c.b16 %v1570, %v1566
    %v2039 = vpack.c.b16 %v1571, %v1567
    %v2040 = vpack.c.b16 %v1572, %v1568
    %v2041 = vpack.c.b16 %v1573, %v1569
    %v2042 = vpack.c.b16 %v1578, %v1574
    %v2043 = vpack.c.b16 %v1579, %v1575
    %v2044 = vpack.c.b16 %v1580, %v1576
    %v2045 = vpack.c.b16 %v1581, %v1577
    %v2046 = vpack.c.b16 %v1586, %v1582
    %v2047 = vpack.c.b16 %v1587, %v1583
    %v2048 = vpack.c.b16 %v1588, %v1584
    %v2049 = vpack.c.b16 %v1589, %v1585
    %v2050 = vpack.c.b16 %v1594, %v1590
    %v2051 = vpack.c.b16 %v1595, %v1591
    %v2052 = vpack.c.b16 %v1596, %v1592
    %v2053 = vpack.c.b16 %v1597, %v1593
    %v2054 = vpack.c.b16 %v1602, %v1598
    %v2055 = vpack.c.b16 %v1603, %v1599
    %v2056 = vpack.c.b16 %v1604, %v1600
    %v2057 = vpack.c.b16 %v1605, %v1601
    %v2058 = vpack.c.b16 %v1610, %v1606
    %v2059 = vpack.c.b16 %v1611, %v1607
    %v2060 = vpack.c.b16 %v1612, %v1608
    %v2061 = vpack.c.b16 %v1613, %v1609
    %v2062 = vpack.c.b16 %v1618, %v1614
    %v2063 = vpack.c.b16 %v1619, %v1615
    %v2064 = vpack.c.b16 %v1620, %v1616
    %v2065 = vpack.c.b16 %v1621, %v1617
    %v2066 = vpack.c.b16 %v1626, %v1622
    %v2067 = vpack.c.b16 %v1627, %v1623
    %v2068 = vpack.c.b16 %v1628, %v1624
    %v2069 = vpack.c.b16 %v1629, %v1625
    %v2070 = vpack.c.b16 %v1634, %v1630
    %v2071 = vpack.c.b16 %v1635, %v1631
    %v2072 = vpack.c.b16 %v1636, %v1632
    %v2073 = vpack.c.b16 %v1637, %v1633
    %v2074 = vpack.c.b16 %v1642, %v1638
    %v2075 = vpack.c.b16 %v1643, %v1639
    %v2076 = vpack.c.b16 %v1644, %v1640
    %v2077 = vpack.c.b16 %v1645, %v1641
    %v2078 = vpack.c.b16 %v1650, %v1646
    %v2079 = vpack.c.b16 %v1651, %v1647
    %v2080 = vpack.c.b16 %v1652, %v1648
    %v2081 = vpack.c.b16 %v1653, %v1649
    %v2082 = vpack.c.b16 %v1658, %v1654
    %v2083 = vpack.c.b16 %v1659, %v1655
    %v2084 = vpack.c.b16 %v1660, %v1656
    %v2085 = vpack.c.b16 %v1661, %v1657
    %v2086 = vpack.c.b16 %v1666, %v1662
    %v2087 = vpack.c.b16 %v1667, %v1663
    %v2088 = vpack.c.b16 %v1668, %v1664
    %v2089 = vpack.c.b16 %v1669, %v1665
    %v2090 = vpack.c.b16 %v1674, %v1670
    %v2091 = vpack.c.b16 %v1675, %v1671
    %v2092 = vpack.c.b16 %v1676, %v1672
    %v2093 = vpack.c.b16 %v1677, %v1673
    %v2094 = vpack.c.b16 %v1682, %v1678
    %v2095 = vpack.c.b16 %v1683, %v1679
    %v2096 = vpack.c.b16 %v1684, %v1680
    %v2097 = vpack.c.b16 %v1685, %v1681
    %v2098 = vpack.c.b16 %v1690, %v1686
    %v2099 = vpack.c.b16 %v1691, %v1687
    %v2100 = vpack.c.b16 %v1692, %v1688
    %v2101 = vpack.c.b16 %v1693, %v1689
    %v2102 = vpack.c.b16 %v1698, %v1694
    %v2103 = vpack.c.b16 %v1699, %v1695
    %v2104 = vpack.c.b16 %v1700, %v1696
    %v2105 = vpack.c.b16 %v1701, %v1697
    %v2106 = vpack.c.b16 %v1706, %v1702
    %v2107 = vpack.c.b16 %v1707, %v1703
    %v2108 = vpack.c.b16 %v1708, %v1704
    %v2109 = vpack.c.b16 %v1709, %v1705
    %v2110 = vpack.c.b16 %v1714, %v1710
    %v2111 = vpack.c.b16 %v1715, %v1711
    %v2112 = vpack.c.b16 %v1716, %v1712
    %v2113 = vpack.c.b16 %v1717, %v1713
    %v2114 = vpack.c.b16 %v1722, %v1718
    %v2115 = vpack.c.b16 %v1723, %v1719
    %v2116 = vpack.c.b16 %v1724, %v1720
    %v2117 = vpack.c.b16 %v1725, %v1721
    %v2118 = vpack.c.b16 %v1730, %v1726
    %v2119 = vpack.c.b16 %v1731, %v1727
    %v2120 = vpack.c.b16 %v1732, %v1728
    %v2121 = vpack.c.b16 %v1733, %v1729
    %v2122 = vpack.c.b16 %v1738, %v1734
    %v2123 = vpack.c.b16 %v1739, %v1735
    %v2124 = vpack.c.b16 %v1740, %v1736
    %v2125 = vpack.c.b16 %v1741, %v1737
    %v2126 = vpack.c.b16 %v1746, %v1742
    %v2127 = vpack.c.b16 %v1747, %v1743
    %v2128 = vpack.c.b16 %v1748, %v1744
    %v2129 = vpack.c.b16 %v1749, %v1745
    %v2130 = vpack.c.b16 %v1754, %v1750
    %v2131 = vpack.c.b16 %v1755, %v1751
    %v2132 = vpack.c.b16 %v1756, %v1752
    %v2133 = vpack.c.b16 %v1757, %v1753
    %v2134 = vpack.c.b16 %v1762, %v1758
    %v2135 = vpack.c.b16 %v1763, %v1759
    %v2136 = vpack.c.b16 %v1764, %v1760
    %v2137 = vpack.c.b16 %v1765, %v1761
    %v2138 = vpack.c.b16 %v1770, %v1766
    %v2139 = vpack.c.b16 %v1771, %v1767
    %v2140 = vpack.c.b16 %v1772, %v1768
    %v2141 = vpack.c.b16 %v1773, %v1769
    %v2142 = vpack.c.b16 %v1778, %v1774
    %v2143 = vpack.c.b16 %v1779, %v1775
    %v2144 = vpack.c.b16 %v1780, %v1776
    %v2145 = vpack.c.b16 %v1781, %v1777
    %v2146 = vpack.c.b16 %v1786, %v1782
    %v2147 = vpack.c.b16 %v1787, %v1783
    %v2148 = vpack.c.b16 %v1788, %v1784
    %v2149 = vpack.c.b16 %v1789, %v1785
    %v2150 = vpack.c.b16 %v1794, %v1790
    %v2151 = vpack.c.b16 %v1795, %v1791
    %v2152 = vpack.c.b16 %v1796, %v1792
    %v2153 = vpack.c.b16 %v1797, %v1793
    %v2154 = vpack.c.b16 %v1802, %v1798
    %v2155 = vpack.c.b16 %v1803, %v1799
    %v2156 = vpack.c.b16 %v1804, %v1800
    %v2157 = vpack.c.b16 %v1805, %v1801
    %v2158 = vpack.c.b16 %v1810, %v1806
    %v2159 = vpack.c.b16 %v1811, %v1807
    %v2160 = vpack.c.b16 %v1812, %v1808
    %v2161 = vpack.c.b16 %v1813, %v1809
    %v2162 = vpack.c.b16 %v1818, %v1814
    %v2163 = vpack.c.b16 %v1819, %v1815
    %v2164 = vpack.c.b16 %v1820, %v1816
    %v2165 = vpack.c.b16 %v1821, %v1817
    %v2166 = vpack.c.b16 %v1826, %v1822
    %v2167 = vpack.c.b16 %v1827, %v1823
    %v2168 = vpack.c.b16 %v1828, %v1824
    %v2169 = vpack.c.b16 %v1829, %v1825
    %v2170 = vpack.c.b16 %v1834, %v1830
    %v2171 = vpack.c.b16 %v1835, %v1831
    %v2172 = vpack.c.b16 %v1836, %v1832
    %v2173 = vpack.c.b16 %v1837, %v1833
    %v2174 = vpack.c.b16 %v1842, %v1838
    %v2175 = vpack.c.b16 %v1843, %v1839
    %v2176 = vpack.c.b16 %v1844, %v1840
    %v2177 = vpack.c.b16 %v1845, %v1841
    %v2178 = vpack.c.b16 %v1850, %v1846
    %v2179 = vpack.c.b16 %v1851, %v1847
    %v2180 = vpack.c.b16 %v1852, %v1848
    %v2181 = vpack.c.b16 %v1853, %v1849
    %v2182 = vpack.c.b16 %v1858, %v1854
    %v2183 = vpack.c.b16 %v1859, %v1855
    %v2184 = vpack.c.b16 %v1860, %v1856
    %v2185 = vpack.c.b16 %v1861, %v1857
    %v2186 = vpack.c.b16 %v1866, %v1862
    %v2187 = vpack.c.b16 %v1867, %v1863
    %v2188 = vpack.c.b16 %v1868, %v1864
    %v2189 = vpack.c.b16 %v1869, %v1865
    %2510 = vmatprep.subr.bf16.mxu0 %v1899
    %2511 = vmatpush1.bf16.msra.mxu0 %v1898
    %2512 = vmatprep.subr.bf16.mxu0 %v1895
    %2513 = vmatpush1.bf16.msra.mxu0 %v1894
    %2514 = vmatprep.subr.bf16.mxu0 %v1891
    %2515 = vmatpush1.bf16.msra.mxu0 %v1890
    %2516 = vmatprep.subr.bf16.mxu0 %v1887
    %2517 = vmatpush1.bf16.msra.mxu0 %v1886
    %2518 = vmatprep.subr.bf16.mxu0 %v1883
    %2519 = vmatpush1.bf16.msra.mxu0 %v1882
    %2520 = vmatprep.subr.bf16.mxu0 %v1879
    %2521 = vmatpush1.bf16.msra.mxu0 %v1878
    %2522 = vmatprep.subr.bf16.mxu0 %v1875
    %2523 = vmatpush1.bf16.msra.mxu0 %v1874
    %2524 = vmatprep.subr.bf16.mxu0 %v1871
    %2525 = vmatpush1.bf16.msra.mxu0 %v1870
    %2526 = vmatprep.subr.bf16.mxu0 %v1931
    %2527 = vmatpush2.bf16.msra.mxu0 %v1930
    %2528 = vmatprep.subr.bf16.mxu0 %v1927
    %2529 = vmatpush2.bf16.msra.mxu0 %v1926
    %2530 = vmatprep.subr.bf16.mxu0 %v1923
    %2531 = vmatpush2.bf16.msra.mxu0 %v1922
    %2532 = vmatprep.subr.bf16.mxu0 %v1919
    %2533 = vmatpush2.bf16.msra.mxu0 %v1918
    %2534 = vmatprep.subr.bf16.mxu0 %v1915
    %2535 = vmatpush2.bf16.msra.mxu0 %v1914
    %2536 = vmatprep.subr.bf16.mxu0 %v1911
    %2537 = vmatpush2.bf16.msra.mxu0 %v1910
    %2538 = vmatprep.subr.bf16.mxu0 %v1907
    %2539 = vmatpush2.bf16.msra.mxu0 %v1906
    %2540 = vmatprep.subr.bf16.mxu0 %v1903
    %2541 = vmatpush2.bf16.msra.mxu0 %v1902
    %2542 = vmatprep.mubr.bf16.mxu0 %v559
    %2543 = vmatmul.mubr.bf16.gmra.mxu0 %v558
    %v2544 = vpop.f32.mrf.mxu0
    %v2545 = vadd.f32 %v893, %v2544
    %v2546 = vpop.f32.mrf.mxu0
    %v2547 = vadd.f32 %v897, %v2546
    %v2548 = vpop.f32.mrf.mxu0
    %v2549 = vpop.f32.mrf.mxu0
    %2550 = vdwg.mxu0
    %2551 = vmatprep.subr.bf16.mxu0 %v1963
    %2552 = vmatpush1.bf16.msra.mxu0 %v1962
    %2553 = vmatprep.subr.bf16.mxu0 %v1959
    %2554 = vmatpush1.bf16.msra.mxu0 %v1958
    %2555 = vmatprep.subr.bf16.mxu0 %v1955
    %2556 = vmatpush1.bf16.msra.mxu0 %v1954
    %2557 = vmatprep.subr.bf16.mxu0 %v1951
    %2558 = vmatpush1.bf16.msra.mxu0 %v1950
    %2559 = vmatprep.subr.bf16.mxu0 %v1947
    %2560 = vmatpush1.bf16.msra.mxu0 %v1946
    %2561 = vmatprep.subr.bf16.mxu0 %v1943
    %2562 = vmatpush1.bf16.msra.mxu0 %v1942
    %2563 = vmatprep.subr.bf16.mxu0 %v1939
    %2564 = vmatpush1.bf16.msra.mxu0 %v1938
    %2565 = vmatprep.subr.bf16.mxu0 %v1935
    %2566 = vmatpush1.bf16.msra.mxu0 %v1934
    %2567 = vmatprep.subr.bf16.mxu0 %v1995
    %2568 = vmatpush2.bf16.msra.mxu0 %v1994
    %2569 = vmatprep.subr.bf16.mxu0 %v1991
    %2570 = vmatpush2.bf16.msra.mxu0 %v1990
    %2571 = vmatprep.subr.bf16.mxu0 %v1987
    %2572 = vmatpush2.bf16.msra.mxu0 %v1986
    %2573 = vmatprep.subr.bf16.mxu0 %v1983
    %2574 = vmatpush2.bf16.msra.mxu0 %v1982
    %2575 = vmatprep.subr.bf16.mxu0 %v1979
    %2576 = vmatpush2.bf16.msra.mxu0 %v1978
    %2577 = vmatprep.subr.bf16.mxu0 %v1975
    %2578 = vmatpush2.bf16.msra.mxu0 %v1974
    %2579 = vmatprep.subr.bf16.mxu0 %v1971
    %2580 = vmatpush2.bf16.msra.mxu0 %v1970
    %2581 = vmatprep.subr.bf16.mxu0 %v1967
    %2582 = vmatpush2.bf16.msra.mxu0 %v1966
    %2583 = vmatprep.mubr.bf16.mxu0 %v561
    %2584 = vmatmul.mubr.bf16.gmra.mxu0 %v560
    %v2585 = vpop.f32.mrf.mxu0
    %v2586 = vadd.f32 %v2545, %v2585
    %v2587 = vpop.f32.mrf.mxu0
    %v2588 = vadd.f32 %v2547, %v2587
    %v2589 = vpop.f32.mrf.mxu0
    %v2590 = vpop.f32.mrf.mxu0
    %2591 = vdwg.mxu0
    %2592 = vmatprep.subr.bf16.mxu0 %v2027
    %2593 = vmatpush1.bf16.msra.mxu0 %v2026
    %2594 = vmatprep.subr.bf16.mxu0 %v2023
    %2595 = vmatpush1.bf16.msra.mxu0 %v2022
    %2596 = vmatprep.subr.bf16.mxu0 %v2019
    %2597 = vmatpush1.bf16.msra.mxu0 %v2018
    %2598 = vmatprep.subr.bf16.mxu0 %v2015
    %2599 = vmatpush1.bf16.msra.mxu0 %v2014
    %2600 = vmatprep.subr.bf16.mxu0 %v2011
    %2601 = vmatpush1.bf16.msra.mxu0 %v2010
    %2602 = vmatprep.subr.bf16.mxu0 %v2007
    %2603 = vmatpush1.bf16.msra.mxu0 %v2006
    %2604 = vmatprep.subr.bf16.mxu0 %v2003
    %2605 = vmatpush1.bf16.msra.mxu0 %v2002
    %2606 = vmatprep.subr.bf16.mxu0 %v1999
    %2607 = vmatpush1.bf16.msra.mxu0 %v1998
    %2608 = vmatprep.subr.bf16.mxu0 %v2059
    %2609 = vmatpush2.bf16.msra.mxu0 %v2058
    %2610 = vmatprep.subr.bf16.mxu0 %v2055
    %2611 = vmatpush2.bf16.msra.mxu0 %v2054
    %2612 = vmatprep.subr.bf16.mxu0 %v2051
    %2613 = vmatpush2.bf16.msra.mxu0 %v2050
    %2614 = vmatprep.subr.bf16.mxu0 %v2047
    %2615 = vmatpush2.bf16.msra.mxu0 %v2046
    %2616 = vmatprep.subr.bf16.mxu0 %v2043
    %2617 = vmatpush2.bf16.msra.mxu0 %v2042
    %2618 = vmatprep.subr.bf16.mxu0 %v2039
    %2619 = vmatpush2.bf16.msra.mxu0 %v2038
    %2620 = vmatprep.subr.bf16.mxu0 %v2035
    %2621 = vmatpush2.bf16.msra.mxu0 %v2034
    %2622 = vmatprep.subr.bf16.mxu0 %v2031
    %2623 = vmatpush2.bf16.msra.mxu0 %v2030
    %2624 = vmatprep.mubr.bf16.mxu0 %v563
    %2625 = vmatmul.mubr.bf16.gmra.mxu0 %v562
    %v2626 = vpop.f32.mrf.mxu0
    %v2627 = vadd.f32 %v2586, %v2626
    %v2628 = vpop.f32.mrf.mxu0
    %v2629 = vadd.f32 %v2588, %v2628
    %v2630 = vpop.f32.mrf.mxu0
    %v2631 = vpop.f32.mrf.mxu0
    %2632 = vdwg.mxu0
    %2633 = vmatprep.subr.bf16.mxu0 %v2091
    %2634 = vmatpush1.bf16.msra.mxu0 %v2090
    %2635 = vmatprep.subr.bf16.mxu0 %v2087
    %2636 = vmatpush1.bf16.msra.mxu0 %v2086
    %2637 = vmatprep.subr.bf16.mxu0 %v2083
    %2638 = vmatpush1.bf16.msra.mxu0 %v2082
    %2639 = vmatprep.subr.bf16.mxu0 %v2079
    %2640 = vmatpush1.bf16.msra.mxu0 %v2078
    %2641 = vmatprep.subr.bf16.mxu0 %v2075
    %2642 = vmatpush1.bf16.msra.mxu0 %v2074
    %2643 = vmatprep.subr.bf16.mxu0 %v2071
    %2644 = vmatpush1.bf16.msra.mxu0 %v2070
    %2645 = vmatprep.subr.bf16.mxu0 %v2067
    %2646 = vmatpush1.bf16.msra.mxu0 %v2066
    %2647 = vmatprep.subr.bf16.mxu0 %v2063
    %2648 = vmatpush1.bf16.msra.mxu0 %v2062
    %2649 = vmatprep.subr.bf16.mxu0 %v2123
    %2650 = vmatpush2.bf16.msra.mxu0 %v2122
    %2651 = vmatprep.subr.bf16.mxu0 %v2119
    %2652 = vmatpush2.bf16.msra.mxu0 %v2118
    %2653 = vmatprep.subr.bf16.mxu0 %v2115
    %2654 = vmatpush2.bf16.msra.mxu0 %v2114
    %2655 = vmatprep.subr.bf16.mxu0 %v2111
    %2656 = vmatpush2.bf16.msra.mxu0 %v2110
    %2657 = vmatprep.subr.bf16.mxu0 %v2107
    %2658 = vmatpush2.bf16.msra.mxu0 %v2106
    %2659 = vmatprep.subr.bf16.mxu0 %v2103
    %2660 = vmatpush2.bf16.msra.mxu0 %v2102
    %2661 = vmatprep.subr.bf16.mxu0 %v2099
    %2662 = vmatpush2.bf16.msra.mxu0 %v2098
    %2663 = vmatprep.subr.bf16.mxu0 %v2095
    %2664 = vmatpush2.bf16.msra.mxu0 %v2094
    %2665 = vmatprep.mubr.bf16.mxu0 %v565
    %2666 = vmatmul.mubr.bf16.gmra.mxu0 %v564
    %v2667 = vpop.f32.mrf.mxu0
    %v2668 = vadd.f32 %v2627, %v2667
    %v2669 = vpop.f32.mrf.mxu0
    %v2670 = vadd.f32 %v2629, %v2669
    %v2671 = vpop.f32.mrf.mxu0
    %v2672 = vpop.f32.mrf.mxu0
    %2673 = vdwg.mxu0
    %2674 = vmatprep.subr.bf16.mxu0 %v2155
    %2675 = vmatpush1.bf16.msra.mxu0 %v2154
    %2676 = vmatprep.subr.bf16.mxu0 %v2151
    %2677 = vmatpush1.bf16.msra.mxu0 %v2150
    %2678 = vmatprep.subr.bf16.mxu0 %v2147
    %2679 = vmatpush1.bf16.msra.mxu0 %v2146
    %2680 = vmatprep.subr.bf16.mxu0 %v2143
    %2681 = vmatpush1.bf16.msra.mxu0 %v2142
    %2682 = vmatprep.subr.bf16.mxu0 %v2139
    %2683 = vmatpush1.bf16.msra.mxu0 %v2138
    %2684 = vmatprep.subr.bf16.mxu0 %v2135
    %2685 = vmatpush1.bf16.msra.mxu0 %v2134
    %2686 = vmatprep.subr.bf16.mxu0 %v2131
    %2687 = vmatpush1.bf16.msra.mxu0 %v2130
    %2688 = vmatprep.subr.bf16.mxu0 %v2127
    %2689 = vmatpush1.bf16.msra.mxu0 %v2126
    %2690 = vmatprep.subr.bf16.mxu0 %v2187
    %2691 = vmatpush2.bf16.msra.mxu0 %v2186
    %2692 = vmatprep.subr.bf16.mxu0 %v2183
    %2693 = vmatpush2.bf16.msra.mxu0 %v2182
    %2694 = vmatprep.subr.bf16.mxu0 %v2179
    %2695 = vmatpush2.bf16.msra.mxu0 %v2178
    %2696 = vmatprep.subr.bf16.mxu0 %v2175
    %2697 = vmatpush2.bf16.msra.mxu0 %v2174
    %2698 = vmatprep.subr.bf16.mxu0 %v2171
    %2699 = vmatpush2.bf16.msra.mxu0 %v2170
    %2700 = vmatprep.subr.bf16.mxu0 %v2167
    %2701 = vmatpush2.bf16.msra.mxu0 %v2166
    %2702 = vmatprep.subr.bf16.mxu0 %v2163
    %2703 = vmatpush2.bf16.msra.mxu0 %v2162
    %2704 = vmatprep.subr.bf16.mxu0 %v2159
    %2705 = vmatpush2.bf16.msra.mxu0 %v2158
    %2706 = vmatprep.mubr.bf16.mxu0 %v567
    %2707 = vmatmul.mubr.bf16.gmra.mxu0 %v566
    %v2708 = vpop.f32.mrf.mxu0
    %v2709 = vadd.f32 %v2668, %v2708
    %v2710 = vpop.f32.mrf.mxu0
    %v2711 = vadd.f32 %v2670, %v2710
    %v2712 = vpop.f32.mrf.mxu0
    %v2713 = vpop.f32.mrf.mxu0
    %2714 = vdwg.mxu0
    %2715 = vmatprep.subr.bf16.mxu0 %v1901
    %2716 = vmatpush1.bf16.msra.mxu0 %v1900
    %2717 = vmatprep.subr.bf16.mxu0 %v1897
    %2718 = vmatpush1.bf16.msra.mxu0 %v1896
    %2719 = vmatprep.subr.bf16.mxu0 %v1893
    %2720 = vmatpush1.bf16.msra.mxu0 %v1892
    %2721 = vmatprep.subr.bf16.mxu0 %v1889
    %2722 = vmatpush1.bf16.msra.mxu0 %v1888
    %2723 = vmatprep.subr.bf16.mxu0 %v1885
    %2724 = vmatpush1.bf16.msra.mxu0 %v1884
    %2725 = vmatprep.subr.bf16.mxu0 %v1881
    %2726 = vmatpush1.bf16.msra.mxu0 %v1880
    %2727 = vmatprep.subr.bf16.mxu0 %v1877
    %2728 = vmatpush1.bf16.msra.mxu0 %v1876
    %2729 = vmatprep.subr.bf16.mxu0 %v1873
    %2730 = vmatpush1.bf16.msra.mxu0 %v1872
    %2731 = vmatprep.subr.bf16.mxu0 %v1933
    %2732 = vmatpush2.bf16.msra.mxu0 %v1932
    %2733 = vmatprep.subr.bf16.mxu0 %v1929
    %2734 = vmatpush2.bf16.msra.mxu0 %v1928
    %2735 = vmatprep.subr.bf16.mxu0 %v1925
    %2736 = vmatpush2.bf16.msra.mxu0 %v1924
    %2737 = vmatprep.subr.bf16.mxu0 %v1921
    %2738 = vmatpush2.bf16.msra.mxu0 %v1920
    %2739 = vmatprep.subr.bf16.mxu0 %v1917
    %2740 = vmatpush2.bf16.msra.mxu0 %v1916
    %2741 = vmatprep.subr.bf16.mxu0 %v1913
    %2742 = vmatpush2.bf16.msra.mxu0 %v1912
    %2743 = vmatprep.subr.bf16.mxu0 %v1909
    %2744 = vmatpush2.bf16.msra.mxu0 %v1908
    %2745 = vmatprep.subr.bf16.mxu0 %v1905
    %2746 = vmatpush2.bf16.msra.mxu0 %v1904
    %2747 = vmatprep.mubr.bf16.mxu0 %v559
    %2748 = vmatmul.mubr.bf16.gmra.mxu0 %v558
    %v2749 = vpop.f32.mrf.mxu0
    %v2750 = vadd.f32 %v901, %v2749
    %v2751 = vpop.f32.mrf.mxu0
    %v2752 = vadd.f32 %v905, %v2751
    %v2753 = vpop.f32.mrf.mxu0
    %v2754 = vpop.f32.mrf.mxu0
    %2755 = vdwg.mxu0
    %2756 = vmatprep.subr.bf16.mxu0 %v1965
    %2757 = vmatpush1.bf16.msra.mxu0 %v1964
    %2758 = vmatprep.subr.bf16.mxu0 %v1961
    %2759 = vmatpush1.bf16.msra.mxu0 %v1960
    %2760 = vmatprep.subr.bf16.mxu0 %v1957
    %2761 = vmatpush1.bf16.msra.mxu0 %v1956
    %2762 = vmatprep.subr.bf16.mxu0 %v1953
    %2763 = vmatpush1.bf16.msra.mxu0 %v1952
    %2764 = vmatprep.subr.bf16.mxu0 %v1949
    %2765 = vmatpush1.bf16.msra.mxu0 %v1948
    %2766 = vmatprep.subr.bf16.mxu0 %v1945
    %2767 = vmatpush1.bf16.msra.mxu0 %v1944
    %2768 = vmatprep.subr.bf16.mxu0 %v1941
    %2769 = vmatpush1.bf16.msra.mxu0 %v1940
    %2770 = vmatprep.subr.bf16.mxu0 %v1937
    %2771 = vmatpush1.bf16.msra.mxu0 %v1936
    %2772 = vmatprep.subr.bf16.mxu0 %v1997
    %2773 = vmatpush2.bf16.msra.mxu0 %v1996
    %2774 = vmatprep.subr.bf16.mxu0 %v1993
    %2775 = vmatpush2.bf16.msra.mxu0 %v1992
    %2776 = vmatprep.subr.bf16.mxu0 %v1989
    %2777 = vmatpush2.bf16.msra.mxu0 %v1988
    %2778 = vmatprep.subr.bf16.mxu0 %v1985
    %2779 = vmatpush2.bf16.msra.mxu0 %v1984
    %2780 = vmatprep.subr.bf16.mxu0 %v1981
    %2781 = vmatpush2.bf16.msra.mxu0 %v1980
    %2782 = vmatprep.subr.bf16.mxu0 %v1977
    %2783 = vmatpush2.bf16.msra.mxu0 %v1976
    %2784 = vmatprep.subr.bf16.mxu0 %v1973
    %2785 = vmatpush2.bf16.msra.mxu0 %v1972
    %2786 = vmatprep.subr.bf16.mxu0 %v1969
    %2787 = vmatpush2.bf16.msra.mxu0 %v1968
    %2788 = vmatprep.mubr.bf16.mxu0 %v561
    %2789 = vmatmul.mubr.bf16.gmra.mxu0 %v560
    %v2790 = vpop.f32.mrf.mxu0
    %v2791 = vadd.f32 %v2750, %v2790
    %v2792 = vpop.f32.mrf.mxu0
    %v2793 = vadd.f32 %v2752, %v2792
    %v2794 = vpop.f32.mrf.mxu0
    %v2795 = vpop.f32.mrf.mxu0
    %2796 = vdwg.mxu0
    %2797 = vmatprep.subr.bf16.mxu0 %v2029
    %2798 = vmatpush1.bf16.msra.mxu0 %v2028
    %2799 = vmatprep.subr.bf16.mxu0 %v2025
    %2800 = vmatpush1.bf16.msra.mxu0 %v2024
    %2801 = vmatprep.subr.bf16.mxu0 %v2021
    %2802 = vmatpush1.bf16.msra.mxu0 %v2020
    %2803 = vmatprep.subr.bf16.mxu0 %v2017
    %2804 = vmatpush1.bf16.msra.mxu0 %v2016
    %2805 = vmatprep.subr.bf16.mxu0 %v2013
    %2806 = vmatpush1.bf16.msra.mxu0 %v2012
    %2807 = vmatprep.subr.bf16.mxu0 %v2009
    %2808 = vmatpush1.bf16.msra.mxu0 %v2008
    %2809 = vmatprep.subr.bf16.mxu0 %v2005
    %2810 = vmatpush1.bf16.msra.mxu0 %v2004
    %2811 = vmatprep.subr.bf16.mxu0 %v2001
    %2812 = vmatpush1.bf16.msra.mxu0 %v2000
    %2813 = vmatprep.subr.bf16.mxu0 %v2061
    %2814 = vmatpush2.bf16.msra.mxu0 %v2060
    %2815 = vmatprep.subr.bf16.mxu0 %v2057
    %2816 = vmatpush2.bf16.msra.mxu0 %v2056
    %2817 = vmatprep.subr.bf16.mxu0 %v2053
    %2818 = vmatpush2.bf16.msra.mxu0 %v2052
    %2819 = vmatprep.subr.bf16.mxu0 %v2049
    %2820 = vmatpush2.bf16.msra.mxu0 %v2048
    %2821 = vmatprep.subr.bf16.mxu0 %v2045
    %2822 = vmatpush2.bf16.msra.mxu0 %v2044
    %2823 = vmatprep.subr.bf16.mxu0 %v2041
    %2824 = vmatpush2.bf16.msra.mxu0 %v2040
    %2825 = vmatprep.subr.bf16.mxu0 %v2037
    %2826 = vmatpush2.bf16.msra.mxu0 %v2036
    %2827 = vmatprep.subr.bf16.mxu0 %v2033
    %2828 = vmatpush2.bf16.msra.mxu0 %v2032
    %2829 = vmatprep.mubr.bf16.mxu0 %v563
    %2830 = vmatmul.mubr.bf16.gmra.mxu0 %v562
    %v2831 = vpop.f32.mrf.mxu0
    %v2832 = vadd.f32 %v2791, %v2831
    %v2833 = vpop.f32.mrf.mxu0
    %v2834 = vadd.f32 %v2793, %v2833
    %v2835 = vpop.f32.mrf.mxu0
    %v2836 = vpop.f32.mrf.mxu0
    %2837 = vdwg.mxu0
    %2838 = vmatprep.subr.bf16.mxu0 %v2093
    %2839 = vmatpush1.bf16.msra.mxu0 %v2092
    %2840 = vmatprep.subr.bf16.mxu0 %v2089
    %2841 = vmatpush1.bf16.msra.mxu0 %v2088
    %2842 = vmatprep.subr.bf16.mxu0 %v2085
    %2843 = vmatpush1.bf16.msra.mxu0 %v2084
    %2844 = vmatprep.subr.bf16.mxu0 %v2081
    %2845 = vmatpush1.bf16.msra.mxu0 %v2080
    %2846 = vmatprep.subr.bf16.mxu0 %v2077
    %2847 = vmatpush1.bf16.msra.mxu0 %v2076
    %2848 = vmatprep.subr.bf16.mxu0 %v2073
    %2849 = vmatpush1.bf16.msra.mxu0 %v2072
    %2850 = vmatprep.subr.bf16.mxu0 %v2069
    %2851 = vmatpush1.bf16.msra.mxu0 %v2068
    %2852 = vmatprep.subr.bf16.mxu0 %v2065
    %2853 = vmatpush1.bf16.msra.mxu0 %v2064
    %2854 = vmatprep.subr.bf16.mxu0 %v2125
    %2855 = vmatpush2.bf16.msra.mxu0 %v2124
    %2856 = vmatprep.subr.bf16.mxu0 %v2121
    %2857 = vmatpush2.bf16.msra.mxu0 %v2120
    %2858 = vmatprep.subr.bf16.mxu0 %v2117
    %2859 = vmatpush2.bf16.msra.mxu0 %v2116
    %2860 = vmatprep.subr.bf16.mxu0 %v2113
    %2861 = vmatpush2.bf16.msra.mxu0 %v2112
    %2862 = vmatprep.subr.bf16.mxu0 %v2109
    %2863 = vmatpush2.bf16.msra.mxu0 %v2108
    %2864 = vmatprep.subr.bf16.mxu0 %v2105
    %2865 = vmatpush2.bf16.msra.mxu0 %v2104
    %2866 = vmatprep.subr.bf16.mxu0 %v2101
    %2867 = vmatpush2.bf16.msra.mxu0 %v2100
    %2868 = vmatprep.subr.bf16.mxu0 %v2097
    %2869 = vmatpush2.bf16.msra.mxu0 %v2096
    %2870 = vmatprep.mubr.bf16.mxu0 %v565
    %2871 = vmatmul.mubr.bf16.gmra.mxu0 %v564
    %v2872 = vpop.f32.mrf.mxu0
    %v2873 = vadd.f32 %v2832, %v2872
    %v2874 = vpop.f32.mrf.mxu0
    %v2875 = vadd.f32 %v2834, %v2874
    %v2876 = vpop.f32.mrf.mxu0
    %v2877 = vpop.f32.mrf.mxu0
    %2878 = vdwg.mxu0
    %2879 = vmatprep.subr.bf16.mxu0 %v2157
    %2880 = vmatpush1.bf16.msra.mxu0 %v2156
    %2881 = vmatprep.subr.bf16.mxu0 %v2153
    %2882 = vmatpush1.bf16.msra.mxu0 %v2152
    %2883 = vmatprep.subr.bf16.mxu0 %v2149
    %2884 = vmatpush1.bf16.msra.mxu0 %v2148
    %2885 = vmatprep.subr.bf16.mxu0 %v2145
    %2886 = vmatpush1.bf16.msra.mxu0 %v2144
    %2887 = vmatprep.subr.bf16.mxu0 %v2141
    %2888 = vmatpush1.bf16.msra.mxu0 %v2140
    %2889 = vmatprep.subr.bf16.mxu0 %v2137
    %2890 = vmatpush1.bf16.msra.mxu0 %v2136
    %2891 = vmatprep.subr.bf16.mxu0 %v2133
    %2892 = vmatpush1.bf16.msra.mxu0 %v2132
    %2893 = vmatprep.subr.bf16.mxu0 %v2129
    %2894 = vmatpush1.bf16.msra.mxu0 %v2128
    %2895 = vmatprep.subr.bf16.mxu0 %v2189
    %2896 = vmatpush2.bf16.msra.mxu0 %v2188
    %2897 = vmatprep.subr.bf16.mxu0 %v2185
    %2898 = vmatpush2.bf16.msra.mxu0 %v2184
    %2899 = vmatprep.subr.bf16.mxu0 %v2181
    %2900 = vmatpush2.bf16.msra.mxu0 %v2180
    %2901 = vmatprep.subr.bf16.mxu0 %v2177
    %2902 = vmatpush2.bf16.msra.mxu0 %v2176
    %2903 = vmatprep.subr.bf16.mxu0 %v2173
    %2904 = vmatpush2.bf16.msra.mxu0 %v2172
    %2905 = vmatprep.subr.bf16.mxu0 %v2169
    %2906 = vmatpush2.bf16.msra.mxu0 %v2168
    %2907 = vmatprep.subr.bf16.mxu0 %v2165
    %2908 = vmatpush2.bf16.msra.mxu0 %v2164
    %2909 = vmatprep.subr.bf16.mxu0 %v2161
    %2910 = vmatpush2.bf16.msra.mxu0 %v2160
    %2911 = vmatprep.mubr.bf16.mxu0 %v567
    %2912 = vmatmul.mubr.bf16.gmra.mxu0 %v566
    %v2913 = vpop.f32.mrf.mxu0
    %v2914 = vadd.f32 %v2873, %v2913
    %v2915 = vpop.f32.mrf.mxu0
    %v2916 = vadd.f32 %v2875, %v2915
    %v2917 = vpop.f32.mrf.mxu0
    %v2918 = vpop.f32.mrf.mxu0
    %2919 = vdwg.mxu0
    %v2920 = vmax.f32 %v2709, 0.0
    %v2921 = vmax.f32 %v2711, 0.0
    %v2922 = vmax.f32 %v2914, 0.0
    %v2923 = vmax.f32 %v2916, 0.0
    %v2924 = vpack.c.bf16 %v2920, %v2920
    %v2925 = vpack.c.bf16 %v2921, %v2921
    %v2926 = vpack.c.bf16 %v2922, %v2922
    %v2927 = vpack.c.bf16 %v2923, %v2923
    %v2928 = vld [vmem:[#allocation9] sm:$0xff]
    %v2929 = vld [vmem:[#allocation9 + $0x8] sm:$0xff]
    %v2930 = vld [vmem:[#allocation9 + $0x10] sm:$0xff]
    %v2931 = vld [vmem:[#allocation9 + $0x18] sm:$0xff]
    %v2932 = vld [vmem:[#allocation9 + $0x20] sm:$0xff]
    %v2933 = vld [vmem:[#allocation9 + $0x28] sm:$0xff]
    %v2934 = vld [vmem:[#allocation9 + $0x30] sm:$0xff]
    %v2935 = vld [vmem:[#allocation9 + $0x38] sm:$0xff]
    %v2936 = vld [vmem:[#allocation9 + $0x40] sm:$0xff]
    %v2937 = vld [vmem:[#allocation9 + $0x48] sm:$0xff]
    %v2938 = vld [vmem:[#allocation9 + $0x50] sm:$0xff]
    %v2939 = vld [vmem:[#allocation9 + $0x58] sm:$0xff]
    %v2940 = vld [vmem:[#allocation9 + $0x60] sm:$0xff]
    %v2941 = vld [vmem:[#allocation9 + $0x68] sm:$0xff]
    %v2942 = vld [vmem:[#allocation9 + $0x70] sm:$0xff]
    %v2943 = vld [vmem:[#allocation9 + $0x78] sm:$0xff]
    %v2944 = vld [vmem:[#allocation9 + $0x80] sm:$0xff]
    %v2945 = vld [vmem:[#allocation9 + $0x88] sm:$0xff]
    %v2946 = vld [vmem:[#allocation9 + $0x90] sm:$0xff]
    %v2947 = vld [vmem:[#allocation9 + $0x98] sm:$0xff]
    %v2948 = vld [vmem:[#allocation9 + $0xa0] sm:$0xff]
    %v2949 = vld [vmem:[#allocation9 + $0xa8] sm:$0xff]
    %v2950 = vld [vmem:[#allocation9 + $0xb0] sm:$0xff]
    %v2951 = vld [vmem:[#allocation9 + $0xb8] sm:$0xff]
    %v2952 = vld [vmem:[#allocation9 + $0xc0] sm:$0xff]
    %v2953 = vld [vmem:[#allocation9 + $0xc8] sm:$0xff]
    %v2954 = vld [vmem:[#allocation9 + $0xd0] sm:$0xff]
    %v2955 = vld [vmem:[#allocation9 + $0xd8] sm:$0xff]
    %v2956 = vld [vmem:[#allocation9 + $0xe0] sm:$0xff]
    %v2957 = vld [vmem:[#allocation9 + $0xe8] sm:$0xff]
    %v2958 = vld [vmem:[#allocation9 + $0xf0] sm:$0xff]
    %v2959 = vld [vmem:[#allocation9 + $0xf8] sm:$0xff]
    %v2960 = vld [vmem:[#allocation9 + $0x100] sm:$0xff]
    %v2961 = vld [vmem:[#allocation9 + $0x108] sm:$0xff]
    %v2962 = vld [vmem:[#allocation9 + $0x110] sm:$0xff]
    %v2963 = vld [vmem:[#allocation9 + $0x118] sm:$0xff]
    %v2964 = vld [vmem:[#allocation9 + $0x120] sm:$0xff]
    %v2965 = vld [vmem:[#allocation9 + $0x128] sm:$0xff]
    %v2966 = vld [vmem:[#allocation9 + $0x130] sm:$0xff]
    %v2967 = vld [vmem:[#allocation9 + $0x138] sm:$0xff]
    %v2968 = vld [vmem:[#allocation9 + $0x140] sm:$0xff]
    %v2969 = vld [vmem:[#allocation9 + $0x148] sm:$0xff]
    %v2970 = vld [vmem:[#allocation9 + $0x150] sm:$0xff]
    %v2971 = vld [vmem:[#allocation9 + $0x158] sm:$0xff]
    %v2972 = vld [vmem:[#allocation9 + $0x160] sm:$0xff]
    %v2973 = vld [vmem:[#allocation9 + $0x168] sm:$0xff]
    %v2974 = vld [vmem:[#allocation9 + $0x170] sm:$0xff]
    %v2975 = vld [vmem:[#allocation9 + $0x178] sm:$0xff]
    %v2976 = vld [vmem:[#allocation9 + $0x180] sm:$0xff]
    %v2977 = vld [vmem:[#allocation9 + $0x188] sm:$0xff]
    %v2978 = vld [vmem:[#allocation9 + $0x190] sm:$0xff]
    %v2979 = vld [vmem:[#allocation9 + $0x198] sm:$0xff]
    %v2980 = vld [vmem:[#allocation9 + $0x1a0] sm:$0xff]
    %v2981 = vld [vmem:[#allocation9 + $0x1a8] sm:$0xff]
    %v2982 = vld [vmem:[#allocation9 + $0x1b0] sm:$0xff]
    %v2983 = vld [vmem:[#allocation9 + $0x1b8] sm:$0xff]
    %v2984 = vld [vmem:[#allocation9 + $0x1c0] sm:$0xff]
    %v2985 = vld [vmem:[#allocation9 + $0x1c8] sm:$0xff]
    %v2986 = vld [vmem:[#allocation9 + $0x1d0] sm:$0xff]
    %v2987 = vld [vmem:[#allocation9 + $0x1d8] sm:$0xff]
    %v2988 = vld [vmem:[#allocation9 + $0x1e0] sm:$0xff]
    %v2989 = vld [vmem:[#allocation9 + $0x1e8] sm:$0xff]
    %v2990 = vld [vmem:[#allocation9 + $0x1f0] sm:$0xff]
    %v2991 = vld [vmem:[#allocation9 + $0x1f8] sm:$0xff]
    %v2992 = vld [vmem:[#allocation10] sm:$0x3]
    %v2994 = vlaneseq
    %v2995 = vshrl.u32 %v2994, 7
    %v2996 = vsub.s32 0, %v2995
    %v2997 = vrot.slane %v2992, %v2996
    %v2998 = vlaneseq
    %v2999 = vshrl.u32 %v2998, 7
    %v3000 = vsub.s32 1, %v2999
    %v3001 = vrot.slane %v2992, %v3000
    %v3068 = vunpack.c.l.b16 %v2928
    %v3069 = vunpack.c.h.b16 %v2928
    %v3070 = vunpack.c.l.b16 %v2929
    %v3071 = vunpack.c.h.b16 %v2929
    %v3072 = vunpack.c.l.b16 %v2930
    %v3073 = vunpack.c.h.b16 %v2930
    %v3074 = vunpack.c.l.b16 %v2931
    %v3075 = vunpack.c.h.b16 %v2931
    %v3076 = vunpack.c.l.b16 %v2932
    %v3077 = vunpack.c.h.b16 %v2932
    %v3078 = vunpack.c.l.b16 %v2933
    %v3079 = vunpack.c.h.b16 %v2933
    %v3080 = vunpack.c.l.b16 %v2934
    %v3081 = vunpack.c.h.b16 %v2934
    %v3082 = vunpack.c.l.b16 %v2935
    %v3083 = vunpack.c.h.b16 %v2935
    %v3084 = vunpack.c.l.b16 %v2936
    %v3085 = vunpack.c.h.b16 %v2936
    %v3086 = vunpack.c.l.b16 %v2937
    %v3087 = vunpack.c.h.b16 %v2937
    %v3088 = vunpack.c.l.b16 %v2938
    %v3089 = vunpack.c.h.b16 %v2938
    %v3090 = vunpack.c.l.b16 %v2939
    %v3091 = vunpack.c.h.b16 %v2939
    %v3092 = vunpack.c.l.b16 %v2940
    %v3093 = vunpack.c.h.b16 %v2940
    %v3094 = vunpack.c.l.b16 %v2941
    %v3095 = vunpack.c.h.b16 %v2941
    %v3096 = vunpack.c.l.b16 %v2942
    %v3097 = vunpack.c.h.b16 %v2942
    %v3098 = vunpack.c.l.b16 %v2943
    %v3099 = vunpack.c.h.b16 %v2943
    %v3100 = vunpack.c.l.b16 %v2944
    %v3101 = vunpack.c.h.b16 %v2944
    %v3102 = vunpack.c.l.b16 %v2945
    %v3103 = vunpack.c.h.b16 %v2945
    %v3104 = vunpack.c.l.b16 %v2946
    %v3105 = vunpack.c.h.b16 %v2946
    %v3106 = vunpack.c.l.b16 %v2947
    %v3107 = vunpack.c.h.b16 %v2947
    %v3108 = vunpack.c.l.b16 %v2948
    %v3109 = vunpack.c.h.b16 %v2948
    %v3110 = vunpack.c.l.b16 %v2949
    %v3111 = vunpack.c.h.b16 %v2949
    %v3112 = vunpack.c.l.b16 %v2950
    %v3113 = vunpack.c.h.b16 %v2950
    %v3114 = vunpack.c.l.b16 %v2951
    %v3115 = vunpack.c.h.b16 %v2951
    %v3116 = vunpack.c.l.b16 %v2952
    %v3117 = vunpack.c.h.b16 %v2952
    %v3118 = vunpack.c.l.b16 %v2953
    %v3119 = vunpack.c.h.b16 %v2953
    %v3120 = vunpack.c.l.b16 %v2954
    %v3121 = vunpack.c.h.b16 %v2954
    %v3122 = vunpack.c.l.b16 %v2955
    %v3123 = vunpack.c.h.b16 %v2955
    %v3124 = vunpack.c.l.b16 %v2956
    %v3125 = vunpack.c.h.b16 %v2956
    %v3126 = vunpack.c.l.b16 %v2957
    %v3127 = vunpack.c.h.b16 %v2957
    %v3128 = vunpack.c.l.b16 %v2958
    %v3129 = vunpack.c.h.b16 %v2958
    %v3130 = vunpack.c.l.b16 %v2959
    %v3131 = vunpack.c.h.b16 %v2959
    %v3132 = vunpack.c.l.b16 %v2960
    %v3133 = vunpack.c.h.b16 %v2960
    %v3134 = vunpack.c.l.b16 %v2961
    %v3135 = vunpack.c.h.b16 %v2961
    %v3136 = vunpack.c.l.b16 %v2962
    %v3137 = vunpack.c.h.b16 %v2962
    %v3138 = vunpack.c.l.b16 %v2963
    %v3139 = vunpack.c.h.b16 %v2963
    %v3140 = vunpack.c.l.b16 %v2964
    %v3141 = vunpack.c.h.b16 %v2964
    %v3142 = vunpack.c.l.b16 %v2965
    %v3143 = vunpack.c.h.b16 %v2965
    %v3144 = vunpack.c.l.b16 %v2966
    %v3145 = vunpack.c.h.b16 %v2966
    %v3146 = vunpack.c.l.b16 %v2967
    %v3147 = vunpack.c.h.b16 %v2967
    %v3148 = vunpack.c.l.b16 %v2968
    %v3149 = vunpack.c.h.b16 %v2968
    %v3150 = vunpack.c.l.b16 %v2969
    %v3151 = vunpack.c.h.b16 %v2969
    %v3152 = vunpack.c.l.b16 %v2970
    %v3153 = vunpack.c.h.b16 %v2970
    %v3154 = vunpack.c.l.b16 %v2971
    %v3155 = vunpack.c.h.b16 %v2971
    %v3156 = vunpack.c.l.b16 %v2972
    %v3157 = vunpack.c.h.b16 %v2972
    %v3158 = vunpack.c.l.b16 %v2973
    %v3159 = vunpack.c.h.b16 %v2973
    %v3160 = vunpack.c.l.b16 %v2974
    %v3161 = vunpack.c.h.b16 %v2974
    %v3162 = vunpack.c.l.b16 %v2975
    %v3163 = vunpack.c.h.b16 %v2975
    %v3164 = vunpack.c.l.b16 %v2976
    %v3165 = vunpack.c.h.b16 %v2976
    %v3166 = vunpack.c.l.b16 %v2977
    %v3167 = vunpack.c.h.b16 %v2977
    %v3168 = vunpack.c.l.b16 %v2978
    %v3169 = vunpack.c.h.b16 %v2978
    %v3170 = vunpack.c.l.b16 %v2979
    %v3171 = vunpack.c.h.b16 %v2979
    %v3172 = vunpack.c.l.b16 %v2980
    %v3173 = vunpack.c.h.b16 %v2980
    %v3174 = vunpack.c.l.b16 %v2981
    %v3175 = vunpack.c.h.b16 %v2981
    %v3176 = vunpack.c.l.b16 %v2982
    %v3177 = vunpack.c.h.b16 %v2982
    %v3178 = vunpack.c.l.b16 %v2983
    %v3179 = vunpack.c.h.b16 %v2983
    %v3180 = vunpack.c.l.b16 %v2984
    %v3181 = vunpack.c.h.b16 %v2984
    %v3182 = vunpack.c.l.b16 %v2985
    %v3183 = vunpack.c.h.b16 %v2985
    %v3184 = vunpack.c.l.b16 %v2986
    %v3185 = vunpack.c.h.b16 %v2986
    %v3186 = vunpack.c.l.b16 %v2987
    %v3187 = vunpack.c.h.b16 %v2987
    %v3188 = vunpack.c.l.b16 %v2988
    %v3189 = vunpack.c.h.b16 %v2988
    %v3190 = vunpack.c.l.b16 %v2989
    %v3191 = vunpack.c.h.b16 %v2989
    %v3192 = vunpack.c.l.b16 %v2990
    %v3193 = vunpack.c.h.b16 %v2990
    %v3194 = vunpack.c.l.b16 %v2991
    %v3195 = vunpack.c.h.b16 %v2991
    %v3196 = vpack.c.b16 %v3070, %v3068
    %v3197 = vpack.c.b16 %v3071, %v3069
    %v3198 = vpack.c.b16 %v3074, %v3072
    %v3199 = vpack.c.b16 %v3075, %v3073
    %v3200 = vpack.c.b16 %v3078, %v3076
    %v3201 = vpack.c.b16 %v3079, %v3077
    %v3202 = vpack.c.b16 %v3082, %v3080
    %v3203 = vpack.c.b16 %v3083, %v3081
    %v3204 = vpack.c.b16 %v3086, %v3084
    %v3205 = vpack.c.b16 %v3087, %v3085
    %v3206 = vpack.c.b16 %v3090, %v3088
    %v3207 = vpack.c.b16 %v3091, %v3089
    %v3208 = vpack.c.b16 %v3094, %v3092
    %v3209 = vpack.c.b16 %v3095, %v3093
    %v3210 = vpack.c.b16 %v3098, %v3096
    %v3211 = vpack.c.b16 %v3099, %v3097
    %v3212 = vpack.c.b16 %v3102, %v3100
    %v3213 = vpack.c.b16 %v3103, %v3101
    %v3214 = vpack.c.b16 %v3106, %v3104
    %v3215 = vpack.c.b16 %v3107, %v3105
    %v3216 = vpack.c.b16 %v3110, %v3108
    %v3217 = vpack.c.b16 %v3111, %v3109
    %v3218 = vpack.c.b16 %v3114, %v3112
    %v3219 = vpack.c.b16 %v3115, %v3113
    %v3220 = vpack.c.b16 %v3118, %v3116
    %v3221 = vpack.c.b16 %v3119, %v3117
    %v3222 = vpack.c.b16 %v3122, %v3120
    %v3223 = vpack.c.b16 %v3123, %v3121
    %v3224 = vpack.c.b16 %v3126, %v3124
    %v3225 = vpack.c.b16 %v3127, %v3125
    %v3226 = vpack.c.b16 %v3130, %v3128
    %v3227 = vpack.c.b16 %v3131, %v3129
    %v3228 = vpack.c.b16 %v3134, %v3132
    %v3229 = vpack.c.b16 %v3135, %v3133
    %v3230 = vpack.c.b16 %v3138, %v3136
    %v3231 = vpack.c.b16 %v3139, %v3137
    %v3232 = vpack.c.b16 %v3142, %v3140
    %v3233 = vpack.c.b16 %v3143, %v3141
    %v3234 = vpack.c.b16 %v3146, %v3144
    %v3235 = vpack.c.b16 %v3147, %v3145
    %v3236 = vpack.c.b16 %v3150, %v3148
    %v3237 = vpack.c.b16 %v3151, %v3149
    %v3238 = vpack.c.b16 %v3154, %v3152
    %v3239 = vpack.c.b16 %v3155, %v3153
    %v3240 = vpack.c.b16 %v3158, %v3156
    %v3241 = vpack.c.b16 %v3159, %v3157
    %v3242 = vpack.c.b16 %v3162, %v3160
    %v3243 = vpack.c.b16 %v3163, %v3161
    %v3244 = vpack.c.b16 %v3166, %v3164
    %v3245 = vpack.c.b16 %v3167, %v3165
    %v3246 = vpack.c.b16 %v3170, %v3168
    %v3247 = vpack.c.b16 %v3171, %v3169
    %v3248 = vpack.c.b16 %v3174, %v3172
    %v3249 = vpack.c.b16 %v3175, %v3173
    %v3250 = vpack.c.b16 %v3178, %v3176
    %v3251 = vpack.c.b16 %v3179, %v3177
    %v3252 = vpack.c.b16 %v3182, %v3180
    %v3253 = vpack.c.b16 %v3183, %v3181
    %v3254 = vpack.c.b16 %v3186, %v3184
    %v3255 = vpack.c.b16 %v3187, %v3185
    %v3256 = vpack.c.b16 %v3190, %v3188
    %v3257 = vpack.c.b16 %v3191, %v3189
    %v3258 = vpack.c.b16 %v3194, %v3192
    %v3259 = vpack.c.b16 %v3195, %v3193
    %3324 = vmatprep.subr.bf16.mxu0 %v3211
    %3325 = vmatpush1.bf16.msra.mxu0 %v3210
    %3326 = vmatprep.subr.bf16.mxu0 %v3209
    %3327 = vmatpush1.bf16.msra.mxu0 %v3208
    %3328 = vmatprep.subr.bf16.mxu0 %v3207
    %3329 = vmatpush1.bf16.msra.mxu0 %v3206
    %3330 = vmatprep.subr.bf16.mxu0 %v3205
    %3331 = vmatpush1.bf16.msra.mxu0 %v3204
    %3332 = vmatprep.subr.bf16.mxu0 %v3203
    %3333 = vmatpush1.bf16.msra.mxu0 %v3202
    %3334 = vmatprep.subr.bf16.mxu0 %v3201
    %3335 = vmatpush1.bf16.msra.mxu0 %v3200
    %3336 = vmatprep.subr.bf16.mxu0 %v3199
    %3337 = vmatpush1.bf16.msra.mxu0 %v3198
    %3338 = vmatprep.subr.bf16.mxu0 %v3197
    %3339 = vmatpush1.bf16.msra.mxu0 %v3196
    %3340 = vmatprep.subr.bf16.mxu0 %v3227
    %3341 = vmatpush2.bf16.msra.mxu0 %v3226
    %3342 = vmatprep.subr.bf16.mxu0 %v3225
    %3343 = vmatpush2.bf16.msra.mxu0 %v3224
    %3344 = vmatprep.subr.bf16.mxu0 %v3223
    %3345 = vmatpush2.bf16.msra.mxu0 %v3222
    %3346 = vmatprep.subr.bf16.mxu0 %v3221
    %3347 = vmatpush2.bf16.msra.mxu0 %v3220
    %3348 = vmatprep.subr.bf16.mxu0 %v3219
    %3349 = vmatpush2.bf16.msra.mxu0 %v3218
    %3350 = vmatprep.subr.bf16.mxu0 %v3217
    %3351 = vmatpush2.bf16.msra.mxu0 %v3216
    %3352 = vmatprep.subr.bf16.mxu0 %v3215
    %3353 = vmatpush2.bf16.msra.mxu0 %v3214
    %3354 = vmatprep.subr.bf16.mxu0 %v3213
    %3355 = vmatpush2.bf16.msra.mxu0 %v3212
    %3356 = vmatprep.mubr.bf16.mxu0 %v2925
    %3357 = vmatmul.mubr.bf16.gmra.mxu0 %v2924
    %v3358 = vpop.f32.mrf.mxu0
    %v3359 = vadd.f32 %v2997, %v3358
    %v3360 = vpop.f32.mrf.mxu0
    %v3361 = vadd.f32 %v3001, %v3360
    %v3362 = vpop.f32.mrf.mxu0
    %v3363 = vpop.f32.mrf.mxu0
    %3364 = vdwg.mxu0
    %3365 = vmatprep.subr.bf16.mxu0 %v3243
    %3366 = vmatpush1.bf16.msra.mxu0 %v3242
    %3367 = vmatprep.subr.bf16.mxu0 %v3241
    %3368 = vmatpush1.bf16.msra.mxu0 %v3240
    %3369 = vmatprep.subr.bf16.mxu0 %v3239
    %3370 = vmatpush1.bf16.msra.mxu0 %v3238
    %3371 = vmatprep.subr.bf16.mxu0 %v3237
    %3372 = vmatpush1.bf16.msra.mxu0 %v3236
    %3373 = vmatprep.subr.bf16.mxu0 %v3235
    %3374 = vmatpush1.bf16.msra.mxu0 %v3234
    %3375 = vmatprep.subr.bf16.mxu0 %v3233
    %3376 = vmatpush1.bf16.msra.mxu0 %v3232
    %3377 = vmatprep.subr.bf16.mxu0 %v3231
    %3378 = vmatpush1.bf16.msra.mxu0 %v3230
    %3379 = vmatprep.subr.bf16.mxu0 %v3229
    %3380 = vmatpush1.bf16.msra.mxu0 %v3228
    %3381 = vmatprep.subr.bf16.mxu0 %v3259
    %3382 = vmatpush2.bf16.msra.mxu0 %v3258
    %3383 = vmatprep.subr.bf16.mxu0 %v3257
    %3384 = vmatpush2.bf16.msra.mxu0 %v3256
    %3385 = vmatprep.subr.bf16.mxu0 %v3255
    %3386 = vmatpush2.bf16.msra.mxu0 %v3254
    %3387 = vmatprep.subr.bf16.mxu0 %v3253
    %3388 = vmatpush2.bf16.msra.mxu0 %v3252
    %3389 = vmatprep.subr.bf16.mxu0 %v3251
    %3390 = vmatpush2.bf16.msra.mxu0 %v3250
    %3391 = vmatprep.subr.bf16.mxu0 %v3249
    %3392 = vmatpush2.bf16.msra.mxu0 %v3248
    %3393 = vmatprep.subr.bf16.mxu0 %v3247
    %3394 = vmatpush2.bf16.msra.mxu0 %v3246
    %3395 = vmatprep.subr.bf16.mxu0 %v3245
    %3396 = vmatpush2.bf16.msra.mxu0 %v3244
    %3397 = vmatprep.mubr.bf16.mxu0 %v2927
    %3398 = vmatmul.mubr.bf16.gmra.mxu0 %v2926
    %v3399 = vpop.f32.mrf.mxu0
    %v3400 = vadd.f32 %v3359, %v3399
    %v3401 = vpop.f32.mrf.mxu0
    %v3402 = vadd.f32 %v3361, %v3401
    %v3403 = vpop.f32.mrf.mxu0
    %v3404 = vpop.f32.mrf.mxu0
    %3405 = vdwg.mxu0
    %v3406 = vmul.f32 %v3400, %v3400
    %v3407 = vmul.f32 %v3402, %v3402
    %vm3408 = vcmask 1045504
    %v3409 = vsel %vm3408, %v3406, 0.0
    %v3410 = vsel %vm3408, %v3407, 0.0
    %v3411 = vadd.f32 %v3409, %v3410
    %3412 = vadd.xlane.f32.xlu0 %v3411
    %v3413 = vpop.xlane.xlu0 %3412
    %v3414 = vmax.f32 %v3413, 1e-24
    %v3415 = vrsqrt.pop %v3414
    %v3416 = vmul.f32 %v3400, %v3415
    %v3417 = vmul.f32 %v3402, %v3415
    %3418 = vst [vmem:[%s7] sm:$0x3f] %v3416
    %3419 = vst [vmem:[%s7 + $0x8] sm:$0x3f] %v3417
    // Predicated region
    $region54: #{forward.3} parent=1 // pred_check
      _
    $region55: #{forward.3} parent=1 // pred_check_branch
      %3421 = sbr.rel (0) target = $region57
    $region56: #{forward.3} parent=1 // pred_region
      _
    $region57: #{forward.3} parent=1 // pred_fallthru
      _
    // Predicated region
    $region58: #{forward.3} parent=1 // pred_check
      _
    $region59: #{forward.3} parent=1 // pred_check_branch
      %3423 = sbr.rel (0) target = $region61
    $region60: #{forward.3} parent=1 // pred_region
      _
    $region61: #{forward.3} parent=1 // pred_fallthru
      _
    %3424 = vsyncpa [#allocation3], 1
    %3425 = vsyncpa [#allocation5], 1
    %3426 = vsyncpa [#allocation8], 1
    %3427 = vsyncpa [#allocation11], 1

</llo_original>
